<compile_context>
chip_gen: v7x
topology: tpu7x:2x2x1
jax: 0.10.0
libtpu: 0.0.40
codegen_flags: <defaults>
</compile_context>

<pallas_src>
import functools
import math

import jax
import jax.numpy as jnp
from jax.experimental import pallas as pl
from jax.experimental.pallas import tpu as pltpu

_EPS = 1e-5          # nn.BatchNorm2d default
_NEG_SLOPE = 0.2     # LeakyReLU(negative_slope=0.2)


def _leaky_relu(x):
    return jnp.maximum(x, _NEG_SLOPE * x)


def _bn_scale_shift(s, ss, gamma, beta, count):
    """Training-mode BatchNorm: batch mean / biased var -> affine scale & shift."""
    mean = s * (1.0 / count)
    var = jnp.maximum(ss * (1.0 / count) - mean * mean, 0.0)
    scale = gamma * jax.lax.rsqrt(var + _EPS)
    shift = beta - mean * scale
    return scale, shift


# ----------------- kernel A: 1x1 conv -> per-batch BN1 stat partials -----------------

def _conv1_stats_kernel(x_ref, w1_ref, b1_ref, st1_ref):
    # x: (1, H*W, Cin) bf16 ; w1: (Cin, Cmid) bf16 ; b1: (1, Cmid) f32
    # st1: (1, 2, Cmid) per-batch [sum, sumsq] of the raw conv1 output.
    y1 = jnp.dot(x_ref[0], w1_ref[...],
                 preferred_element_type=jnp.float32) + b1_ref[...]
    s = jnp.sum(y1, axis=0, keepdims=True)
    ss = jnp.sum(y1 * y1, axis=0, keepdims=True)
    st1_ref[...] = jnp.concatenate([s, ss], axis=0).reshape(st1_ref.shape)


# ------- kernel B: conv1 + BN1 + LeakyReLU + fused-im2col 3x3 conv + BN2 stats -------

def _mid_kernel(st1_ref, gb1_ref, x_ref, w1_ref, b1_ref, w2_ref, b2_ref,
                y2_ref, st2_ref, apad_ref, *, h, w, count):
    cmid = w1_ref.shape[1]
    cout = w2_ref.shape[0]
    hw = h * w

    # Recompute the cheap K=Cin 1x1 conv instead of round-tripping y1 via HBM.
    y1 = jnp.dot(x_ref[0], w1_ref[...],
                 preferred_element_type=jnp.float32) + b1_ref[...]     # (hw, cmid)

    # BN1 scale/shift from the global (all-batch) stats, reduced in-kernel.
    st1 = st1_ref[...]
    scale1, shift1 = _bn_scale_shift(jnp.sum(st1[:, 0:1, :], axis=0),
                                     jnp.sum(st1[:, 1:2, :], axis=0),
                                     gb1_ref[0:1, :], gb1_ref[1:2, :], count)
    a = _leaky_relu(y1 * scale1 + shift1)                              # (hw, cmid)

    # Zero-padded ring in a VMEM scratch (Conv2dSame zero-pads the *activated* tensor).
    apad_ref[...] = jnp.zeros(apad_ref.shape, apad_ref.dtype)
    apad_ref[1:h + 1, 1:w + 1, :] = a.astype(jnp.bfloat16).reshape(h, w, cmid)

    # 3x3 conv as ONE K = 9*Cmid matmul over an in-kernel im2col slab.
    taps = [apad_ref[dy:dy + h, dx:dx + w, :].reshape(hw, cmid)
            for dy in range(3) for dx in range(3)]
    slab = jnp.concatenate(taps, axis=1)                               # (hw, 9*cmid) bf16
    # "NT" contraction -> lane-dense result (Cout, H*W).
    z = jax.lax.dot_general(w2_ref[...], slab,
                            dimension_numbers=(((1,), (1,)), ((), ())),
                            preferred_element_type=jnp.float32)        # (cout, hw)
    y2 = z + b2_ref[...]                                               # b2: (cout, 1)

    y2_ref[...] = y2.astype(y2_ref.dtype).reshape(1, cout, hw)         # bf16, lane-dense
    s = jnp.sum(y2, axis=1, keepdims=True)                             # (cout, 1)
    ss = jnp.sum(y2 * y2, axis=1, keepdims=True)
    st2_ref[...] = jnp.concatenate([s, ss], axis=1).reshape(1, cout, 2)


# ----------- kernel C: BN2 + LeakyReLU + 1x1 conv + sigmoid (lane-dense out) -----------

def _final_kernel(st2_ref, gb2_ref, y2_ref, w3_ref, b3_ref, o_ref, *, count):
    cout = y2_ref.shape[1]
    hw = y2_ref.shape[2]

    st2 = st2_ref[...]
    scale2, shift2 = _bn_scale_shift(jnp.sum(st2[:, :, 0:1], axis=0),
                                     jnp.sum(st2[:, :, 1:2], axis=0),
                                     gb2_ref[:, 0:1], gb2_ref[:, 1:2], count)
    a = _leaky_relu(y2_ref[0].astype(jnp.float32) * scale2 + shift2)   # (cout, hw)

    # Final 1x1 conv (K = N = cout = 4): unrolled f32 VPU FMAs with SMEM scalars.
    rows = []
    for co in range(cout):
        acc = a[0:1, :] * w3_ref[0, co]
        for ci in range(1, cout):
            acc = acc + a[ci:ci + 1, :] * w3_ref[ci, co]
        rows.append(acc + b3_ref[co])
    z = jnp.concatenate(rows, axis=0)                                  # (cout, hw)

    # Sigmoid: exp and reciprocal both on the EUP; approx rcp clamped to <= 1.
    p = pl.reciprocal(1.0 + jnp.exp(-z), approx=True)
    o_ref[...] = jnp.minimum(p, 1.0).reshape(1, cout, hw)


# --------------------------------- forward wrapper ---------------------------------

def blend_block_forward(x_nchw, params):
    n, cin, h, w = x_nchw.shape
    hw = h * w

    w1, b1, g1, be1 = params["w1"], params["b1"], params["g1"], params["be1"]
    w2, b2, g2, be2 = params["w2"], params["b2"], params["g2"], params["be2"]
    w3, b3 = params["w3"], params["b3"]
    cmid = w1.shape[1]
    cout = w2.shape[-1]
    count = float(n * hw)

    # Tiny one-off relayouts / casts in the wrapper.
    x_flat = jnp.transpose(x_nchw, (0, 2, 3, 1)).reshape(n, hw, cin).astype(jnp.bfloat16)
    w1b = w1.astype(jnp.bfloat16)                                          # (cin, cmid)
    b1r = b1.reshape(1, cmid).astype(jnp.float32)
    gb1 = jnp.stack([g1, be1], axis=0).astype(jnp.float32)                 # (2, cmid)
    w2cf = jnp.transpose(w2.reshape(9 * cmid, cout)).astype(jnp.bfloat16)  # (cout, 9*cmid)
    b2r = b2.reshape(cout, 1).astype(jnp.float32)
    gb2 = jnp.stack([g2, be2], axis=1).astype(jnp.float32)                 # (cout, 2)
    w3f = w3.astype(jnp.float32)                                           # (cout_in, cout_out)
    b3f = b3.astype(jnp.float32)                                           # (cout,)

    par = pltpu.CompilerParams(dimension_semantics=("parallel",))

    # ---- kernel A: per-batch BN1 stat partials (no y1 written to HBM) ----
    st1 = pl.pallas_call(
        _conv1_stats_kernel,
        out_shape=jax.ShapeDtypeStruct((n, 2, cmid), jnp.float32),
        grid=(n,),
        in_specs=[
            pl.BlockSpec((1, hw, cin), lambda i: (i, 0, 0)),
            pl.BlockSpec((cin, cmid), lambda i: (0, 0)),
            pl.BlockSpec((1, cmid), lambda i: (0, 0)),
        ],
        out_specs=pl.BlockSpec((1, 2, cmid), lambda i: (i, 0, 0)),
        compiler_params=par,
    )(x_flat, w1b, b1r)

    # ---- kernel B: conv1 + BN1 + act + single-matmul 3x3 conv + BN2 stats ----
    y2, st2 = pl.pallas_call(
        functools.partial(_mid_kernel, h=h, w=w, count=count),
        out_shape=(jax.ShapeDtypeStruct((n, cout, hw), jnp.bfloat16),
                   jax.ShapeDtypeStruct((n, cout, 2), jnp.float32)),
        grid=(n,),
        in_specs=[
            pl.BlockSpec((n, 2, cmid), lambda i: (0, 0, 0)),    # st1 (full, tiny)
            pl.BlockSpec((2, cmid), lambda i: (0, 0)),          # gamma1/beta1
            pl.BlockSpec((1, hw, cin), lambda i: (i, 0, 0)),    # x
            pl.BlockSpec((cin, cmid), lambda i: (0, 0)),        # w1
            pl.BlockSpec((1, cmid), lambda i: (0, 0)),          # b1
            pl.BlockSpec((cout, 9 * cmid), lambda i: (0, 0)),   # w2 (cout, 9*cmid)
            pl.BlockSpec((cout, 1), lambda i: (0, 0)),          # b2
        ],
        out_specs=(
            pl.BlockSpec((1, cout, hw), lambda i: (i, 0, 0)),   # y2 (lane-dense)
            pl.BlockSpec((1, cout, 2), lambda i: (i, 0, 0)),    # BN2 stat partials
        ),
        scratch_shapes=[pltpu.VMEM((h + 2, w + 2, cmid), jnp.bfloat16)],
        compiler_params=par,
    )(st1, gb1, x_flat, w1b, b1r, w2cf, b2r)

    # ---- kernel C: BN2 + LeakyReLU + 1x1 conv + sigmoid ----
    out_flat = pl.pallas_call(
        functools.partial(_final_kernel, count=count),
        out_shape=jax.ShapeDtypeStruct((n, cout, hw), jnp.float32),
        grid=(n,),
        in_specs=[
            pl.BlockSpec((n, cout, 2), lambda i: (0, 0, 0)),    # st2 (full, tiny)
            pl.BlockSpec((cout, 2), lambda i: (0, 0)),          # gamma2/beta2
            pl.BlockSpec((1, cout, hw), lambda i: (i, 0, 0)),   # y2
            pl.BlockSpec(memory_space=pltpu.MemorySpace.SMEM),  # w3 scalars
            pl.BlockSpec(memory_space=pltpu.MemorySpace.SMEM),  # b3 scalars
        ],
        out_specs=pl.BlockSpec((1, cout, hw), lambda i: (i, 0, 0)),
        compiler_params=par,
    )(st2, gb2, y2, w3f, b3f)

    # Output is already NCHW-flat: a pure reshape, no transpose.
    return out_flat.reshape(n, cout, h, w)


# ------------------------------------- main -------------------------------------

if __name__ == "__main__":
    key = jax.random.PRNGKey(0)
    N, C_IN, C_OUT, H, W = 2, 8, 4, 16, 16
    C_MID = max(C_IN // 2, 32)               # BlendBlock: c_mid = max(c_in // 2, 32)
    ks = jax.random.split(key, 8)

    x = jax.random.normal(ks[0], (N, C_IN, H, W), jnp.float32)
    params = {
        "w1": jax.random.normal(ks[1], (C_IN, C_MID), jnp.float32) / math.sqrt(C_IN),
        "b1": 0.01 * jax.random.normal(ks[2], (C_MID,), jnp.float32),
        "g1": jnp.ones((C_MID,), jnp.float32),
        "be1": jnp.zeros((C_MID,), jnp.float32),
        "w2": jax.random.normal(ks[3], (3, 3, C_MID, C_OUT), jnp.float32) / math.sqrt(9 * C_MID),
        "b2": 0.01 * jax.random.normal(ks[4], (C_OUT,), jnp.float32),
        "g2": jnp.ones((C_OUT,), jnp.float32),
        "be2": jnp.zeros((C_OUT,), jnp.float32),
        "w3": jax.random.normal(ks[5], (C_OUT, C_OUT), jnp.float32) / math.sqrt(C_OUT),
        "b3": 0.01 * jax.random.normal(ks[6], (C_OUT,), jnp.float32),
    }

    fwd = jax.jit(blend_block_forward)
    out = fwd(x, params)
    jax.block_until_ready(out)

    assert out.shape == (N, C_OUT, H, W)
    assert bool(jnp.all(jnp.isfinite(out)))
    assert bool(jnp.all((out >= 0.0) & (out <= 1.0)))   # sigmoid range
    print("KERNEL_OK")
</pallas_src>

<mosaic_0001>
module attributes {stable_mosaic.version = 11 : i64} {
  func.func @_conv1_stats_kernel(%arg0: i32, %arg1: memref<1x256x8xbf16, #tpu.memory_space<vmem>>, %arg2: memref<8x32xbf16, #tpu.memory_space<vmem>>, %arg3: memref<1x32xf32, #tpu.memory_space<vmem>>, %arg4: memref<1x2x32xf32, #tpu.memory_space<vmem>>) attributes {dimension_semantics = [#tpu.dimension_semantics<parallel>], iteration_bounds = array<i64: 2>, scalar_prefetch = 0 : i64, scratch_operands = 0 : i64, tpu.core_type = #tpu.core_type<tc>, window_params = [{transform_indices = @transform_0, window_bounds = array<i64: 1, 256, 8>}, {pipeline_mode = #tpu.pipeline_mode<synchronous>, transform_indices = @transform_1, window_bounds = array<i64: 8, 32>}, {pipeline_mode = #tpu.pipeline_mode<synchronous>, transform_indices = @transform_2, window_bounds = array<i64: 1, 32>}, {transform_indices = @transform_3, window_bounds = array<i64: 1, 2, 32>}]} {
    %c0 = arith.constant 0 : index
    %c0_0 = arith.constant 0 : index
    %c0_1 = arith.constant 0 : index
    %0 = vector.load %arg1[%c0, %c0_0, %c0_1] : memref<1x256x8xbf16, #tpu.memory_space<vmem>>, vector<1x256x8xbf16>
    %1 = vector.shape_cast %0 : vector<1x256x8xbf16> to vector<256x8xbf16>
    %c0_2 = arith.constant 0 : index
    %c0_3 = arith.constant 0 : index
    %2 = vector.load %arg2[%c0_2, %c0_3] : memref<8x32xbf16, #tpu.memory_space<vmem>>, vector<8x32xbf16>
    %cst = arith.constant dense<0.000000e+00> : vector<256x32xf32>
    %3 = tpu.matmul %1, %2, %cst {dimension_numbers = #tpu.dot_dimension_numbers<[1], [0], [0], [1], [0, 0, 1, 1], [], []>} : vector<256x8xbf16>, vector<8x32xbf16>, vector<256x32xf32> -> vector<256x32xf32>
    %c0_4 = arith.constant 0 : index
    %c0_5 = arith.constant 0 : index
    %4 = vector.load %arg3[%c0_4, %c0_5] : memref<1x32xf32, #tpu.memory_space<vmem>>, vector<1x32xf32>
    %5 = vector.broadcast %4 : vector<1x32xf32> to vector<256x32xf32>
    %6 = arith.addf %3, %5 : vector<256x32xf32>
    %cst_6 = arith.constant dense<0.000000e+00> : vector<32xf32>
    %7 = vector.multi_reduction <add>, %6, %cst_6 [0] : vector<256x32xf32> to vector<32xf32>
    %8 = vector.shape_cast %7 : vector<32xf32> to vector<1x32xf32>
    %9 = arith.mulf %6, %6 : vector<256x32xf32>
    %cst_7 = arith.constant dense<0.000000e+00> : vector<32xf32>
    %10 = vector.multi_reduction <add>, %9, %cst_7 [0] : vector<256x32xf32> to vector<32xf32>
    %11 = vector.shape_cast %10 : vector<32xf32> to vector<1x32xf32>
    %12 = tpu.concatenate %8, %11 in 0 : vector<1x32xf32>, vector<1x32xf32> -> vector<2x32xf32>
    %13 = vector.shape_cast %12 : vector<2x32xf32> to vector<1x2x32xf32>
    %c0_8 = arith.constant 0 : index
    %c0_9 = arith.constant 0 : index
    %c0_10 = arith.constant 0 : index
    %14 = vector.load %arg4[%c0_8, %c0_9, %c0_10] : memref<1x2x32xf32, #tpu.memory_space<vmem>>, vector<1x2x32xf32>
    tpu.vector_store %arg4[%c0_8, %c0_9, %c0_10], %13 {strides = array<i32>} : memref<1x2x32xf32, #tpu.memory_space<vmem>>, vector<1x2x32xf32>,
    return
  }
  func.func @transform_0(%arg0: i32) -> (i32, i32, i32) {
    %c0_i32 = arith.constant 0 : i32
    %c0_i32_0 = arith.constant 0 : i32
    %c0_i32_1 = arith.constant 0 : i32
    return %arg0, %c0_i32, %c0_i32_0 : i32, i32, i32
  }
  func.func @transform_1(%arg0: i32) -> (i32, i32) {
    %c0_i32 = arith.constant 0 : i32
    %c0_i32_0 = arith.constant 0 : i32
    %c0_i32_1 = arith.constant 0 : i32
    return %c0_i32, %c0_i32_0 : i32, i32
  }
  func.func @transform_2(%arg0: i32) -> (i32, i32) {
    %c0_i32 = arith.constant 0 : i32
    %c0_i32_0 = arith.constant 0 : i32
    %c0_i32_1 = arith.constant 0 : i32
    return %c0_i32, %c0_i32_0 : i32, i32
  }
  func.func @transform_3(%arg0: i32) -> (i32, i32, i32) {
    %c0_i32 = arith.constant 0 : i32
    %c0_i32_0 = arith.constant 0 : i32
    %c0_i32_1 = arith.constant 0 : i32
    return %arg0, %c0_i32, %c0_i32_0 : i32, i32, i32
  }
}

module attributes {stable_mosaic.version = 11 : i64} {
  func.func @_mid_kernel(%arg0: i32, %arg1: memref<2x2x32xf32, #tpu.memory_space<vmem>>, %arg2: memref<2x32xf32, #tpu.memory_space<vmem>>, %arg3: memref<1x256x8xbf16, #tpu.memory_space<vmem>>, %arg4: memref<8x32xbf16, #tpu.memory_space<vmem>>, %arg5: memref<1x32xf32, #tpu.memory_space<vmem>>, %arg6: memref<4x288xbf16, #tpu.memory_space<vmem>>, %arg7: memref<4x1xf32, #tpu.memory_space<vmem>>, %arg8: memref<1x4x256xbf16, #tpu.memory_space<vmem>>, %arg9: memref<1x4x2xf32, #tpu.memory_space<vmem>>, %arg10: memref<18x18x32xbf16, #tpu.memory_space<vmem>>) attributes {dimension_semantics = [#tpu.dimension_semantics<parallel>], iteration_bounds = array<i64: 2>, scalar_prefetch = 0 : i64, scratch_operands = 1 : i64, tpu.core_type = #tpu.core_type<tc>, window_params = [{pipeline_mode = #tpu.pipeline_mode<synchronous>, transform_indices = @transform_0, window_bounds = array<i64: 2, 2, 32>}, {pipeline_mode = #tpu.pipeline_mode<synchronous>, transform_indices = @transform_1, window_bounds = array<i64: 2, 32>}, {transform_indices = @transform_2, window_bounds = array<i64: 1, 256, 8>}, {pipeline_mode = #tpu.pipeline_mode<synchronous>, transform_indices = @transform_3, window_bounds = array<i64: 8, 32>}, {pipeline_mode = #tpu.pipeline_mode<synchronous>, transform_indices = @transform_4, window_bounds = array<i64: 1, 32>}, {pipeline_mode = #tpu.pipeline_mode<synchronous>, transform_indices = @transform_5, window_bounds = array<i64: 4, 288>}, {pipeline_mode = #tpu.pipeline_mode<synchronous>, transform_indices = @transform_6, window_bounds = array<i64: 4, 1>}, {transform_indices = @transform_7, window_bounds = array<i64: 1, 4, 256>}, {transform_indices = @transform_8, window_bounds = array<i64: 1, 4, 2>}]} {
    %c0 = arith.constant 0 : index
    %c0_0 = arith.constant 0 : index
    %c0_1 = arith.constant 0 : index
    %0 = vector.load %arg3[%c0, %c0_0, %c0_1] : memref<1x256x8xbf16, #tpu.memory_space<vmem>>, vector<1x256x8xbf16>
    %1 = vector.shape_cast %0 : vector<1x256x8xbf16> to vector<256x8xbf16>
    %c0_2 = arith.constant 0 : index
    %c0_3 = arith.constant 0 : index
    %2 = vector.load %arg4[%c0_2, %c0_3] : memref<8x32xbf16, #tpu.memory_space<vmem>>, vector<8x32xbf16>
    %cst = arith.constant dense<0.000000e+00> : vector<256x32xf32>
    %3 = tpu.matmul %1, %2, %cst {dimension_numbers = #tpu.dot_dimension_numbers<[1], [0], [0], [1], [0, 0, 1, 1], [], []>} : vector<256x8xbf16>, vector<8x32xbf16>, vector<256x32xf32> -> vector<256x32xf32>
    %c0_4 = arith.constant 0 : index
    %c0_5 = arith.constant 0 : index
    %4 = vector.load %arg5[%c0_4, %c0_5] : memref<1x32xf32, #tpu.memory_space<vmem>>, vector<1x32xf32>
    %5 = vector.broadcast %4 : vector<1x32xf32> to vector<256x32xf32>
    %6 = arith.addf %3, %5 : vector<256x32xf32>
    %c0_6 = arith.constant 0 : index
    %c0_7 = arith.constant 0 : index
    %c0_8 = arith.constant 0 : index
    %7 = vector.load %arg1[%c0_6, %c0_7, %c0_8] : memref<2x2x32xf32, #tpu.memory_space<vmem>>, vector<2x2x32xf32>
    %8 = vector.extract_strided_slice %7 {offsets = [0, 0, 0], sizes = [2, 1, 32], strides = [1, 1, 1]} : vector<2x2x32xf32> to vector<2x1x32xf32>
    %cst_9 = arith.constant dense<0.000000e+00> : vector<1x32xf32>
    %9 = vector.multi_reduction <add>, %8, %cst_9 [0] : vector<2x1x32xf32> to vector<1x32xf32>
    %10 = vector.extract_strided_slice %7 {offsets = [0, 1, 0], sizes = [2, 1, 32], strides = [1, 1, 1]} : vector<2x2x32xf32> to vector<2x1x32xf32>
    %cst_10 = arith.constant dense<0.000000e+00> : vector<1x32xf32>
    %11 = vector.multi_reduction <add>, %10, %cst_10 [0] : vector<2x1x32xf32> to vector<1x32xf32>
    %c0_11 = arith.constant 0 : index
    %c0_12 = arith.constant 0 : index
    %12 = vector.load %arg2[%c0_11, %c0_12] : memref<2x32xf32, #tpu.memory_space<vmem>>, vector<1x32xf32>
    %c1 = arith.constant 1 : index
    %c0_13 = arith.constant 0 : index
    %13 = vector.load %arg2[%c1, %c0_13] : memref<2x32xf32, #tpu.memory_space<vmem>>, vector<1x32xf32>
    %cst_14 = arith.constant 0.001953125 : f32
    %14 = vector.broadcast %cst_14 : f32 to vector<1x32xf32>
    %15 = arith.mulf %9, %14 : vector<1x32xf32>
    %cst_15 = arith.constant 0.001953125 : f32
    %16 = vector.broadcast %cst_15 : f32 to vector<1x32xf32>
    %17 = arith.mulf %11, %16 : vector<1x32xf32>
    %18 = arith.mulf %15, %15 : vector<1x32xf32>
    %19 = arith.subf %17, %18 : vector<1x32xf32>
    %cst_16 = arith.constant 0.000000e+00 : f32
    %20 = vector.broadcast %cst_16 : f32 to vector<1x32xf32>
    %21 = arith.maximumf %19, %20 : vector<1x32xf32>
    %cst_17 = arith.constant 9.99999974E-6 : f32
    %22 = vector.broadcast %cst_17 : f32 to vector<1x32xf32>
    %23 = arith.addf %21, %22 : vector<1x32xf32>
    %24 = math.rsqrt %23 : vector<1x32xf32>
    %25 = arith.mulf %12, %24 : vector<1x32xf32>
    %26 = arith.mulf %15, %25 : vector<1x32xf32>
    %27 = arith.subf %13, %26 : vector<1x32xf32>
    %28 = vector.broadcast %25 : vector<1x32xf32> to vector<256x32xf32>
    %29 = arith.mulf %6, %28 : vector<256x32xf32>
    %30 = vector.broadcast %27 : vector<1x32xf32> to vector<256x32xf32>
    %31 = arith.addf %29, %30 : vector<256x32xf32>
    %cst_18 = arith.constant 2.000000e-01 : f32
    %32 = vector.broadcast %cst_18 : f32 to vector<256x32xf32>
    %33 = arith.mulf %32, %31 : vector<256x32xf32>
    %34 = arith.maximumf %31, %33 : vector<256x32xf32>
    %cst_19 = arith.constant 0.000000e+00 : bf16
    %35 = vector.broadcast %cst_19 : bf16 to vector<18x18x32xbf16>
    %c0_20 = arith.constant 0 : index
    %c0_21 = arith.constant 0 : index
    %c0_22 = arith.constant 0 : index
    %36 = vector.load %arg10[%c0_20, %c0_21, %c0_22] : memref<18x18x32xbf16, #tpu.memory_space<vmem>>, vector<18x18x32xbf16>
    tpu.vector_store %arg10[%c0_20, %c0_21, %c0_22], %35 {strides = array<i32>} : memref<18x18x32xbf16, #tpu.memory_space<vmem>>, vector<18x18x32xbf16>,
    %37 = arith.truncf %34 : vector<256x32xf32> to vector<256x32xbf16>
    %38 = vector.shape_cast %37 : vector<256x32xbf16> to vector<16x16x32xbf16>
    %c1_23 = arith.constant 1 : index
    %c1_24 = arith.constant 1 : index
    %c0_25 = arith.constant 0 : index
    %39 = vector.load %arg10[%c1_23, %c1_24, %c0_25] : memref<18x18x32xbf16, #tpu.memory_space<vmem>>, vector<16x16x32xbf16>
    tpu.vector_store %arg10[%c1_23, %c1_24, %c0_25], %38 {strides = array<i32>} : memref<18x18x32xbf16, #tpu.memory_space<vmem>>, vector<16x16x32xbf16>,
    %c0_26 = arith.constant 0 : index
    %c0_27 = arith.constant 0 : index
    %c0_28 = arith.constant 0 : index
    %40 = vector.load %arg10[%c0_26, %c0_27, %c0_28] : memref<18x18x32xbf16, #tpu.memory_space<vmem>>, vector<16x16x32xbf16>
    %41 = vector.shape_cast %40 : vector<16x16x32xbf16> to vector<256x32xbf16>
    %c0_29 = arith.constant 0 : index
    %c1_30 = arith.constant 1 : index
    %c0_31 = arith.constant 0 : index
    %42 = vector.load %arg10[%c0_29, %c1_30, %c0_31] : memref<18x18x32xbf16, #tpu.memory_space<vmem>>, vector<16x16x32xbf16>
    %43 = vector.shape_cast %42 : vector<16x16x32xbf16> to vector<256x32xbf16>
    %c0_32 = arith.constant 0 : index
    %c2 = arith.constant 2 : index
    %c0_33 = arith.constant 0 : index
    %44 = vector.load %arg10[%c0_32, %c2, %c0_33] : memref<18x18x32xbf16, #tpu.memory_space<vmem>>, vector<16x16x32xbf16>
    %45 = vector.shape_cast %44 : vector<16x16x32xbf16> to vector<256x32xbf16>
    %c1_34 = arith.constant 1 : index
    %c0_35 = arith.constant 0 : index
    %c0_36 = arith.constant 0 : index
    %46 = vector.load %arg10[%c1_34, %c0_35, %c0_36] : memref<18x18x32xbf16, #tpu.memory_space<vmem>>, vector<16x16x32xbf16>
    %47 = vector.shape_cast %46 : vector<16x16x32xbf16> to vector<256x32xbf16>
    %c1_37 = arith.constant 1 : index
    %c1_38 = arith.constant 1 : index
    %c0_39 = arith.constant 0 : index
    %48 = vector.load %arg10[%c1_37, %c1_38, %c0_39] : memref<18x18x32xbf16, #tpu.memory_space<vmem>>, vector<16x16x32xbf16>
    %49 = vector.shape_cast %48 : vector<16x16x32xbf16> to vector<256x32xbf16>
    %c1_40 = arith.constant 1 : index
    %c2_41 = arith.constant 2 : index
    %c0_42 = arith.constant 0 : index
    %50 = vector.load %arg10[%c1_40, %c2_41, %c0_42] : memref<18x18x32xbf16, #tpu.memory_space<vmem>>, vector<16x16x32xbf16>
    %51 = vector.shape_cast %50 : vector<16x16x32xbf16> to vector<256x32xbf16>
    %c2_43 = arith.constant 2 : index
    %c0_44 = arith.constant 0 : index
    %c0_45 = arith.constant 0 : index
    %52 = vector.load %arg10[%c2_43, %c0_44, %c0_45] : memref<18x18x32xbf16, #tpu.memory_space<vmem>>, vector<16x16x32xbf16>
    %53 = vector.shape_cast %52 : vector<16x16x32xbf16> to vector<256x32xbf16>
    %c2_46 = arith.constant 2 : index
    %c1_47 = arith.constant 1 : index
    %c0_48 = arith.constant 0 : index
    %54 = vector.load %arg10[%c2_46, %c1_47, %c0_48] : memref<18x18x32xbf16, #tpu.memory_space<vmem>>, vector<16x16x32xbf16>
    %55 = vector.shape_cast %54 : vector<16x16x32xbf16> to vector<256x32xbf16>
    %c2_49 = arith.constant 2 : index
    %c2_50 = arith.constant 2 : index
    %c0_51 = arith.constant 0 : index
    %56 = vector.load %arg10[%c2_49, %c2_50, %c0_51] : memref<18x18x32xbf16, #tpu.memory_space<vmem>>, vector<16x16x32xbf16>
    %57 = vector.shape_cast %56 : vector<16x16x32xbf16> to vector<256x32xbf16>
    %58 = tpu.concatenate %41, %43, %45, %47, %49, %51, %53, %55, %57 in 1 : vector<256x32xbf16>, vector<256x32xbf16>, vector<256x32xbf16>, vector<256x32xbf16>, vector<256x32xbf16>, vector<256x32xbf16>, vector<256x32xbf16>, vector<256x32xbf16>, vector<256x32xbf16> -> vector<256x288xbf16>
    %c0_52 = arith.constant 0 : index
    %c0_53 = arith.constant 0 : index
    %59 = vector.load %arg6[%c0_52, %c0_53] : memref<4x288xbf16, #tpu.memory_space<vmem>>, vector<4x288xbf16>
    %cst_54 = arith.constant dense<0.000000e+00> : vector<4x256xf32>
    %60 = tpu.matmul %59, %58, %cst_54 {dimension_numbers = #tpu.dot_dimension_numbers<[1], [1], [0], [0], [0, 0, 1, 0], [], []>} : vector<4x288xbf16>, vector<256x288xbf16>, vector<4x256xf32> -> vector<4x256xf32>
    %c0_55 = arith.constant 0 : index
    %c0_56 = arith.constant 0 : index
    %61 = vector.load %arg7[%c0_55, %c0_56] : memref<4x1xf32, #tpu.memory_space<vmem>>, vector<4x1xf32>
    %62 = vector.broadcast %61 : vector<4x1xf32> to vector<4x256xf32>
    %63 = arith.addf %60, %62 : vector<4x256xf32>
    %64 = arith.truncf %63 : vector<4x256xf32> to vector<4x256xbf16>
    %65 = vector.shape_cast %64 : vector<4x256xbf16> to vector<1x4x256xbf16>
    %c0_57 = arith.constant 0 : index
    %c0_58 = arith.constant 0 : index
    %c0_59 = arith.constant 0 : index
    %66 = vector.load %arg8[%c0_57, %c0_58, %c0_59] : memref<1x4x256xbf16, #tpu.memory_space<vmem>>, vector<1x4x256xbf16>
    tpu.vector_store %arg8[%c0_57, %c0_58, %c0_59], %65 {strides = array<i32>} : memref<1x4x256xbf16, #tpu.memory_space<vmem>>, vector<1x4x256xbf16>,
    %cst_60 = arith.constant dense<0.000000e+00> : vector<4xf32>
    %67 = vector.multi_reduction <add>, %63, %cst_60 [1] : vector<4x256xf32> to vector<4xf32>
    %68 = vector.shape_cast %67 : vector<4xf32> to vector<4x1xf32>
    %69 = arith.mulf %63, %63 : vector<4x256xf32>
    %cst_61 = arith.constant dense<0.000000e+00> : vector<4xf32>
    %70 = vector.multi_reduction <add>, %69, %cst_61 [1] : vector<4x256xf32> to vector<4xf32>
    %71 = vector.shape_cast %70 : vector<4xf32> to vector<4x1xf32>
    %72 = tpu.concatenate %68, %71 in 1 : vector<4x1xf32>, vector<4x1xf32> -> vector<4x2xf32>
    %73 = vector.shape_cast %72 : vector<4x2xf32> to vector<1x4x2xf32>
    %c0_62 = arith.constant 0 : index
    %c0_63 = arith.constant 0 : index
    %c0_64 = arith.constant 0 : index
    %74 = vector.load %arg9[%c0_62, %c0_63, %c0_64] : memref<1x4x2xf32, #tpu.memory_space<vmem>>, vector<1x4x2xf32>
    tpu.vector_store %arg9[%c0_62, %c0_63, %c0_64], %73 {strides = array<i32>} : memref<1x4x2xf32, #tpu.memory_space<vmem>>, vector<1x4x2xf32>,
    return
  }
  func.func @transform_0(%arg0: i32) -> (i32, i32, i32) {
    %c0_i32 = arith.constant 0 : i32
    %c0_i32_0 = arith.constant 0 : i32
    %c0_i32_1 = arith.constant 0 : i32
    %c0_i32_2 = arith.constant 0 : i32
    return %c0_i32, %c0_i32_0, %c0_i32_1 : i32, i32, i32
  }
  func.func @transform_1(%arg0: i32) -> (i32, i32) {
    %c0_i32 = arith.constant 0 : i32
    %c0_i32_0 = arith.constant 0 : i32
    %c0_i32_1 = arith.constant 0 : i32
    return %c0_i32, %c0_i32_0 : i32, i32
  }
  func.func @transform_2(%arg0: i32) -> (i32, i32, i32) {
    %c0_i32 = arith.constant 0 : i32
    %c0_i32_0 = arith.constant 0 : i32
    %c0_i32_1 = arith.constant 0 : i32
    return %arg0, %c0_i32, %c0_i32_0 : i32, i32, i32
  }
  func.func @transform_3(%arg0: i32) -> (i32, i32) {
    %c0_i32 = arith.constant 0 : i32
    %c0_i32_0 = arith.constant 0 : i32
    %c0_i32_1 = arith.constant 0 : i32
    return %c0_i32, %c0_i32_0 : i32, i32
  }
  func.func @transform_4(%arg0: i32) -> (i32, i32) {
    %c0_i32 = arith.constant 0 : i32
    %c0_i32_0 = arith.constant 0 : i32
    %c0_i32_1 = arith.constant 0 : i32
    return %c0_i32, %c0_i32_0 : i32, i32
  }
  func.func @transform_5(%arg0: i32) -> (i32, i32) {
    %c0_i32 = arith.constant 0 : i32
    %c0_i32_0 = arith.constant 0 : i32
    %c0_i32_1 = arith.constant 0 : i32
    return %c0_i32, %c0_i32_0 : i32, i32
  }
  func.func @transform_6(%arg0: i32) -> (i32, i32) {
    %c0_i32 = arith.constant 0 : i32
    %c0_i32_0 = arith.constant 0 : i32
    %c0_i32_1 = arith.constant 0 : i32
    return %c0_i32, %c0_i32_0 : i32, i32
  }
  func.func @transform_7(%arg0: i32) -> (i32, i32, i32) {
    %c0_i32 = arith.constant 0 : i32
    %c0_i32_0 = arith.constant 0 : i32
    %c0_i32_1 = arith.constant 0 : i32
    return %arg0, %c0_i32, %c0_i32_0 : i32, i32, i32
  }
  func.func @transform_8(%arg0: i32) -> (i32, i32, i32) {
    %c0_i32 = arith.constant 0 : i32
    %c0_i32_0 = arith.constant 0 : i32
    %c0_i32_1 = arith.constant 0 : i32
    return %arg0, %c0_i32, %c0_i32_0 : i32, i32, i32
  }
}

module attributes {stable_mosaic.version = 11 : i64} {
  func.func @_final_kernel(%arg0: i32, %arg1: memref<2x4x2xf32, #tpu.memory_space<vmem>>, %arg2: memref<4x2xf32, #tpu.memory_space<vmem>>, %arg3: memref<1x4x256xbf16, #tpu.memory_space<vmem>>, %arg4: memref<4x4xf32, #tpu.memory_space<smem>>, %arg5: memref<4xf32, #tpu.memory_space<smem>>, %arg6: memref<1x4x256xf32, #tpu.memory_space<vmem>>) attributes {dimension_semantics = [#tpu.dimension_semantics<parallel>], iteration_bounds = array<i64: 2>, scalar_prefetch = 0 : i64, scratch_operands = 0 : i64, tpu.core_type = #tpu.core_type<tc>, window_params = [{pipeline_mode = #tpu.pipeline_mode<synchronous>, transform_indices = @transform_0, window_bounds = array<i64: 2, 4, 2>}, {pipeline_mode = #tpu.pipeline_mode<synchronous>, transform_indices = @transform_1, window_bounds = array<i64: 4, 2>}, {transform_indices = @transform_2, window_bounds = array<i64: 1, 4, 256>}, {transform_indices = @transform_3, window_bounds = array<i64: 4, 4>}, {transform_indices = @transform_4, window_bounds = array<i64: 4>}, {transform_indices = @transform_5, window_bounds = array<i64: 1, 4, 256>}]} {
    %c0 = arith.constant 0 : index
    %c0_0 = arith.constant 0 : index
    %c0_1 = arith.constant 0 : index
    %0 = vector.load %arg1[%c0, %c0_0, %c0_1] : memref<2x4x2xf32, #tpu.memory_space<vmem>>, vector<2x4x2xf32>
    %1 = vector.extract_strided_slice %0 {offsets = [0, 0, 0], sizes = [2, 4, 1], strides = [1, 1, 1]} : vector<2x4x2xf32> to vector<2x4x1xf32>
    %cst = arith.constant dense<0.000000e+00> : vector<4x1xf32>
    %2 = vector.multi_reduction <add>, %1, %cst [0] : vector<2x4x1xf32> to vector<4x1xf32>
    %3 = vector.extract_strided_slice %0 {offsets = [0, 0, 1], sizes = [2, 4, 1], strides = [1, 1, 1]} : vector<2x4x2xf32> to vector<2x4x1xf32>
    %cst_2 = arith.constant dense<0.000000e+00> : vector<4x1xf32>
    %4 = vector.multi_reduction <add>, %3, %cst_2 [0] : vector<2x4x1xf32> to vector<4x1xf32>
    %c0_3 = arith.constant 0 : index
    %c0_4 = arith.constant 0 : index
    %5 = vector.load %arg2[%c0_3, %c0_4] : memref<4x2xf32, #tpu.memory_space<vmem>>, vector<4x1xf32>
    %c0_5 = arith.constant 0 : index
    %c1 = arith.constant 1 : index
    %6 = vector.load %arg2[%c0_5, %c1] : memref<4x2xf32, #tpu.memory_space<vmem>>, vector<4x1xf32>
    %cst_6 = arith.constant 0.001953125 : f32
    %7 = vector.broadcast %cst_6 : f32 to vector<4x1xf32>
    %8 = arith.mulf %2, %7 : vector<4x1xf32>
    %cst_7 = arith.constant 0.001953125 : f32
    %9 = vector.broadcast %cst_7 : f32 to vector<4x1xf32>
    %10 = arith.mulf %4, %9 : vector<4x1xf32>
    %11 = arith.mulf %8, %8 : vector<4x1xf32>
    %12 = arith.subf %10, %11 : vector<4x1xf32>
    %cst_8 = arith.constant 0.000000e+00 : f32
    %13 = vector.broadcast %cst_8 : f32 to vector<4x1xf32>
    %14 = arith.maximumf %12, %13 : vector<4x1xf32>
    %cst_9 = arith.constant 9.99999974E-6 : f32
    %15 = vector.broadcast %cst_9 : f32 to vector<4x1xf32>
    %16 = arith.addf %14, %15 : vector<4x1xf32>
    %17 = math.rsqrt %16 : vector<4x1xf32>
    %18 = arith.mulf %5, %17 : vector<4x1xf32>
    %19 = arith.mulf %8, %18 : vector<4x1xf32>
    %20 = arith.subf %6, %19 : vector<4x1xf32>
    %c0_10 = arith.constant 0 : index
    %c0_11 = arith.constant 0 : index
    %c0_12 = arith.constant 0 : index
    %21 = vector.load %arg3[%c0_10, %c0_11, %c0_12] : memref<1x4x256xbf16, #tpu.memory_space<vmem>>, vector<1x4x256xbf16>
    %22 = vector.shape_cast %21 : vector<1x4x256xbf16> to vector<4x256xbf16>
    %23 = arith.extf %22 : vector<4x256xbf16> to vector<4x256xf32>
    %24 = vector.broadcast %18 : vector<4x1xf32> to vector<4x256xf32>
    %25 = arith.mulf %23, %24 : vector<4x256xf32>
    %26 = vector.broadcast %20 : vector<4x1xf32> to vector<4x256xf32>
    %27 = arith.addf %25, %26 : vector<4x256xf32>
    %cst_13 = arith.constant 2.000000e-01 : f32
    %28 = vector.broadcast %cst_13 : f32 to vector<4x256xf32>
    %29 = arith.mulf %28, %27 : vector<4x256xf32>
    %30 = arith.maximumf %27, %29 : vector<4x256xf32>
    %31 = vector.extract_strided_slice %30 {offsets = [0, 0], sizes = [1, 256], strides = [1, 1]} : vector<4x256xf32> to vector<1x256xf32>
    %c0_14 = arith.constant 0 : index
    %c0_15 = arith.constant 0 : index
    %32 = memref.load %arg4[%c0_14, %c0_15] : memref<4x4xf32, #tpu.memory_space<smem>>
    %33 = vector.broadcast %32 : f32 to vector<1x256xf32>
    %34 = arith.mulf %31, %33 : vector<1x256xf32>
    %35 = vector.extract_strided_slice %30 {offsets = [1, 0], sizes = [1, 256], strides = [1, 1]} : vector<4x256xf32> to vector<1x256xf32>
    %c1_16 = arith.constant 1 : index
    %c0_17 = arith.constant 0 : index
    %36 = memref.load %arg4[%c1_16, %c0_17] : memref<4x4xf32, #tpu.memory_space<smem>>
    %37 = vector.broadcast %36 : f32 to vector<1x256xf32>
    %38 = arith.mulf %35, %37 : vector<1x256xf32>
    %39 = arith.addf %34, %38 : vector<1x256xf32>
    %40 = vector.extract_strided_slice %30 {offsets = [2, 0], sizes = [1, 256], strides = [1, 1]} : vector<4x256xf32> to vector<1x256xf32>
    %c2 = arith.constant 2 : index
    %c0_18 = arith.constant 0 : index
    %41 = memref.load %arg4[%c2, %c0_18] : memref<4x4xf32, #tpu.memory_space<smem>>
    %42 = vector.broadcast %41 : f32 to vector<1x256xf32>
    %43 = arith.mulf %40, %42 : vector<1x256xf32>
    %44 = arith.addf %39, %43 : vector<1x256xf32>
    %45 = vector.extract_strided_slice %30 {offsets = [3, 0], sizes = [1, 256], strides = [1, 1]} : vector<4x256xf32> to vector<1x256xf32>
    %c3 = arith.constant 3 : index
    %c0_19 = arith.constant 0 : index
    %46 = memref.load %arg4[%c3, %c0_19] : memref<4x4xf32, #tpu.memory_space<smem>>
    %47 = vector.broadcast %46 : f32 to vector<1x256xf32>
    %48 = arith.mulf %45, %47 : vector<1x256xf32>
    %49 = arith.addf %44, %48 : vector<1x256xf32>
    %c0_20 = arith.constant 0 : index
    %50 = memref.load %arg5[%c0_20] : memref<4xf32, #tpu.memory_space<smem>>
    %51 = vector.broadcast %50 : f32 to vector<1x256xf32>
    %52 = arith.addf %49, %51 : vector<1x256xf32>
    %53 = vector.extract_strided_slice %30 {offsets = [0, 0], sizes = [1, 256], strides = [1, 1]} : vector<4x256xf32> to vector<1x256xf32>
    %c0_21 = arith.constant 0 : index
    %c1_22 = arith.constant 1 : index
    %54 = memref.load %arg4[%c0_21, %c1_22] : memref<4x4xf32, #tpu.memory_space<smem>>
    %55 = vector.broadcast %54 : f32 to vector<1x256xf32>
    %56 = arith.mulf %53, %55 : vector<1x256xf32>
    %57 = vector.extract_strided_slice %30 {offsets = [1, 0], sizes = [1, 256], strides = [1, 1]} : vector<4x256xf32> to vector<1x256xf32>
    %c1_23 = arith.constant 1 : index
    %c1_24 = arith.constant 1 : index
    %58 = memref.load %arg4[%c1_23, %c1_24] : memref<4x4xf32, #tpu.memory_space<smem>>
    %59 = vector.broadcast %58 : f32 to vector<1x256xf32>
    %60 = arith.mulf %57, %59 : vector<1x256xf32>
    %61 = arith.addf %56, %60 : vector<1x256xf32>
    %62 = vector.extract_strided_slice %30 {offsets = [2, 0], sizes = [1, 256], strides = [1, 1]} : vector<4x256xf32> to vector<1x256xf32>
    %c2_25 = arith.constant 2 : index
    %c1_26 = arith.constant 1 : index
    %63 = memref.load %arg4[%c2_25, %c1_26] : memref<4x4xf32, #tpu.memory_space<smem>>
    %64 = vector.broadcast %63 : f32 to vector<1x256xf32>
    %65 = arith.mulf %62, %64 : vector<1x256xf32>
    %66 = arith.addf %61, %65 : vector<1x256xf32>
    %67 = vector.extract_strided_slice %30 {offsets = [3, 0], sizes = [1, 256], strides = [1, 1]} : vector<4x256xf32> to vector<1x256xf32>
    %c3_27 = arith.constant 3 : index
    %c1_28 = arith.constant 1 : index
    %68 = memref.load %arg4[%c3_27, %c1_28] : memref<4x4xf32, #tpu.memory_space<smem>>
    %69 = vector.broadcast %68 : f32 to vector<1x256xf32>
    %70 = arith.mulf %67, %69 : vector<1x256xf32>
    %71 = arith.addf %66, %70 : vector<1x256xf32>
    %c1_29 = arith.constant 1 : index
    %72 = memref.load %arg5[%c1_29] : memref<4xf32, #tpu.memory_space<smem>>
    %73 = vector.broadcast %72 : f32 to vector<1x256xf32>
    %74 = arith.addf %71, %73 : vector<1x256xf32>
    %75 = vector.extract_strided_slice %30 {offsets = [0, 0], sizes = [1, 256], strides = [1, 1]} : vector<4x256xf32> to vector<1x256xf32>
    %c0_30 = arith.constant 0 : index
    %c2_31 = arith.constant 2 : index
    %76 = memref.load %arg4[%c0_30, %c2_31] : memref<4x4xf32, #tpu.memory_space<smem>>
    %77 = vector.broadcast %76 : f32 to vector<1x256xf32>
    %78 = arith.mulf %75, %77 : vector<1x256xf32>
    %79 = vector.extract_strided_slice %30 {offsets = [1, 0], sizes = [1, 256], strides = [1, 1]} : vector<4x256xf32> to vector<1x256xf32>
    %c1_32 = arith.constant 1 : index
    %c2_33 = arith.constant 2 : index
    %80 = memref.load %arg4[%c1_32, %c2_33] : memref<4x4xf32, #tpu.memory_space<smem>>
    %81 = vector.broadcast %80 : f32 to vector<1x256xf32>
    %82 = arith.mulf %79, %81 : vector<1x256xf32>
    %83 = arith.addf %78, %82 : vector<1x256xf32>
    %84 = vector.extract_strided_slice %30 {offsets = [2, 0], sizes = [1, 256], strides = [1, 1]} : vector<4x256xf32> to vector<1x256xf32>
    %c2_34 = arith.constant 2 : index
    %c2_35 = arith.constant 2 : index
    %85 = memref.load %arg4[%c2_34, %c2_35] : memref<4x4xf32, #tpu.memory_space<smem>>
    %86 = vector.broadcast %85 : f32 to vector<1x256xf32>
    %87 = arith.mulf %84, %86 : vector<1x256xf32>
    %88 = arith.addf %83, %87 : vector<1x256xf32>
    %89 = vector.extract_strided_slice %30 {offsets = [3, 0], sizes = [1, 256], strides = [1, 1]} : vector<4x256xf32> to vector<1x256xf32>
    %c3_36 = arith.constant 3 : index
    %c2_37 = arith.constant 2 : index
    %90 = memref.load %arg4[%c3_36, %c2_37] : memref<4x4xf32, #tpu.memory_space<smem>>
    %91 = vector.broadcast %90 : f32 to vector<1x256xf32>
    %92 = arith.mulf %89, %91 : vector<1x256xf32>
    %93 = arith.addf %88, %92 : vector<1x256xf32>
    %c2_38 = arith.constant 2 : index
    %94 = memref.load %arg5[%c2_38] : memref<4xf32, #tpu.memory_space<smem>>
    %95 = vector.broadcast %94 : f32 to vector<1x256xf32>
    %96 = arith.addf %93, %95 : vector<1x256xf32>
    %97 = vector.extract_strided_slice %30 {offsets = [0, 0], sizes = [1, 256], strides = [1, 1]} : vector<4x256xf32> to vector<1x256xf32>
    %c0_39 = arith.constant 0 : index
    %c3_40 = arith.constant 3 : index
    %98 = memref.load %arg4[%c0_39, %c3_40] : memref<4x4xf32, #tpu.memory_space<smem>>
    %99 = vector.broadcast %98 : f32 to vector<1x256xf32>
    %100 = arith.mulf %97, %99 : vector<1x256xf32>
    %101 = vector.extract_strided_slice %30 {offsets = [1, 0], sizes = [1, 256], strides = [1, 1]} : vector<4x256xf32> to vector<1x256xf32>
    %c1_41 = arith.constant 1 : index
    %c3_42 = arith.constant 3 : index
    %102 = memref.load %arg4[%c1_41, %c3_42] : memref<4x4xf32, #tpu.memory_space<smem>>
    %103 = vector.broadcast %102 : f32 to vector<1x256xf32>
    %104 = arith.mulf %101, %103 : vector<1x256xf32>
    %105 = arith.addf %100, %104 : vector<1x256xf32>
    %106 = vector.extract_strided_slice %30 {offsets = [2, 0], sizes = [1, 256], strides = [1, 1]} : vector<4x256xf32> to vector<1x256xf32>
    %c2_43 = arith.constant 2 : index
    %c3_44 = arith.constant 3 : index
    %107 = memref.load %arg4[%c2_43, %c3_44] : memref<4x4xf32, #tpu.memory_space<smem>>
    %108 = vector.broadcast %107 : f32 to vector<1x256xf32>
    %109 = arith.mulf %106, %108 : vector<1x256xf32>
    %110 = arith.addf %105, %109 : vector<1x256xf32>
    %111 = vector.extract_strided_slice %30 {offsets = [3, 0], sizes = [1, 256], strides = [1, 1]} : vector<4x256xf32> to vector<1x256xf32>
    %c3_45 = arith.constant 3 : index
    %c3_46 = arith.constant 3 : index
    %112 = memref.load %arg4[%c3_45, %c3_46] : memref<4x4xf32, #tpu.memory_space<smem>>
    %113 = vector.broadcast %112 : f32 to vector<1x256xf32>
    %114 = arith.mulf %111, %113 : vector<1x256xf32>
    %115 = arith.addf %110, %114 : vector<1x256xf32>
    %c3_47 = arith.constant 3 : index
    %116 = memref.load %arg5[%c3_47] : memref<4xf32, #tpu.memory_space<smem>>
    %117 = vector.broadcast %116 : f32 to vector<1x256xf32>
    %118 = arith.addf %115, %117 : vector<1x256xf32>
    %119 = tpu.concatenate %52, %74, %96, %118 in 0 : vector<1x256xf32>, vector<1x256xf32>, vector<1x256xf32>, vector<1x256xf32> -> vector<4x256xf32>
    %cst_48 = arith.constant 0.000000e+00 : f32
    %120 = vector.broadcast %cst_48 : f32 to vector<4x256xf32>
    %121 = arith.subf %120, %119 : vector<4x256xf32>
    %122 = math.exp %121 : vector<4x256xf32>
    %cst_49 = arith.constant 1.000000e+00 : f32
    %123 = vector.broadcast %cst_49 : f32 to vector<4x256xf32>
    %124 = arith.addf %123, %122 : vector<4x256xf32>
    %125 = tpu.reciprocal %124 {approx = true} : vector<4x256xf32> -> vector<4x256xf32>
    %cst_50 = arith.constant 1.000000e+00 : f32
    %126 = vector.broadcast %cst_50 : f32 to vector<4x256xf32>
    %127 = arith.minimumf %125, %126 : vector<4x256xf32>
    %128 = vector.shape_cast %127 : vector<4x256xf32> to vector<1x4x256xf32>
    %c0_51 = arith.constant 0 : index
    %c0_52 = arith.constant 0 : index
    %c0_53 = arith.constant 0 : index
    %129 = vector.load %arg6[%c0_51, %c0_52, %c0_53] : memref<1x4x256xf32, #tpu.memory_space<vmem>>, vector<1x4x256xf32>
    tpu.vector_store %arg6[%c0_51, %c0_52, %c0_53], %128 {strides = array<i32>} : memref<1x4x256xf32, #tpu.memory_space<vmem>>, vector<1x4x256xf32>,
    return
  }
  func.func @transform_0(%arg0: i32) -> (i32, i32, i32) {
    %c0_i32 = arith.constant 0 : i32
    %c0_i32_0 = arith.constant 0 : i32
    %c0_i32_1 = arith.constant 0 : i32
    %c0_i32_2 = arith.constant 0 : i32
    return %c0_i32, %c0_i32_0, %c0_i32_1 : i32, i32, i32
  }
  func.func @transform_1(%arg0: i32) -> (i32, i32) {
    %c0_i32 = arith.constant 0 : i32
    %c0_i32_0 = arith.constant 0 : i32
    %c0_i32_1 = arith.constant 0 : i32
    return %c0_i32, %c0_i32_0 : i32, i32
  }
  func.func @transform_2(%arg0: i32) -> (i32, i32, i32) {
    %c0_i32 = arith.constant 0 : i32
    %c0_i32_0 = arith.constant 0 : i32
    %c0_i32_1 = arith.constant 0 : i32
    return %arg0, %c0_i32, %c0_i32_0 : i32, i32, i32
  }
  func.func @transform_3(%arg0: i32) -> (i32, i32) {
    %c0_i32 = arith.constant 0 : i32
    %c0_i32_0 = arith.constant 0 : i32
    %c0_i32_1 = arith.constant 0 : i32
    return %c0_i32, %c0_i32_0 : i32, i32
  }
  func.func @transform_4(%arg0: i32) -> i32 {
    %c0_i32 = arith.constant 0 : i32
    %c0_i32_0 = arith.constant 0 : i32
    return %c0_i32 : i32
  }
  func.func @transform_5(%arg0: i32) -> (i32, i32, i32) {
    %c0_i32 = arith.constant 0 : i32
    %c0_i32_0 = arith.constant 0 : i32
    %c0_i32_1 = arith.constant 0 : i32
    return %arg0, %c0_i32, %c0_i32_0 : i32, i32, i32
  }
}

</mosaic_0001>

<llo_original>
// kernel: blend_block_forward.3
$region0: #{blend_block_forward.3}
  #allocation0 [shape = 'u32[]', space=smem, size = 0x4, offset = 0x4, fixed_abs, tag = 'smem constant byte address 0x4 - core index']
  #allocation1 [shape = 'u32[144,128]{1,0:T(1,128)}', space=vmem, size = 0x12000, scoped, tag = 'internal scratch']
  %s0 = inlined_call_operand.vmem [shape: bf16[2,256,8], index: 0, kind: input, shape index: {}]
  %s1 = inlined_call_operand.vmem [shape: bf16[8,32], index: 1, kind: input, shape index: {}]
  %s2 = inlined_call_operand.vmem [shape: f32[1,32], index: 2, kind: input, shape index: {}]
  %s3 = inlined_call_operand.vmem [shape: f32[2,2,32], index: 3, kind: output, shape index: {}]
  %s4 = sld [smem:[#allocation0]]
  $region45: #{blend_block_forward.3} parent=0
    _
  %s6 = ssub.s32 1, %s4
  %s7 = scalar_select 0, %s6, %s4
  loop: start=0, step=1, limit=4
  $region2: #{blend_block_forward.3} parent=0 // loop_pre_header
    _
  $region3: #{blend_block_forward.3} parent=0 // loop_header
    %s9 = sphi 0, %s13
    %p10 = scmp.ge.s32.totalorder %s9, 4
    %s19 = sphi 0, %s21
    %s22 = sphi 0, %s19
    %s23 = sphi 0, %s22
    %s39 = sphi 0, %s23
    %s43 = sphi 0, %s43
    %s45 = sphi 0, %s43
    %s46 = sphi 0, %s45
    %s60 = sphi 0, %s46
    %s64 = sphi 0, %s64
    %s66 = sphi 0, %s64
    %s67 = sphi 0, %s66
    %s81 = sphi 0, %s67
    %s87 = sphi 0, %s89
    %s90 = sphi 0, %s87
    %s91 = sphi 0, %s90
    %s107 = sphi 0, %s91
  $region4: #{blend_block_forward.3} parent=0 // loop_header_branch
    %12 = sbr.rel (%p10) target = $region8
  $region5: #{blend_block_forward.3} parent=0 // loop_body
    %s14 = ssub.s32 %s9, 1
    %s15 = ssub.s32 %s9, 2
    %s16 = sadd.s32 %s9, 1
    %s17 = ssub.s32 %s9, %s16
    %p18 = scmp.eq.s32.totalorder %s17, 0
    %s20 = sadd.s32 %s19, 1
    %s21 = scalar_select %p18, %s19, %s20
    %p24 = pneg %p18
    %p25 = scmp.eq.s32.totalorder %s9, 1
    %p26 = por %p24, %p25
    %p27 = scmp.ne.s32.totalorder %s19, %s22
    %p28 = scmp.eq.s32.totalorder %s9, 0
    %p29 = por %p27, %p28
    %p30 = scmp.ne.s32.totalorder %s19, %s22
    %p31 = scmp.eq.s32.totalorder %s14, 1
    %p32 = por %p30, %p31
    %p33 = scmp.ne.s32.totalorder %s22, %s23
    %p34 = scmp.eq.s32.totalorder %s14, 0
    %p35 = por %p33, %p34
    %p36 = scmp.ne.s32.totalorder %s22, %s23
    %p37 = scmp.eq.s32.totalorder %s15, 1
    %p38 = por %p36, %p37
    %p40 = scmp.ne.s32.totalorder %s23, %s39
    %p41 = scmp.eq.s32.totalorder %s15, 0
    %p42 = por %p40, %p41
    %s44 = sadd.s32 %s43, 1
    %p47 = scmp.eq.s32.totalorder %s9, 1
    %p48 = scmp.ne.s32.totalorder %s43, %s45
    %p49 = scmp.eq.s32.totalorder %s9, 0
    %p50 = por %p48, %p49
    %p51 = scmp.ne.s32.totalorder %s43, %s45
    %p52 = scmp.eq.s32.totalorder %s14, 1
    %p53 = por %p51, %p52
    %p54 = scmp.ne.s32.totalorder %s45, %s46
    %p55 = scmp.eq.s32.totalorder %s14, 0
    %p56 = por %p54, %p55
    %p57 = scmp.ne.s32.totalorder %s45, %s46
    %p58 = scmp.eq.s32.totalorder %s15, 1
    %p59 = por %p57, %p58
    %p61 = scmp.ne.s32.totalorder %s46, %s60
    %p62 = scmp.eq.s32.totalorder %s15, 0
    %p63 = por %p61, %p62
    %s65 = sadd.s32 %s64, 1
    %p68 = scmp.eq.s32.totalorder %s9, 1
    %p69 = scmp.ne.s32.totalorder %s64, %s66
    %p70 = scmp.eq.s32.totalorder %s9, 0
    %p71 = por %p69, %p70
    %p72 = scmp.ne.s32.totalorder %s64, %s66
    %p73 = scmp.eq.s32.totalorder %s14, 1
    %p74 = por %p72, %p73
    %p75 = scmp.ne.s32.totalorder %s66, %s67
    %p76 = scmp.eq.s32.totalorder %s14, 0
    %p77 = por %p75, %p76
    %p78 = scmp.ne.s32.totalorder %s66, %s67
    %p79 = scmp.eq.s32.totalorder %s15, 1
    %p80 = por %p78, %p79
    %p82 = scmp.ne.s32.totalorder %s67, %s81
    %p83 = scmp.eq.s32.totalorder %s15, 0
    %p84 = por %p82, %p83
    %s85 = ssub.s32 %s9, %s16
    %p86 = scmp.eq.s32.totalorder %s85, 0
    %s88 = sadd.s32 %s87, 1
    %s89 = scalar_select %p86, %s87, %s88
    %p92 = pneg %p86
    %p93 = scmp.eq.s32.totalorder %s9, 1
    %p94 = por %p92, %p93
    %p95 = scmp.ne.s32.totalorder %s87, %s90
    %p96 = scmp.eq.s32.totalorder %s9, 0
    %p97 = por %p95, %p96
    %p98 = scmp.ne.s32.totalorder %s87, %s90
    %p99 = scmp.eq.s32.totalorder %s14, 1
    %p100 = por %p98, %p99
    %p101 = scmp.ne.s32.totalorder %s90, %s91
    %p102 = scmp.eq.s32.totalorder %s14, 0
    %p103 = por %p101, %p102
    %p104 = scmp.ne.s32.totalorder %s90, %s91
    %p105 = scmp.eq.s32.totalorder %s15, 1
    %p106 = por %p104, %p105
    %p108 = scmp.ne.s32.totalorder %s91, %s107
    %p109 = scmp.eq.s32.totalorder %s15, 0
    %p110 = por %p108, %p109
    %p111 = scmp.le.s32.totalorder 1, %s9
    %p112 = scmp.lt.s32.totalorder %s9, 3
    %p113 = pnand %p111, %p112
    %p114 = pneg %p113
    // Predicated region
    $region9: #{blend_block_forward.3} parent=5 // pred_check
      _
    $region10: #{blend_block_forward.3} parent=5 // pred_check_branch
      %116 = sbr.rel (%p113) target = $region12
    $region11: #{blend_block_forward.3} parent=5 // pred_region
      %s117 = ssub.s32 %s9, 1
      // Predicated region
      $region13: #{blend_block_forward.3} parent=11 // pred_check
        %p118 = pneg %p56
      $region14: #{blend_block_forward.3} parent=11 // pred_check_branch
        %120 = sbr.rel (%p118) target = $region16
      $region15: #{blend_block_forward.3} parent=11 // pred_region
        _
      $region16: #{blend_block_forward.3} parent=11 // pred_fallthru
        _
      // Predicated region
      $region17: #{blend_block_forward.3} parent=11 // pred_check
        %p121 = pneg %p77
      $region18: #{blend_block_forward.3} parent=11 // pred_check_branch
        %123 = sbr.rel (%p121) target = $region20
      $region19: #{blend_block_forward.3} parent=11 // pred_region
        _
      $region20: #{blend_block_forward.3} parent=11 // pred_fallthru
        _
    $region12: #{blend_block_forward.3} parent=5 // pred_fallthru
      _
    %p124 = scmp.lt.s32.totalorder %s9, 2
    // Predicated region
    $region21: #{blend_block_forward.3} parent=5 // pred_check
      %p125 = pneg %p124
    $region22: #{blend_block_forward.3} parent=5 // pred_check_branch
      %127 = sbr.rel (%p125) target = $region24
    $region23: #{blend_block_forward.3} parent=5 // pred_region
      // Predicated region
      $region25: #{blend_block_forward.3} parent=23 // pred_check
        %p128 = pneg %p29
      $region26: #{blend_block_forward.3} parent=23 // pred_check_branch
        %130 = sbr.rel (%p128) target = $region28
      $region27: #{blend_block_forward.3} parent=23 // pred_region
        %p131 = scmp.lt.s32.totalorder %s9, 1
        %s132 = scalar_select %p131, %s9, 1
        %s133 = smul.addr %s132, 32
        %s134 = smul.addr %s133, 4
        %s135 = scalar_lea.vmem %s0, %s134
      $region28: #{blend_block_forward.3} parent=23 // pred_fallthru
        _
    $region24: #{blend_block_forward.3} parent=5 // pred_fallthru
      _
    %p136 = scmp.le.s32.totalorder 1, %s9
    %p137 = scmp.lt.s32.totalorder %s9, 3
    %p138 = pnand %p136, %p137
    %p139 = pneg %p138
    // Predicated region
    $region29: #{blend_block_forward.3} parent=5 // pred_check
      _
    $region30: #{blend_block_forward.3} parent=5 // pred_check_branch
      %141 = sbr.rel (%p138) target = $region32
    $region31: #{blend_block_forward.3} parent=5 // pred_region
      %s142 = ssub.s32 %s9, 1
      %p143 = scmp.lt.s32.totalorder %s14, 1
      %s144 = scalar_select %p143, %s14, 1
      %s145 = smul.addr %s144, 32
      %s146 = smul.addr %s145, 4
      %s147 = scalar_lea.vmem %s0, %s146
      %p148 = pneg %p35
      %p149 = pneg %p32
      %p150 = pneg %p56
      %p151 = pneg %p53
      %p152 = pneg %p77
      %p153 = pneg %p74
      %p154 = pneg %p103
      %p155 = pneg %p100
      %p156 = scmp.lt.s32.totalorder %s14, 1
      %s157 = scalar_select %p156, %s14, 1
      %s158 = smul.addr %s157, 2
      %s159 = scalar_lea.vmem %s3, %s158
      %p160 = scmp.lt.s32.totalorder %s14, 1
      %s161 = scalar_select %p160, %s14, 1
      %s162 = smul.addr %s161, 32
      %s163 = smul.addr %s162, 4
      %s164 = scalar_lea.vmem %s0, %s163
      %p165 = scmp.lt.s32.totalorder %s14, 1
      %s166 = scalar_select %p165, %s14, 1
      %s167 = smul.addr %s166, 2
      %s168 = scalar_lea.vmem %s3, %s167
      %v170 = vld [vmem:[%s164] sm:$0xf]
      %v171 = vld [vmem:[%s164 + $0x4] sm:$0xf]
      %v172 = vld [vmem:[%s164 + $0x8] sm:$0xf]
      %v173 = vld [vmem:[%s164 + $0xc] sm:$0xf]
      %v174 = vld [vmem:[%s164 + $0x10] sm:$0xf]
      %v175 = vld [vmem:[%s164 + $0x14] sm:$0xf]
      %v176 = vld [vmem:[%s164 + $0x18] sm:$0xf]
      %v177 = vld [vmem:[%s164 + $0x1c] sm:$0xf]
      %v178 = vld [vmem:[%s164 + $0x20] sm:$0xf]
      %v179 = vld [vmem:[%s164 + $0x24] sm:$0xf]
      %v180 = vld [vmem:[%s164 + $0x28] sm:$0xf]
      %v181 = vld [vmem:[%s164 + $0x2c] sm:$0xf]
      %v182 = vld [vmem:[%s164 + $0x30] sm:$0xf]
      %v183 = vld [vmem:[%s164 + $0x34] sm:$0xf]
      %v184 = vld [vmem:[%s164 + $0x38] sm:$0xf]
      %v185 = vld [vmem:[%s164 + $0x3c] sm:$0xf]
      %v186 = vld [vmem:[%s164 + $0x40] sm:$0xf]
      %v187 = vld [vmem:[%s164 + $0x44] sm:$0xf]
      %v188 = vld [vmem:[%s164 + $0x48] sm:$0xf]
      %v189 = vld [vmem:[%s164 + $0x4c] sm:$0xf]
      %v190 = vld [vmem:[%s164 + $0x50] sm:$0xf]
      %v191 = vld [vmem:[%s164 + $0x54] sm:$0xf]
      %v192 = vld [vmem:[%s164 + $0x58] sm:$0xf]
      %v193 = vld [vmem:[%s164 + $0x5c] sm:$0xf]
      %v194 = vld [vmem:[%s164 + $0x60] sm:$0xf]
      %v195 = vld [vmem:[%s164 + $0x64] sm:$0xf]
      %v196 = vld [vmem:[%s164 + $0x68] sm:$0xf]
      %v197 = vld [vmem:[%s164 + $0x6c] sm:$0xf]
      %v198 = vld [vmem:[%s164 + $0x70] sm:$0xf]
      %v199 = vld [vmem:[%s164 + $0x74] sm:$0xf]
      %v200 = vld [vmem:[%s164 + $0x78] sm:$0xf]
      %v201 = vld [vmem:[%s164 + $0x7c] sm:$0xf]
      %v202 = vld [vmem:[%s1] sm:$0xf]
      %v203 = vld [vmem:[%s2] sm:$0x1]
      %v205 = vlaneseq
      %v206 = vshrl.u32 %v205, 7
      %v207 = vsub.s32 0, %v206
      %v208 = vrot.slane %v203, %v207
      %v242 = vunpack.c.l.b16 %v170
      %v243 = vunpack.c.l.b16 %v171
      %v244 = vunpack.c.l.b16 %v172
      %v245 = vunpack.c.l.b16 %v173
      %v246 = vunpack.c.l.b16 %v174
      %v247 = vunpack.c.l.b16 %v175
      %v248 = vunpack.c.l.b16 %v176
      %v249 = vunpack.c.l.b16 %v177
      %v250 = vunpack.c.l.b16 %v178
      %v251 = vunpack.c.l.b16 %v179
      %v252 = vunpack.c.l.b16 %v180
      %v253 = vunpack.c.l.b16 %v181
      %v254 = vunpack.c.l.b16 %v182
      %v255 = vunpack.c.l.b16 %v183
      %v256 = vunpack.c.l.b16 %v184
      %v257 = vunpack.c.l.b16 %v185
      %v258 = vunpack.c.l.b16 %v186
      %v259 = vunpack.c.l.b16 %v187
      %v260 = vunpack.c.l.b16 %v188
      %v261 = vunpack.c.l.b16 %v189
      %v262 = vunpack.c.l.b16 %v190
      %v263 = vunpack.c.l.b16 %v191
      %v264 = vunpack.c.l.b16 %v192
      %v265 = vunpack.c.l.b16 %v193
      %v266 = vunpack.c.l.b16 %v194
      %v267 = vunpack.c.l.b16 %v195
      %v268 = vunpack.c.l.b16 %v196
      %v269 = vunpack.c.l.b16 %v197
      %v270 = vunpack.c.l.b16 %v198
      %v271 = vunpack.c.l.b16 %v199
      %v272 = vunpack.c.l.b16 %v200
      %v273 = vunpack.c.l.b16 %v201
      %v274 = vpack.c.b16 %v243, %v242
      %v275 = vpack.c.b16 %v245, %v244
      %v276 = vpack.c.b16 %v247, %v246
      %v277 = vpack.c.b16 %v249, %v248
      %v278 = vpack.c.b16 %v251, %v250
      %v279 = vpack.c.b16 %v253, %v252
      %v280 = vpack.c.b16 %v255, %v254
      %v281 = vpack.c.b16 %v257, %v256
      %v282 = vpack.c.b16 %v259, %v258
      %v283 = vpack.c.b16 %v261, %v260
      %v284 = vpack.c.b16 %v263, %v262
      %v285 = vpack.c.b16 %v265, %v264
      %v286 = vpack.c.b16 %v267, %v266
      %v287 = vpack.c.b16 %v269, %v268
      %v288 = vpack.c.b16 %v271, %v270
      %v289 = vpack.c.b16 %v273, %v272
      %vm290 = vcmask 64512
      %v292 = vsel %vm290, %v274, 0
      %v295 = vsel %vm290, %v275, 0
      %v298 = vsel %vm290, %v276, 0
      %v301 = vsel %vm290, %v277, 0
      %v304 = vsel %vm290, %v278, 0
      %v307 = vsel %vm290, %v279, 0
      %v310 = vsel %vm290, %v280, 0
      %v313 = vsel %vm290, %v281, 0
      %v316 = vsel %vm290, %v282, 0
      %v319 = vsel %vm290, %v283, 0
      %v322 = vsel %vm290, %v284, 0
      %v325 = vsel %vm290, %v285, 0
      %v328 = vsel %vm290, %v286, 0
      %v331 = vsel %vm290, %v287, 0
      %v334 = vsel %vm290, %v288, 0
      %v337 = vsel %vm290, %v289, 0
      %vm339 = vcmask 1043456
      %v341 = vsel %vm339, %v202, 0
      %343 = vmatprep.subr.bf16.mxu0 0
      %344 = vmatpush1.bf16.msra.mxu0 %v341
      %345 = vmatprep.subr.bf16.mxu0 0
      %346 = vmatpush1.bf16.msra.mxu0 0
      %347 = vmatprep.subr.bf16.mxu0 0
      %348 = vmatpush1.bf16.msra.mxu0 0
      %349 = vmatprep.subr.bf16.mxu0 0
      %350 = vmatpush1.bf16.msra.mxu0 0
      %351 = vmatprep.subr.bf16.mxu0 0
      %352 = vmatpush1.bf16.msra.mxu0 0
      %353 = vmatprep.subr.bf16.mxu0 0
      %354 = vmatpush1.bf16.msra.mxu0 0
      %355 = vmatprep.subr.bf16.mxu0 0
      %356 = vmatpush1.bf16.msra.mxu0 0
      %357 = vmatprep.subr.bf16.mxu0 0
      %358 = vmatpush1.bf16.msra.mxu0 0
      %359 = vmatprep.subr.bf16.mxu0 0
      %360 = vmatpush1.bf16.msra.mxu0 0
      %361 = vmatprep.subr.bf16.mxu0 0
      %362 = vmatpush1.bf16.msra.mxu0 0
      %363 = vmatprep.subr.bf16.mxu0 0
      %364 = vmatpush1.bf16.msra.mxu0 0
      %365 = vmatprep.subr.bf16.mxu0 0
      %366 = vmatpush1.bf16.msra.mxu0 0
      %367 = vmatprep.subr.bf16.mxu0 0
      %368 = vmatpush1.bf16.msra.mxu0 0
      %369 = vmatprep.subr.bf16.mxu0 0
      %370 = vmatpush1.bf16.msra.mxu0 0
      %371 = vmatprep.subr.bf16.mxu0 0
      %372 = vmatpush1.bf16.msra.mxu0 0
      %373 = vmatprep.subr.bf16.mxu0 0
      %374 = vmatpush1.bf16.msra.mxu0 0
      %375 = vmatprep.mubr.bf16.mxu0 0
      %376 = vmatmul.mubr.bf16.gmra.mrb[0].mxu0 %v292
      %v377 = vpop.f32.mrb[0].mxu0
      %v378 = vadd.f32 %v208, %v377
      %v379 = vpop.f32.mrb[0].mxu0
      %v380 = vpop.f32.mrb[0].mxu0
      %v381 = vadd.f32 %v208, %v380
      %v382 = vpop.f32.mrb[0].mxu0
      %383 = vmatprep.mubr.bf16.mxu0 0
      %384 = vmatmul.mubr.bf16.gmra.mrb[0].mxu0 %v295
      %v385 = vpop.f32.mrb[0].mxu0
      %v386 = vadd.f32 %v208, %v385
      %v387 = vpop.f32.mrb[0].mxu0
      %v388 = vpop.f32.mrb[0].mxu0
      %v389 = vadd.f32 %v208, %v388
      %v390 = vpop.f32.mrb[0].mxu0
      %391 = vmatprep.mubr.bf16.mxu0 0
      %392 = vmatmul.mubr.bf16.gmra.mrb[0].mxu0 %v298
      %v393 = vpop.f32.mrb[0].mxu0
      %v394 = vadd.f32 %v208, %v393
      %v395 = vpop.f32.mrb[0].mxu0
      %v396 = vpop.f32.mrb[0].mxu0
      %v397 = vadd.f32 %v208, %v396
      %v398 = vpop.f32.mrb[0].mxu0
      %399 = vmatprep.mubr.bf16.mxu0 0
      %400 = vmatmul.mubr.bf16.gmra.mrb[0].mxu0 %v301
      %v401 = vpop.f32.mrb[0].mxu0
      %v402 = vadd.f32 %v208, %v401
      %v403 = vpop.f32.mrb[0].mxu0
      %v404 = vpop.f32.mrb[0].mxu0
      %v405 = vadd.f32 %v208, %v404
      %v406 = vpop.f32.mrb[0].mxu0
      %407 = vmatprep.mubr.bf16.mxu0 0
      %408 = vmatmul.mubr.bf16.gmra.mrb[0].mxu0 %v304
      %v409 = vpop.f32.mrb[0].mxu0
      %v410 = vadd.f32 %v208, %v409
      %v411 = vpop.f32.mrb[0].mxu0
      %v412 = vpop.f32.mrb[0].mxu0
      %v413 = vadd.f32 %v208, %v412
      %v414 = vpop.f32.mrb[0].mxu0
      %415 = vmatprep.mubr.bf16.mxu0 0
      %416 = vmatmul.mubr.bf16.gmra.mrb[0].mxu0 %v307
      %v417 = vpop.f32.mrb[0].mxu0
      %v418 = vadd.f32 %v208, %v417
      %v419 = vpop.f32.mrb[0].mxu0
      %v420 = vpop.f32.mrb[0].mxu0
      %v421 = vadd.f32 %v208, %v420
      %v422 = vpop.f32.mrb[0].mxu0
      %423 = vmatprep.mubr.bf16.mxu0 0
      %424 = vmatmul.mubr.bf16.gmra.mrb[0].mxu0 %v310
      %v425 = vpop.f32.mrb[0].mxu0
      %v426 = vadd.f32 %v208, %v425
      %v427 = vpop.f32.mrb[0].mxu0
      %v428 = vpop.f32.mrb[0].mxu0
      %v429 = vadd.f32 %v208, %v428
      %v430 = vpop.f32.mrb[0].mxu0
      %431 = vmatprep.mubr.bf16.mxu0 0
      %432 = vmatmul.mubr.bf16.gmra.mrb[0].mxu0 %v313
      %v433 = vpop.f32.mrb[0].mxu0
      %v434 = vadd.f32 %v208, %v433
      %v435 = vpop.f32.mrb[0].mxu0
      %v436 = vpop.f32.mrb[0].mxu0
      %v437 = vadd.f32 %v208, %v436
      %v438 = vpop.f32.mrb[0].mxu0
      %439 = vmatprep.mubr.bf16.mxu0 0
      %440 = vmatmul.mubr.bf16.gmra.mrb[0].mxu0 %v316
      %v441 = vpop.f32.mrb[0].mxu0
      %v442 = vadd.f32 %v208, %v441
      %v443 = vpop.f32.mrb[0].mxu0
      %v444 = vpop.f32.mrb[0].mxu0
      %v445 = vadd.f32 %v208, %v444
      %v446 = vpop.f32.mrb[0].mxu0
      %447 = vmatprep.mubr.bf16.mxu0 0
      %448 = vmatmul.mubr.bf16.gmra.mrb[0].mxu0 %v319
      %v449 = vpop.f32.mrb[0].mxu0
      %v450 = vadd.f32 %v208, %v449
      %v451 = vpop.f32.mrb[0].mxu0
      %v452 = vpop.f32.mrb[0].mxu0
      %v453 = vadd.f32 %v208, %v452
      %v454 = vpop.f32.mrb[0].mxu0
      %455 = vmatprep.mubr.bf16.mxu0 0
      %456 = vmatmul.mubr.bf16.gmra.mrb[0].mxu0 %v322
      %v457 = vpop.f32.mrb[0].mxu0
      %v458 = vadd.f32 %v208, %v457
      %v459 = vpop.f32.mrb[0].mxu0
      %v460 = vpop.f32.mrb[0].mxu0
      %v461 = vadd.f32 %v208, %v460
      %v462 = vpop.f32.mrb[0].mxu0
      %463 = vmatprep.mubr.bf16.mxu0 0
      %464 = vmatmul.mubr.bf16.gmra.mrb[0].mxu0 %v325
      %v465 = vpop.f32.mrb[0].mxu0
      %v466 = vadd.f32 %v208, %v465
      %v467 = vpop.f32.mrb[0].mxu0
      %v468 = vpop.f32.mrb[0].mxu0
      %v469 = vadd.f32 %v208, %v468
      %v470 = vpop.f32.mrb[0].mxu0
      %471 = vmatprep.mubr.bf16.mxu0 0
      %472 = vmatmul.mubr.bf16.gmra.mrb[0].mxu0 %v328
      %v473 = vpop.f32.mrb[0].mxu0
      %v474 = vadd.f32 %v208, %v473
      %v475 = vpop.f32.mrb[0].mxu0
      %v476 = vpop.f32.mrb[0].mxu0
      %v477 = vadd.f32 %v208, %v476
      %v478 = vpop.f32.mrb[0].mxu0
      %479 = vmatprep.mubr.bf16.mxu0 0
      %480 = vmatmul.mubr.bf16.gmra.mrb[0].mxu0 %v331
      %v481 = vpop.f32.mrb[0].mxu0
      %v482 = vadd.f32 %v208, %v481
      %v483 = vpop.f32.mrb[0].mxu0
      %v484 = vpop.f32.mrb[0].mxu0
      %v485 = vadd.f32 %v208, %v484
      %v486 = vpop.f32.mrb[0].mxu0
      %487 = vmatprep.mubr.bf16.mxu0 0
      %488 = vmatmul.mubr.bf16.gmra.mrb[0].mxu0 %v334
      %v489 = vpop.f32.mrb[0].mxu0
      %v490 = vadd.f32 %v208, %v489
      %v491 = vpop.f32.mrb[0].mxu0
      %v492 = vpop.f32.mrb[0].mxu0
      %v493 = vadd.f32 %v208, %v492
      %v494 = vpop.f32.mrb[0].mxu0
      %495 = vmatprep.mubr.bf16.mxu0 0
      %496 = vmatmul.mubr.bf16.gmra.mrb[0].mxu0 %v337
      %v497 = vpop.f32.mrb[0].mxu0
      %v498 = vadd.f32 %v208, %v497
      %v499 = vpop.f32.mrb[0].mxu0
      %v500 = vpop.f32.mrb[0].mxu0
      %v501 = vadd.f32 %v208, %v500
      %v502 = vpop.f32.mrb[0].mxu0
      %503 = vdwg.mxu0
      %vm504 = vcmask 261120
      %v505 = vsel %vm504, %v378, 0.0
      %v506 = vsel %vm504, %v381, 0.0
      %v507 = vadd.f32 %v505, %v506
      %v508 = vsel %vm504, %v386, 0.0
      %v509 = vadd.f32 %v507, %v508
      %v510 = vsel %vm504, %v389, 0.0
      %v511 = vadd.f32 %v509, %v510
      %v512 = vsel %vm504, %v394, 0.0
      %v513 = vadd.f32 %v511, %v512
      %v514 = vsel %vm504, %v397, 0.0
      %v515 = vadd.f32 %v513, %v514
      %v516 = vsel %vm504, %v402, 0.0
      %v517 = vadd.f32 %v515, %v516
      %v518 = vsel %vm504, %v405, 0.0
      %v519 = vadd.f32 %v517, %v518
      %v520 = vsel %vm504, %v410, 0.0
      %v521 = vadd.f32 %v519, %v520
      %v522 = vsel %vm504, %v413, 0.0
      %v523 = vadd.f32 %v521, %v522
      %v524 = vsel %vm504, %v418, 0.0
      %v525 = vadd.f32 %v523, %v524
      %v526 = vsel %vm504, %v421, 0.0
      %v527 = vadd.f32 %v525, %v526
      %v528 = vsel %vm504, %v426, 0.0
      %v529 = vadd.f32 %v527, %v528
      %v530 = vsel %vm504, %v429, 0.0
      %v531 = vadd.f32 %v529, %v530
      %v532 = vsel %vm504, %v434, 0.0
      %v533 = vadd.f32 %v531, %v532
      %v534 = vsel %vm504, %v437, 0.0
      %v535 = vadd.f32 %v533, %v534
      %v536 = vsel %vm504, %v442, 0.0
      %v537 = vadd.f32 %v535, %v536
      %v538 = vsel %vm504, %v445, 0.0
      %v539 = vadd.f32 %v537, %v538
      %v540 = vsel %vm504, %v450, 0.0
      %v541 = vadd.f32 %v539, %v540
      %v542 = vsel %vm504, %v453, 0.0
      %v543 = vadd.f32 %v541, %v542
      %v544 = vsel %vm504, %v458, 0.0
      %v545 = vadd.f32 %v543, %v544
      %v546 = vsel %vm504, %v461, 0.0
      %v547 = vadd.f32 %v545, %v546
      %v548 = vsel %vm504, %v466, 0.0
      %v549 = vadd.f32 %v547, %v548
      %v550 = vsel %vm504, %v469, 0.0
      %v551 = vadd.f32 %v549, %v550
      %v552 = vsel %vm504, %v474, 0.0
      %v553 = vadd.f32 %v551, %v552
      %v554 = vsel %vm504, %v477, 0.0
      %v555 = vadd.f32 %v553, %v554
      %v556 = vsel %vm504, %v482, 0.0
      %v557 = vadd.f32 %v555, %v556
      %v558 = vsel %vm504, %v485, 0.0
      %v559 = vadd.f32 %v557, %v558
      %v560 = vsel %vm504, %v490, 0.0
      %v561 = vadd.f32 %v559, %v560
      %v562 = vsel %vm504, %v493, 0.0
      %v563 = vadd.f32 %v561, %v562
      %v564 = vsel %vm504, %v498, 0.0
      %v565 = vadd.f32 %v563, %v564
      %v566 = vsel %vm504, %v501, 0.0
      %v567 = vadd.f32 %v565, %v566
      %v568 = vrot.slane %v567, 4
      %v569 = vadd.f32 %v567, %v568
      %v570 = vrot.slane %v569, 2
      %v571 = vadd.f32 %v569, %v570
      %v572 = vrot.slane %v571, 1
      %v573 = vadd.f32 %v571, %v572
      %v574 = vmul.f32 %v378, %v378
      %v575 = vmul.f32 %v381, %v381
      %v576 = vmul.f32 %v386, %v386
      %v577 = vmul.f32 %v389, %v389
      %v578 = vmul.f32 %v394, %v394
      %v579 = vmul.f32 %v397, %v397
      %v580 = vmul.f32 %v402, %v402
      %v581 = vmul.f32 %v405, %v405
      %v582 = vmul.f32 %v410, %v410
      %v583 = vmul.f32 %v413, %v413
      %v584 = vmul.f32 %v418, %v418
      %v585 = vmul.f32 %v421, %v421
      %v586 = vmul.f32 %v426, %v426
      %v587 = vmul.f32 %v429, %v429
      %v588 = vmul.f32 %v434, %v434
      %v589 = vmul.f32 %v437, %v437
      %v590 = vmul.f32 %v442, %v442
      %v591 = vmul.f32 %v445, %v445
      %v592 = vmul.f32 %v450, %v450
      %v593 = vmul.f32 %v453, %v453
      %v594 = vmul.f32 %v458, %v458
      %v595 = vmul.f32 %v461, %v461
      %v596 = vmul.f32 %v466, %v466
      %v597 = vmul.f32 %v469, %v469
      %v598 = vmul.f32 %v474, %v474
      %v599 = vmul.f32 %v477, %v477
      %v600 = vmul.f32 %v482, %v482
      %v601 = vmul.f32 %v485, %v485
      %v602 = vmul.f32 %v490, %v490
      %v603 = vmul.f32 %v493, %v493
      %v604 = vmul.f32 %v498, %v498
      %v605 = vmul.f32 %v501, %v501
      %v606 = vsel %vm504, %v574, 0.0
      %v607 = vsel %vm504, %v575, 0.0
      %v608 = vadd.f32 %v606, %v607
      %v609 = vsel %vm504, %v576, 0.0
      %v610 = vadd.f32 %v608, %v609
      %v611 = vsel %vm504, %v577, 0.0
      %v612 = vadd.f32 %v610, %v611
      %v613 = vsel %vm504, %v578, 0.0
      %v614 = vadd.f32 %v612, %v613
      %v615 = vsel %vm504, %v579, 0.0
      %v616 = vadd.f32 %v614, %v615
      %v617 = vsel %vm504, %v580, 0.0
      %v618 = vadd.f32 %v616, %v617
      %v619 = vsel %vm504, %v581, 0.0
      %v620 = vadd.f32 %v618, %v619
      %v621 = vsel %vm504, %v582, 0.0
      %v622 = vadd.f32 %v620, %v621
      %v623 = vsel %vm504, %v583, 0.0
      %v624 = vadd.f32 %v622, %v623
      %v625 = vsel %vm504, %v584, 0.0
      %v626 = vadd.f32 %v624, %v625
      %v627 = vsel %vm504, %v585, 0.0
      %v628 = vadd.f32 %v626, %v627
      %v629 = vsel %vm504, %v586, 0.0
      %v630 = vadd.f32 %v628, %v629
      %v631 = vsel %vm504, %v587, 0.0
      %v632 = vadd.f32 %v630, %v631
      %v633 = vsel %vm504, %v588, 0.0
      %v634 = vadd.f32 %v632, %v633
      %v635 = vsel %vm504, %v589, 0.0
      %v636 = vadd.f32 %v634, %v635
      %v637 = vsel %vm504, %v590, 0.0
      %v638 = vadd.f32 %v636, %v637
      %v639 = vsel %vm504, %v591, 0.0
      %v640 = vadd.f32 %v638, %v639
      %v641 = vsel %vm504, %v592, 0.0
      %v642 = vadd.f32 %v640, %v641
      %v643 = vsel %vm504, %v593, 0.0
      %v644 = vadd.f32 %v642, %v643
      %v645 = vsel %vm504, %v594, 0.0
      %v646 = vadd.f32 %v644, %v645
      %v647 = vsel %vm504, %v595, 0.0
      %v648 = vadd.f32 %v646, %v647
      %v649 = vsel %vm504, %v596, 0.0
      %v650 = vadd.f32 %v648, %v649
      %v651 = vsel %vm504, %v597, 0.0
      %v652 = vadd.f32 %v650, %v651
      %v653 = vsel %vm504, %v598, 0.0
      %v654 = vadd.f32 %v652, %v653
      %v655 = vsel %vm504, %v599, 0.0
      %v656 = vadd.f32 %v654, %v655
      %v657 = vsel %vm504, %v600, 0.0
      %v658 = vadd.f32 %v656, %v657
      %v659 = vsel %vm504, %v601, 0.0
      %v660 = vadd.f32 %v658, %v659
      %v661 = vsel %vm504, %v602, 0.0
      %v662 = vadd.f32 %v660, %v661
      %v663 = vsel %vm504, %v603, 0.0
      %v664 = vadd.f32 %v662, %v663
      %v665 = vsel %vm504, %v604, 0.0
      %v666 = vadd.f32 %v664, %v665
      %v667 = vsel %vm504, %v605, 0.0
      %v668 = vadd.f32 %v666, %v667
      %v669 = vrot.slane %v668, 4
      %v670 = vadd.f32 %v668, %v669
      %v671 = vrot.slane %v670, 2
      %v672 = vadd.f32 %v670, %v671
      %v673 = vrot.slane %v672, 1
      %v674 = vadd.f32 %v672, %v673
      %vm675 = vcmask 1040384
      %v676 = vsel %vm675, %v573, %v674
      %vm677 = vcmask 254976
      %678 = vst.msk [vmem:[%s168] sm:$0x3] %vm677, %v676
      %p679 = scmp.lt.s32.totalorder %s14, 1
      %s680 = scalar_select %p679, %s14, 1
      %s681 = smul.addr %s680, 2
      %s682 = scalar_lea.vmem %s3, %s681
      // Predicated region
      $region33: #{blend_block_forward.3} parent=31 // pred_check
        %p683 = pneg %p100
      $region34: #{blend_block_forward.3} parent=31 // pred_check_branch
        %685 = sbr.rel (%p683) target = $region36
      $region35: #{blend_block_forward.3} parent=31 // pred_region
        _
      $region36: #{blend_block_forward.3} parent=31 // pred_fallthru
        _
    $region32: #{blend_block_forward.3} parent=5 // pred_fallthru
      _
    %p686 = scmp.le.s32.totalorder 2, %s9
    // Predicated region
    $region37: #{blend_block_forward.3} parent=5 // pred_check
      %p687 = pneg %p686
    $region38: #{blend_block_forward.3} parent=5 // pred_check_branch
      %689 = sbr.rel (%p687) target = $region40
    $region39: #{blend_block_forward.3} parent=5 // pred_region
      %s690 = ssub.s32 %s9, 2
      // Predicated region
      $region41: #{blend_block_forward.3} parent=39 // pred_check
        %p691 = pneg %p106
      $region42: #{blend_block_forward.3} parent=39 // pred_check_branch
        %693 = sbr.rel (%p691) target = $region44
      $region43: #{blend_block_forward.3} parent=39 // pred_region
        %p694 = scmp.lt.s32.totalorder %s15, 1
        %s695 = scalar_select %p694, %s15, 1
        %s696 = smul.addr %s695, 2
        %s697 = scalar_lea.vmem %s3, %s696
      $region44: #{blend_block_forward.3} parent=39 // pred_fallthru
        _
    $region40: #{blend_block_forward.3} parent=5 // pred_fallthru
      _
  $region6: #{blend_block_forward.3} parent=0 // loop_footer
    %s13 = sadd.s32 1, %s9
  $region7: #{blend_block_forward.3} parent=0 // loop_footer_branch
    %8 = sbr.rel target = $region3
  $region8: #{blend_block_forward.3} parent=0 // loop_exit
    _

// kernel: blend_block_forward.5
$region0: #{blend_block_forward.5}
  #allocation0 [shape = 'u32[]', space=smem, size = 0x4, offset = 0x4, fixed_abs, tag = 'smem constant byte address 0x4 - core index']
  #allocation1 [shape = 'u32[144,128]{1,0:T(1,128)}', space=vmem, size = 0x12000, scoped, tag = 'internal scratch']
  %s0 = inlined_call_operand.vmem [shape: f32[2,4,2], index: 0, kind: input, shape index: {}]
  %s1 = inlined_call_operand.vmem [shape: f32[4,2], index: 1, kind: input, shape index: {}]
  %s2 = inlined_call_operand.vmem [shape: bf16[2,4,256], index: 2, kind: input, shape index: {}]
  %s3 = inlined_call_operand.vmem [shape: f32[4,4], index: 3, kind: input, shape index: {}]
  %s4 = inlined_call_operand.vmem [shape: f32[4], index: 4, kind: input, shape index: {}]
  %s5 = inlined_call_operand.vmem [shape: f32[2,4,256], index: 5, kind: output, shape index: {}]
  %s6 = sld [smem:[#allocation0]]
  $region61: #{blend_block_forward.5} parent=0
    _
  %s8 = ssub.s32 1, %s6
  %s9 = scalar_select 0, %s8, %s6
  $region1: #{blend_block_forward.5} parent=0
    #allocation2 [shape = 'u8[2048]{0}', space=smem, size = 0x800, scoped, tag = 'input window, operand 3, single buffered']
    #allocation3 [shape = 's32[2]{0}', space=sflag, size = 0x8, scoped, tag = 'scoped memory for blend_block_forward.5']
    #allocation4 [shape = 'u8[512]{0}', space=smem, size = 0x200, scoped, tag = 'input window, operand 4, single buffered']
    #allocation5 [shape = 's32[1]{0}', space=sflag, size = 0x4, scoped, tag = 'scoped memory for blend_block_forward.5']
    %10 = vsyncpa [#allocation3], 0
    %11 = vsyncpa [#allocation5], 0
    loop: start=0, step=1, limit=4
    $region2: #{blend_block_forward.5} parent=1 // loop_pre_header
      _
    $region3: #{blend_block_forward.5} parent=1 // loop_header
      %s13 = sphi 0, %s17
      %p14 = scmp.ge.s32.totalorder %s13, 4
      %s21 = sphi 0, %s21
      %s23 = sphi 0, %s21
      %s24 = sphi 0, %s23
      %s38 = sphi 0, %s24
      %s42 = sphi 0, %s42
      %s44 = sphi 0, %s42
      %s45 = sphi 0, %s44
      %s59 = sphi 0, %s45
      %s65 = sphi 0, %s67
      %s68 = sphi 0, %s65
      %s69 = sphi 0, %s68
      %s85 = sphi 0, %s69
      %s89 = sphi 0, %s89
      %s91 = sphi 0, %s89
      %s92 = sphi 0, %s91
      %s106 = sphi 0, %s92
      %s110 = sphi 0, %s110
      %s112 = sphi 0, %s110
      %s113 = sphi 0, %s112
      %s127 = sphi 0, %s113
      %s133 = sphi 0, %s135
      %s136 = sphi 0, %s133
      %s137 = sphi 0, %s136
      %s153 = sphi 0, %s137
    $region4: #{blend_block_forward.5} parent=1 // loop_header_branch
      %16 = sbr.rel (%p14) target = $region8
    $region5: #{blend_block_forward.5} parent=1 // loop_body
      %s18 = ssub.s32 %s13, 1
      %s19 = ssub.s32 %s13, 2
      %s20 = sadd.s32 %s13, 1
      %s22 = sadd.s32 %s21, 1
      %p25 = scmp.eq.s32.totalorder %s13, 1
      %p26 = scmp.ne.s32.totalorder %s21, %s23
      %p27 = scmp.eq.s32.totalorder %s13, 0
      %p28 = por %p26, %p27
      %p29 = scmp.ne.s32.totalorder %s21, %s23
      %p30 = scmp.eq.s32.totalorder %s18, 1
      %p31 = por %p29, %p30
      %p32 = scmp.ne.s32.totalorder %s23, %s24
      %p33 = scmp.eq.s32.totalorder %s18, 0
      %p34 = por %p32, %p33
      %p35 = scmp.ne.s32.totalorder %s23, %s24
      %p36 = scmp.eq.s32.totalorder %s19, 1
      %p37 = por %p35, %p36
      %p39 = scmp.ne.s32.totalorder %s24, %s38
      %p40 = scmp.eq.s32.totalorder %s19, 0
      %p41 = por %p39, %p40
      %s43 = sadd.s32 %s42, 1
      %p46 = scmp.eq.s32.totalorder %s13, 1
      %p47 = scmp.ne.s32.totalorder %s42, %s44
      %p48 = scmp.eq.s32.totalorder %s13, 0
      %p49 = por %p47, %p48
      %p50 = scmp.ne.s32.totalorder %s42, %s44
      %p51 = scmp.eq.s32.totalorder %s18, 1
      %p52 = por %p50, %p51
      %p53 = scmp.ne.s32.totalorder %s44, %s45
      %p54 = scmp.eq.s32.totalorder %s18, 0
      %p55 = por %p53, %p54
      %p56 = scmp.ne.s32.totalorder %s44, %s45
      %p57 = scmp.eq.s32.totalorder %s19, 1
      %p58 = por %p56, %p57
      %p60 = scmp.ne.s32.totalorder %s45, %s59
      %p61 = scmp.eq.s32.totalorder %s19, 0
      %p62 = por %p60, %p61
      %s63 = ssub.s32 %s13, %s20
      %p64 = scmp.eq.s32.totalorder %s63, 0
      %s66 = sadd.s32 %s65, 1
      %s67 = scalar_select %p64, %s65, %s66
      %p70 = pneg %p64
      %p71 = scmp.eq.s32.totalorder %s13, 1
      %p72 = por %p70, %p71
      %p73 = scmp.ne.s32.totalorder %s65, %s68
      %p74 = scmp.eq.s32.totalorder %s13, 0
      %p75 = por %p73, %p74
      %p76 = scmp.ne.s32.totalorder %s65, %s68
      %p77 = scmp.eq.s32.totalorder %s18, 1
      %p78 = por %p76, %p77
      %p79 = scmp.ne.s32.totalorder %s68, %s69
      %p80 = scmp.eq.s32.totalorder %s18, 0
      %p81 = por %p79, %p80
      %p82 = scmp.ne.s32.totalorder %s68, %s69
      %p83 = scmp.eq.s32.totalorder %s19, 1
      %p84 = por %p82, %p83
      %p86 = scmp.ne.s32.totalorder %s69, %s85
      %p87 = scmp.eq.s32.totalorder %s19, 0
      %p88 = por %p86, %p87
      %s90 = sadd.s32 %s89, 1
      %p93 = scmp.eq.s32.totalorder %s13, 1
      %p94 = scmp.ne.s32.totalorder %s89, %s91
      %p95 = scmp.eq.s32.totalorder %s13, 0
      %p96 = por %p94, %p95
      %p97 = scmp.ne.s32.totalorder %s89, %s91
      %p98 = scmp.eq.s32.totalorder %s18, 1
      %p99 = por %p97, %p98
      %p100 = scmp.ne.s32.totalorder %s91, %s92
      %p101 = scmp.eq.s32.totalorder %s18, 0
      %p102 = por %p100, %p101
      %p103 = scmp.ne.s32.totalorder %s91, %s92
      %p104 = scmp.eq.s32.totalorder %s19, 1
      %p105 = por %p103, %p104
      %p107 = scmp.ne.s32.totalorder %s92, %s106
      %p108 = scmp.eq.s32.totalorder %s19, 0
      %p109 = por %p107, %p108
      %s111 = sadd.s32 %s110, 1
      %p114 = scmp.eq.s32.totalorder %s13, 1
      %p115 = scmp.ne.s32.totalorder %s110, %s112
      %p116 = scmp.eq.s32.totalorder %s13, 0
      %p117 = por %p115, %p116
      %p118 = scmp.ne.s32.totalorder %s110, %s112
      %p119 = scmp.eq.s32.totalorder %s18, 1
      %p120 = por %p118, %p119
      %p121 = scmp.ne.s32.totalorder %s112, %s113
      %p122 = scmp.eq.s32.totalorder %s18, 0
      %p123 = por %p121, %p122
      %p124 = scmp.ne.s32.totalorder %s112, %s113
      %p125 = scmp.eq.s32.totalorder %s19, 1
      %p126 = por %p124, %p125
      %p128 = scmp.ne.s32.totalorder %s113, %s127
      %p129 = scmp.eq.s32.totalorder %s19, 0
      %p130 = por %p128, %p129
      %s131 = ssub.s32 %s13, %s20
      %p132 = scmp.eq.s32.totalorder %s131, 0
      %s134 = sadd.s32 %s133, 1
      %s135 = scalar_select %p132, %s133, %s134
      %p138 = pneg %p132
      %p139 = scmp.eq.s32.totalorder %s13, 1
      %p140 = por %p138, %p139
      %p141 = scmp.ne.s32.totalorder %s133, %s136
      %p142 = scmp.eq.s32.totalorder %s13, 0
      %p143 = por %p141, %p142
      %p144 = scmp.ne.s32.totalorder %s133, %s136
      %p145 = scmp.eq.s32.totalorder %s18, 1
      %p146 = por %p144, %p145
      %p147 = scmp.ne.s32.totalorder %s136, %s137
      %p148 = scmp.eq.s32.totalorder %s18, 0
      %p149 = por %p147, %p148
      %p150 = scmp.ne.s32.totalorder %s136, %s137
      %p151 = scmp.eq.s32.totalorder %s19, 1
      %p152 = por %p150, %p151
      %p154 = scmp.ne.s32.totalorder %s137, %s153
      %p155 = scmp.eq.s32.totalorder %s19, 0
      %p156 = por %p154, %p155
      %p157 = scmp.le.s32.totalorder 1, %s13
      %p158 = scmp.lt.s32.totalorder %s13, 3
      %p159 = pnand %p157, %p158
      %p160 = pneg %p159
      // Predicated region
      $region9: #{blend_block_forward.5} parent=5 // pred_check
        _
      $region10: #{blend_block_forward.5} parent=5 // pred_check_branch
        %162 = sbr.rel (%p159) target = $region12
      $region11: #{blend_block_forward.5} parent=5 // pred_region
        %s163 = ssub.s32 %s13, 1
        // Predicated region
        $region13: #{blend_block_forward.5} parent=11 // pred_check
          %p164 = pneg %p34
        $region14: #{blend_block_forward.5} parent=11 // pred_check_branch
          %166 = sbr.rel (%p164) target = $region16
        $region15: #{blend_block_forward.5} parent=11 // pred_region
          _
        $region16: #{blend_block_forward.5} parent=11 // pred_fallthru
          _
        // Predicated region
        $region17: #{blend_block_forward.5} parent=11 // pred_check
          %p167 = pneg %p55
        $region18: #{blend_block_forward.5} parent=11 // pred_check_branch
          %169 = sbr.rel (%p167) target = $region20
        $region19: #{blend_block_forward.5} parent=11 // pred_region
          _
        $region20: #{blend_block_forward.5} parent=11 // pred_fallthru
          _
        // Predicated region
        $region21: #{blend_block_forward.5} parent=11 // pred_check
          %p170 = pneg %p102
        $region22: #{blend_block_forward.5} parent=11 // pred_check_branch
          %172 = sbr.rel (%p170) target = $region24
        $region23: #{blend_block_forward.5} parent=11 // pred_region
          %s174 = ssub.s32 64, 64
          %175 = vsyncadd [#allocation3], %s174
          %s177 = sshll.u32 %s3, 4
          %s178 = int_to_ptr.vmem [resolvable:$true] %s177
          %180 = dma.vmem_to_smem %s178, 64, [#allocation2], [#allocation3]
        $region24: #{blend_block_forward.5} parent=11 // pred_fallthru
          _
        // Predicated region
        $region25: #{blend_block_forward.5} parent=11 // pred_check
          %p181 = pneg %p123
        $region26: #{blend_block_forward.5} parent=11 // pred_check_branch
          %183 = sbr.rel (%p181) target = $region28
        $region27: #{blend_block_forward.5} parent=11 // pred_region
          %s185 = ssub.s32 16, 16
          %186 = vsyncadd [#allocation5], %s185
          %s188 = sshll.u32 %s4, 4
          %s189 = int_to_ptr.vmem [resolvable:$true] %s188
          %191 = dma.vmem_to_smem %s189, 16, [#allocation4], [#allocation5]
        $region28: #{blend_block_forward.5} parent=11 // pred_fallthru
          _
      $region12: #{blend_block_forward.5} parent=5 // pred_fallthru
        _
      %p192 = scmp.lt.s32.totalorder %s13, 2
      // Predicated region
      $region29: #{blend_block_forward.5} parent=5 // pred_check
        %p193 = pneg %p192
      $region30: #{blend_block_forward.5} parent=5 // pred_check_branch
        %195 = sbr.rel (%p193) target = $region32
      $region31: #{blend_block_forward.5} parent=5 // pred_region
        // Predicated region
        $region33: #{blend_block_forward.5} parent=31 // pred_check
          %p196 = pneg %p75
        $region34: #{blend_block_forward.5} parent=31 // pred_check_branch
          %198 = sbr.rel (%p196) target = $region36
        $region35: #{blend_block_forward.5} parent=31 // pred_region
          %p199 = scmp.lt.s32.totalorder %s13, 1
          %s200 = scalar_select %p199, %s13, 1
          %s201 = smul.addr %s200, 2
          %s202 = smul.addr %s201, 2
          %s203 = scalar_lea.vmem %s2, %s202
        $region36: #{blend_block_forward.5} parent=31 // pred_fallthru
          _
      $region32: #{blend_block_forward.5} parent=5 // pred_fallthru
        _
      %p204 = scmp.le.s32.totalorder 1, %s13
      %p205 = scmp.lt.s32.totalorder %s13, 3
      %p206 = pnand %p204, %p205
      %p207 = pneg %p206
      // Predicated region
      $region37: #{blend_block_forward.5} parent=5 // pred_check
        _
      $region38: #{blend_block_forward.5} parent=5 // pred_check_branch
        %209 = sbr.rel (%p206) target = $region40
      $region39: #{blend_block_forward.5} parent=5 // pred_region
        %s210 = ssub.s32 %s13, 1
        // Predicated region
        $region41: #{blend_block_forward.5} parent=39 // pred_check
          %p211 = pneg %p102
        $region42: #{blend_block_forward.5} parent=39 // pred_check_branch
          %213 = sbr.rel (%p211) target = $region44
        $region43: #{blend_block_forward.5} parent=39 // pred_region
          %214 = dma.done [#allocation3], 64
        $region44: #{blend_block_forward.5} parent=39 // pred_fallthru
          _
        // Predicated region
        $region45: #{blend_block_forward.5} parent=39 // pred_check
          %p215 = pneg %p123
        $region46: #{blend_block_forward.5} parent=39 // pred_check_branch
          %217 = sbr.rel (%p215) target = $region48
        $region47: #{blend_block_forward.5} parent=39 // pred_region
          %218 = dma.done [#allocation5], 16
        $region48: #{blend_block_forward.5} parent=39 // pred_fallthru
          _
        %219 = sfence
        %p220 = pneg %p34
        %p221 = pneg %p31
        %p222 = pneg %p55
        %p223 = pneg %p52
        %p224 = scmp.lt.s32.totalorder %s18, 1
        %s225 = scalar_select %p224, %s18, 1
        %s226 = smul.addr %s225, 2
        %s227 = smul.addr %s226, 2
        %s228 = scalar_lea.vmem %s2, %s227
        %p229 = pneg %p81
        %p230 = pneg %p78
        %p231 = pneg %p102
        %p232 = pneg %p99
        %p233 = pneg %p123
        %p234 = pneg %p120
        %p235 = pneg %p149
        %p236 = pneg %p146
        %p237 = scmp.lt.s32.totalorder %s18, 1
        %s238 = scalar_select %p237, %s18, 1
        %s239 = smul.addr %s238, 2
        %s240 = smul.addr %s239, 4
        %s241 = scalar_lea.vmem %s5, %s240
        %p242 = scmp.lt.s32.totalorder %s18, 1
        %s243 = scalar_select %p242, %s18, 1
        %s244 = smul.addr %s243, 2
        %s245 = smul.addr %s244, 2
        %s246 = scalar_lea.vmem %s2, %s245
        %p247 = scmp.lt.s32.totalorder %s18, 1
        %s248 = scalar_select %p247, %s18, 1
        %s249 = smul.addr %s248, 2
        %s250 = smul.addr %s249, 4
        %s251 = scalar_lea.vmem %s5, %s250
        %v252 = vld [vmem:[%s0] sm:$0xf]
        %v253 = vld [vmem:[%s0 + $0x4] sm:$0xf]
        %vm254 = vcmask 3072
        %v255 = vsel %vm254, %v252, 0.0
        %v256 = vsel %vm254, %v253, 0.0
        %v257 = vadd.f32 %v255, %v256
        %vm258 = vcmask 11272
        %v259 = vsel %vm258, %v252, 0.0
        %v260 = vsel %vm258, %v253, 0.0
        %v261 = vadd.f32 %v259, %v260
        %v262 = vld [vmem:[%s1] sm:$0xf]
        %v263 = vmul.f32 %v257, 0.001953125
        %v264 = vmul.f32 %v261, 0.001953125
        %v265 = vmul.f32 %v263, %v263
        %267 = vrot.lane.b32.xlu0 %v265, 1
        %v268 = vpop.permute.xlu0 %267
        %v270 = vsub.f32 %v264, %v268
        %v271 = vmax.f32 %v270, 0.0
        %v272 = vadd.f32 %v271, 1e-05
        %v273 = vrsqrt.pop %v272
        %275 = vrot.lane.b32.xlu0 %v273, 127
        %v276 = vpop.permute.xlu0 %275
        %v278 = vmul.f32 %v262, %v276
        %v279 = vmul.f32 %v263, %v278
        %281 = vrot.lane.b32.xlu0 %v279, 1
        %v282 = vpop.permute.xlu0 %281
        %v284 = vsub.f32 %v262, %v282
        %v285 = vld [vmem:[%s246] sm:$0xf]
        %v286 = vunpack.c.l.bf16 %v285
        %288 = vset.pattern.permute.xlu0 0
        %289 = vperm.xlu0 %288, %v278
        %v290 = vpop.permute.xlu0 %289
        %v292 = vunpack.c.l.s4 839922192
        %v293 = vunpack.c.0.s8 %v292
        %v294 = vlaneseq
        %v295 = vshrl.u32 %v294, 7
        %v296 = vsub.s32 %v293, %v295
        %v297 = vrot.slane %v290, %v296
        %v299 = vmul.f32 %v286, %v297
        %301 = vset.pattern.permute.xlu0 1
        %302 = vperm.xlu0 %301, %v284
        %v303 = vpop.permute.xlu0 %302
        %v305 = vunpack.c.l.s4 839922192
        %v306 = vunpack.c.0.s8 %v305
        %v307 = vlaneseq
        %v308 = vshrl.u32 %v307, 7
        %v309 = vsub.s32 %v306, %v308
        %v310 = vrot.slane %v303, %v309
        %v312 = vadd.f32 %v299, %v310
        %v313 = vmul.f32 %v312, 0.2
        %v314 = vmax.f32 %v312, %v313
        %s315 = sld [smem:[#allocation2]]
        %v316 = vstv %s315
        %v317 = vmul.f32 %v314, %v316
        %s318 = sld [smem:[#allocation2 + $0x80]]
        %v319 = vstv %s318
        %v320 = vmul.f32 %v314, %v319
        %v322 = vrot.slane %v320, 5
        %v323 = vrot.slane %v322, 4
        %v325 = vadd.f32 %v317, %v323
        %s326 = sld [smem:[#allocation2 + $0x100]]
        %v327 = vstv %s326
        %v328 = vmul.f32 %v314, %v327
        %v330 = vrot.slane %v328, 6
        %v331 = vrot.slane %v330, 4
        %v333 = vadd.f32 %v325, %v331
        %s334 = sld [smem:[#allocation2 + $0x180]]
        %v335 = vstv %s334
        %v336 = vmul.f32 %v314, %v335
        %v338 = vrot.slane %v336, 7
        %v339 = vrot.slane %v338, 4
        %v341 = vadd.f32 %v333, %v339
        %s342 = sld [smem:[#allocation4]]
        %v343 = vstv %s342
        %v344 = vadd.f32 %v341, %v343
        %s345 = sld [smem:[#allocation2 + $0x1]]
        %v346 = vstv %s345
        %v347 = vmul.f32 %v314, %v346
        %s348 = sld [smem:[#allocation2 + $0x81]]
        %v349 = vstv %s348
        %v350 = vmul.f32 %v314, %v349
        %v352 = vrot.slane %v350, 5
        %v353 = vrot.slane %v352, 4
        %v355 = vadd.f32 %v347, %v353
        %s356 = sld [smem:[#allocation2 + $0x101]]
        %v357 = vstv %s356
        %v358 = vmul.f32 %v314, %v357
        %v360 = vrot.slane %v358, 6
        %v361 = vrot.slane %v360, 4
        %v363 = vadd.f32 %v355, %v361
        %s364 = sld [smem:[#allocation2 + $0x181]]
        %v365 = vstv %s364
        %v366 = vmul.f32 %v314, %v365
        %v368 = vrot.slane %v366, 7
        %v369 = vrot.slane %v368, 4
        %v371 = vadd.f32 %v363, %v369
        %s372 = sld [smem:[#allocation4 + $0x1]]
        %v373 = vstv %s372
        %v374 = vadd.f32 %v371, %v373
        %s375 = sld [smem:[#allocation2 + $0x2]]
        %v376 = vstv %s375
        %v377 = vmul.f32 %v314, %v376
        %s378 = sld [smem:[#allocation2 + $0x82]]
        %v379 = vstv %s378
        %v380 = vmul.f32 %v314, %v379
        %v382 = vrot.slane %v380, 5
        %v383 = vrot.slane %v382, 4
        %v385 = vadd.f32 %v377, %v383
        %s386 = sld [smem:[#allocation2 + $0x102]]
        %v387 = vstv %s386
        %v388 = vmul.f32 %v314, %v387
        %v390 = vrot.slane %v388, 6
        %v391 = vrot.slane %v390, 4
        %v393 = vadd.f32 %v385, %v391
        %s394 = sld [smem:[#allocation2 + $0x182]]
        %v395 = vstv %s394
        %v396 = vmul.f32 %v314, %v395
        %v398 = vrot.slane %v396, 7
        %v399 = vrot.slane %v398, 4
        %v401 = vadd.f32 %v393, %v399
        %s402 = sld [smem:[#allocation4 + $0x2]]
        %v403 = vstv %s402
        %v404 = vadd.f32 %v401, %v403
        %s405 = sld [smem:[#allocation2 + $0x3]]
        %v406 = vstv %s405
        %v407 = vmul.f32 %v314, %v406
        %s408 = sld [smem:[#allocation2 + $0x83]]
        %v409 = vstv %s408
        %v410 = vmul.f32 %v314, %v409
        %v412 = vrot.slane %v410, 5
        %v413 = vrot.slane %v412, 4
        %v415 = vadd.f32 %v407, %v413
        %s416 = sld [smem:[#allocation2 + $0x103]]
        %v417 = vstv %s416
        %v418 = vmul.f32 %v314, %v417
        %v420 = vrot.slane %v418, 6
        %v421 = vrot.slane %v420, 4
        %v423 = vadd.f32 %v415, %v421
        %s424 = sld [smem:[#allocation2 + $0x183]]
        %v425 = vstv %s424
        %v426 = vmul.f32 %v314, %v425
        %v428 = vrot.slane %v426, 7
        %v429 = vrot.slane %v428, 4
        %v431 = vadd.f32 %v423, %v429
        %s432 = sld [smem:[#allocation4 + $0x3]]
        %v433 = vstv %s432
        %v434 = vadd.f32 %v431, %v433
        %v436 = vlaneseq
        %v437 = vshrl.u32 %v436, 7
        %v438 = vsub.s32 0, %v437
        %v439 = vrot.slane %v344, %v438
        %v440 = vlaneseq
        %v441 = vshrl.u32 %v440, 7
        %v442 = vsub.s32 4, %v441
        %v443 = vrot.slane %v344, %v442
        %v447 = vlaneseq
        %v448 = vshrl.u32 %v447, 7
        %v449 = vsub.s32 0, %v448
        %v450 = vrot.slane %v374, %v449
        %v451 = vlaneseq
        %v452 = vshrl.u32 %v451, 7
        %v453 = vsub.s32 4, %v452
        %v454 = vrot.slane %v374, %v453
        %v458 = vlaneseq
        %v459 = vshrl.u32 %v458, 7
        %v460 = vsub.s32 0, %v459
        %v461 = vrot.slane %v404, %v460
        %v462 = vlaneseq
        %v463 = vshrl.u32 %v462, 7
        %v464 = vsub.s32 4, %v463
        %v465 = vrot.slane %v404, %v464
        %v469 = vlaneseq
        %v470 = vshrl.u32 %v469, 7
        %v471 = vsub.s32 0, %v470
        %v472 = vrot.slane %v434, %v471
        %v473 = vlaneseq
        %v474 = vshrl.u32 %v473, 7
        %v475 = vsub.s32 4, %v474
        %v476 = vrot.slane %v434, %v475
        %vm479 = vcmask 1040384
        %v480 = vsel %vm479, %v439, %v450
        %v481 = vsel %vm479, %v443, %v454
        %vm482 = vcmask 1041408
        %v483 = vsel %vm482, %v480, %v461
        %v484 = vsel %vm482, %v481, %v465
        %vm485 = vcmask 1042432
        %v486 = vsel %vm485, %v483, %v472
        %v487 = vsel %vm485, %v484, %v476
        %v488 = vsub.f32 0.0, %v486
        %v489 = vsub.f32 0.0, %v487
        %v490 = vmul.f32 %v488, 1.442695
        %v491 = vpow.pop %v490
        %v492 = vmul.f32 %v489, 1.442695
        %v493 = vpow.pop %v492
        %v494 = vadd.f32 %v491, 1.0
        %v495 = vadd.f32 %v493, 1.0
        %v496 = vrcp.pop %v494
        %v497 = vrcp.pop %v495
        %v498 = vmin.f32 %v496, 1.0
        %v499 = vmin.f32 %v497, 1.0
        %v502 = vcombine.low %v498, %v499
        %504 = vst [vmem:[%s251] sm:$0xff] %v502
        %p505 = scmp.lt.s32.totalorder %s18, 1
        %s506 = scalar_select %p505, %s18, 1
        %s507 = smul.addr %s506, 2
        %s508 = smul.addr %s507, 4
        %s509 = scalar_lea.vmem %s5, %s508
        // Predicated region
        $region49: #{blend_block_forward.5} parent=39 // pred_check
          %p510 = pneg %p146
        $region50: #{blend_block_forward.5} parent=39 // pred_check_branch
          %512 = sbr.rel (%p510) target = $region52
        $region51: #{blend_block_forward.5} parent=39 // pred_region
          _
        $region52: #{blend_block_forward.5} parent=39 // pred_fallthru
          _
      $region40: #{blend_block_forward.5} parent=5 // pred_fallthru
        _
      %p513 = scmp.le.s32.totalorder 2, %s13
      // Predicated region
      $region53: #{blend_block_forward.5} parent=5 // pred_check
        %p514 = pneg %p513
      $region54: #{blend_block_forward.5} parent=5 // pred_check_branch
        %516 = sbr.rel (%p514) target = $region56
      $region55: #{blend_block_forward.5} parent=5 // pred_region
        %s517 = ssub.s32 %s13, 2
        // Predicated region
        $region57: #{blend_block_forward.5} parent=55 // pred_check
          %p518 = pneg %p152
        $region58: #{blend_block_forward.5} parent=55 // pred_check_branch
          %520 = sbr.rel (%p518) target = $region60
        $region59: #{blend_block_forward.5} parent=55 // pred_region
          %p521 = scmp.lt.s32.totalorder %s19, 1
          %s522 = scalar_select %p521, %s19, 1
          %s523 = smul.addr %s522, 2
          %s524 = smul.addr %s523, 4
          %s525 = scalar_lea.vmem %s5, %s524
        $region60: #{blend_block_forward.5} parent=55 // pred_fallthru
          _
      $region56: #{blend_block_forward.5} parent=5 // pred_fallthru
        _
    $region6: #{blend_block_forward.5} parent=1 // loop_footer
      %s17 = sadd.s32 1, %s13
    $region7: #{blend_block_forward.5} parent=1 // loop_footer_branch
      %12 = sbr.rel target = $region3
    $region8: #{blend_block_forward.5} parent=1 // loop_exit
      _
    %526 = vsyncpa [#allocation3], 1
    %s527 = scalar_lea.sflag [#allocation3], 1
    %528 = vsyncpa %s527, 1
    %529 = vsyncpa [#allocation5], 1

// kernel: blend_block_forward.4
$region0: #{blend_block_forward.4}
  #allocation0 [shape = 'u32[]', space=smem, size = 0x4, offset = 0x4, fixed_abs, tag = 'smem constant byte address 0x4 - core index']
  #allocation1 [shape = 'u32[144,128]{1,0:T(1,128)}', space=vmem, size = 0x12000, scoped, tag = 'internal scratch']
  #allocation2 [shape = 'bf16[18,18,32]{2,1,0:T(8,128)(2,1)}', space=vmem, size = 0x1b000, scoped, tag = 'scratch operand']
  %s0 = inlined_call_operand.vmem [shape: f32[2,2,32], index: 0, kind: input, shape index: {}]
  %s1 = inlined_call_operand.vmem [shape: f32[2,32], index: 1, kind: input, shape index: {}]
  %s2 = inlined_call_operand.vmem [shape: bf16[2,256,8], index: 2, kind: input, shape index: {}]
  %s3 = inlined_call_operand.vmem [shape: bf16[8,32], index: 3, kind: input, shape index: {}]
  %s4 = inlined_call_operand.vmem [shape: f32[1,32], index: 4, kind: input, shape index: {}]
  %s5 = inlined_call_operand.vmem [shape: bf16[4,288], index: 5, kind: input, shape index: {}]
  %s6 = inlined_call_operand.vmem [shape: f32[4,1], index: 6, kind: input, shape index: {}]
  %s7 = inlined_call_operand.vmem [shape: bf16[2,4,256], index: 7, kind: output, shape index: {0}]
  %s8 = inlined_call_operand.vmem [shape: f32[2,4,2], index: 8, kind: output, shape index: {1}]
  %9 = xla_tuple %s7, %s8
  %s10 = sld [smem:[#allocation0]]
  $region69: #{blend_block_forward.4} parent=0
    _
  %s12 = ssub.s32 1, %s10
  %s13 = scalar_select 0, %s12, %s10
  loop: start=0, step=1, limit=4
  $region2: #{blend_block_forward.4} parent=0 // loop_pre_header
    _
  $region3: #{blend_block_forward.4} parent=0 // loop_header
    %s15 = sphi 0, %s19
    %p16 = scmp.ge.s32.totalorder %s15, 4
    %s23 = sphi 0, %s23
    %s25 = sphi 0, %s23
    %s26 = sphi 0, %s25
    %s40 = sphi 0, %s26
    %s44 = sphi 0, %s44
    %s46 = sphi 0, %s44
    %s47 = sphi 0, %s46
    %s61 = sphi 0, %s47
    %s67 = sphi 0, %s69
    %s70 = sphi 0, %s67
    %s71 = sphi 0, %s70
    %s87 = sphi 0, %s71
    %s91 = sphi 0, %s91
    %s93 = sphi 0, %s91
    %s94 = sphi 0, %s93
    %s108 = sphi 0, %s94
    %s112 = sphi 0, %s112
    %s114 = sphi 0, %s112
    %s115 = sphi 0, %s114
    %s129 = sphi 0, %s115
    %s133 = sphi 0, %s133
    %s135 = sphi 0, %s133
    %s136 = sphi 0, %s135
    %s150 = sphi 0, %s136
    %s154 = sphi 0, %s154
    %s156 = sphi 0, %s154
    %s157 = sphi 0, %s156
    %s171 = sphi 0, %s157
    %s177 = sphi 0, %s179
    %s180 = sphi 0, %s177
    %s181 = sphi 0, %s180
    %s197 = sphi 0, %s181
    %s203 = sphi 0, %s205
    %s206 = sphi 0, %s203
    %s207 = sphi 0, %s206
    %s223 = sphi 0, %s207
  $region4: #{blend_block_forward.4} parent=0 // loop_header_branch
    %18 = sbr.rel (%p16) target = $region8
  $region5: #{blend_block_forward.4} parent=0 // loop_body
    %s20 = ssub.s32 %s15, 1
    %s21 = ssub.s32 %s15, 2
    %s22 = sadd.s32 %s15, 1
    %s24 = sadd.s32 %s23, 1
    %p27 = scmp.eq.s32.totalorder %s15, 1
    %p28 = scmp.ne.s32.totalorder %s23, %s25
    %p29 = scmp.eq.s32.totalorder %s15, 0
    %p30 = por %p28, %p29
    %p31 = scmp.ne.s32.totalorder %s23, %s25
    %p32 = scmp.eq.s32.totalorder %s20, 1
    %p33 = por %p31, %p32
    %p34 = scmp.ne.s32.totalorder %s25, %s26
    %p35 = scmp.eq.s32.totalorder %s20, 0
    %p36 = por %p34, %p35
    %p37 = scmp.ne.s32.totalorder %s25, %s26
    %p38 = scmp.eq.s32.totalorder %s21, 1
    %p39 = por %p37, %p38
    %p41 = scmp.ne.s32.totalorder %s26, %s40
    %p42 = scmp.eq.s32.totalorder %s21, 0
    %p43 = por %p41, %p42
    %s45 = sadd.s32 %s44, 1
    %p48 = scmp.eq.s32.totalorder %s15, 1
    %p49 = scmp.ne.s32.totalorder %s44, %s46
    %p50 = scmp.eq.s32.totalorder %s15, 0
    %p51 = por %p49, %p50
    %p52 = scmp.ne.s32.totalorder %s44, %s46
    %p53 = scmp.eq.s32.totalorder %s20, 1
    %p54 = por %p52, %p53
    %p55 = scmp.ne.s32.totalorder %s46, %s47
    %p56 = scmp.eq.s32.totalorder %s20, 0
    %p57 = por %p55, %p56
    %p58 = scmp.ne.s32.totalorder %s46, %s47
    %p59 = scmp.eq.s32.totalorder %s21, 1
    %p60 = por %p58, %p59
    %p62 = scmp.ne.s32.totalorder %s47, %s61
    %p63 = scmp.eq.s32.totalorder %s21, 0
    %p64 = por %p62, %p63
    %s65 = ssub.s32 %s15, %s22
    %p66 = scmp.eq.s32.totalorder %s65, 0
    %s68 = sadd.s32 %s67, 1
    %s69 = scalar_select %p66, %s67, %s68
    %p72 = pneg %p66
    %p73 = scmp.eq.s32.totalorder %s15, 1
    %p74 = por %p72, %p73
    %p75 = scmp.ne.s32.totalorder %s67, %s70
    %p76 = scmp.eq.s32.totalorder %s15, 0
    %p77 = por %p75, %p76
    %p78 = scmp.ne.s32.totalorder %s67, %s70
    %p79 = scmp.eq.s32.totalorder %s20, 1
    %p80 = por %p78, %p79
    %p81 = scmp.ne.s32.totalorder %s70, %s71
    %p82 = scmp.eq.s32.totalorder %s20, 0
    %p83 = por %p81, %p82
    %p84 = scmp.ne.s32.totalorder %s70, %s71
    %p85 = scmp.eq.s32.totalorder %s21, 1
    %p86 = por %p84, %p85
    %p88 = scmp.ne.s32.totalorder %s71, %s87
    %p89 = scmp.eq.s32.totalorder %s21, 0
    %p90 = por %p88, %p89
    %s92 = sadd.s32 %s91, 1
    %p95 = scmp.eq.s32.totalorder %s15, 1
    %p96 = scmp.ne.s32.totalorder %s91, %s93
    %p97 = scmp.eq.s32.totalorder %s15, 0
    %p98 = por %p96, %p97
    %p99 = scmp.ne.s32.totalorder %s91, %s93
    %p100 = scmp.eq.s32.totalorder %s20, 1
    %p101 = por %p99, %p100
    %p102 = scmp.ne.s32.totalorder %s93, %s94
    %p103 = scmp.eq.s32.totalorder %s20, 0
    %p104 = por %p102, %p103
    %p105 = scmp.ne.s32.totalorder %s93, %s94
    %p106 = scmp.eq.s32.totalorder %s21, 1
    %p107 = por %p105, %p106
    %p109 = scmp.ne.s32.totalorder %s94, %s108
    %p110 = scmp.eq.s32.totalorder %s21, 0
    %p111 = por %p109, %p110
    %s113 = sadd.s32 %s112, 1
    %p116 = scmp.eq.s32.totalorder %s15, 1
    %p117 = scmp.ne.s32.totalorder %s112, %s114
    %p118 = scmp.eq.s32.totalorder %s15, 0
    %p119 = por %p117, %p118
    %p120 = scmp.ne.s32.totalorder %s112, %s114
    %p121 = scmp.eq.s32.totalorder %s20, 1
    %p122 = por %p120, %p121
    %p123 = scmp.ne.s32.totalorder %s114, %s115
    %p124 = scmp.eq.s32.totalorder %s20, 0
    %p125 = por %p123, %p124
    %p126 = scmp.ne.s32.totalorder %s114, %s115
    %p127 = scmp.eq.s32.totalorder %s21, 1
    %p128 = por %p126, %p127
    %p130 = scmp.ne.s32.totalorder %s115, %s129
    %p131 = scmp.eq.s32.totalorder %s21, 0
    %p132 = por %p130, %p131
    %s134 = sadd.s32 %s133, 1
    %p137 = scmp.eq.s32.totalorder %s15, 1
    %p138 = scmp.ne.s32.totalorder %s133, %s135
    %p139 = scmp.eq.s32.totalorder %s15, 0
    %p140 = por %p138, %p139
    %p141 = scmp.ne.s32.totalorder %s133, %s135
    %p142 = scmp.eq.s32.totalorder %s20, 1
    %p143 = por %p141, %p142
    %p144 = scmp.ne.s32.totalorder %s135, %s136
    %p145 = scmp.eq.s32.totalorder %s20, 0
    %p146 = por %p144, %p145
    %p147 = scmp.ne.s32.totalorder %s135, %s136
    %p148 = scmp.eq.s32.totalorder %s21, 1
    %p149 = por %p147, %p148
    %p151 = scmp.ne.s32.totalorder %s136, %s150
    %p152 = scmp.eq.s32.totalorder %s21, 0
    %p153 = por %p151, %p152
    %s155 = sadd.s32 %s154, 1
    %p158 = scmp.eq.s32.totalorder %s15, 1
    %p159 = scmp.ne.s32.totalorder %s154, %s156
    %p160 = scmp.eq.s32.totalorder %s15, 0
    %p161 = por %p159, %p160
    %p162 = scmp.ne.s32.totalorder %s154, %s156
    %p163 = scmp.eq.s32.totalorder %s20, 1
    %p164 = por %p162, %p163
    %p165 = scmp.ne.s32.totalorder %s156, %s157
    %p166 = scmp.eq.s32.totalorder %s20, 0
    %p167 = por %p165, %p166
    %p168 = scmp.ne.s32.totalorder %s156, %s157
    %p169 = scmp.eq.s32.totalorder %s21, 1
    %p170 = por %p168, %p169
    %p172 = scmp.ne.s32.totalorder %s157, %s171
    %p173 = scmp.eq.s32.totalorder %s21, 0
    %p174 = por %p172, %p173
    %s175 = ssub.s32 %s15, %s22
    %p176 = scmp.eq.s32.totalorder %s175, 0
    %s178 = sadd.s32 %s177, 1
    %s179 = scalar_select %p176, %s177, %s178
    %p182 = pneg %p176
    %p183 = scmp.eq.s32.totalorder %s15, 1
    %p184 = por %p182, %p183
    %p185 = scmp.ne.s32.totalorder %s177, %s180
    %p186 = scmp.eq.s32.totalorder %s15, 0
    %p187 = por %p185, %p186
    %p188 = scmp.ne.s32.totalorder %s177, %s180
    %p189 = scmp.eq.s32.totalorder %s20, 1
    %p190 = por %p188, %p189
    %p191 = scmp.ne.s32.totalorder %s180, %s181
    %p192 = scmp.eq.s32.totalorder %s20, 0
    %p193 = por %p191, %p192
    %p194 = scmp.ne.s32.totalorder %s180, %s181
    %p195 = scmp.eq.s32.totalorder %s21, 1
    %p196 = por %p194, %p195
    %p198 = scmp.ne.s32.totalorder %s181, %s197
    %p199 = scmp.eq.s32.totalorder %s21, 0
    %p200 = por %p198, %p199
    %s201 = ssub.s32 %s15, %s22
    %p202 = scmp.eq.s32.totalorder %s201, 0
    %s204 = sadd.s32 %s203, 1
    %s205 = scalar_select %p202, %s203, %s204
    %p208 = pneg %p202
    %p209 = scmp.eq.s32.totalorder %s15, 1
    %p210 = por %p208, %p209
    %p211 = scmp.ne.s32.totalorder %s203, %s206
    %p212 = scmp.eq.s32.totalorder %s15, 0
    %p213 = por %p211, %p212
    %p214 = scmp.ne.s32.totalorder %s203, %s206
    %p215 = scmp.eq.s32.totalorder %s20, 1
    %p216 = por %p214, %p215
    %p217 = scmp.ne.s32.totalorder %s206, %s207
    %p218 = scmp.eq.s32.totalorder %s20, 0
    %p219 = por %p217, %p218
    %p220 = scmp.ne.s32.totalorder %s206, %s207
    %p221 = scmp.eq.s32.totalorder %s21, 1
    %p222 = por %p220, %p221
    %p224 = scmp.ne.s32.totalorder %s207, %s223
    %p225 = scmp.eq.s32.totalorder %s21, 0
    %p226 = por %p224, %p225
    %p227 = scmp.le.s32.totalorder 1, %s15
    %p228 = scmp.lt.s32.totalorder %s15, 3
    %p229 = pnand %p227, %p228
    %p230 = pneg %p229
    // Predicated region
    $region9: #{blend_block_forward.4} parent=5 // pred_check
      _
    $region10: #{blend_block_forward.4} parent=5 // pred_check_branch
      %232 = sbr.rel (%p229) target = $region12
    $region11: #{blend_block_forward.4} parent=5 // pred_region
      %s233 = ssub.s32 %s15, 1
      // Predicated region
      $region13: #{blend_block_forward.4} parent=11 // pred_check
        %p234 = pneg %p36
      $region14: #{blend_block_forward.4} parent=11 // pred_check_branch
        %236 = sbr.rel (%p234) target = $region16
      $region15: #{blend_block_forward.4} parent=11 // pred_region
        _
      $region16: #{blend_block_forward.4} parent=11 // pred_fallthru
        _
      // Predicated region
      $region17: #{blend_block_forward.4} parent=11 // pred_check
        %p237 = pneg %p57
      $region18: #{blend_block_forward.4} parent=11 // pred_check_branch
        %239 = sbr.rel (%p237) target = $region20
      $region19: #{blend_block_forward.4} parent=11 // pred_region
        _
      $region20: #{blend_block_forward.4} parent=11 // pred_fallthru
        _
      // Predicated region
      $region21: #{blend_block_forward.4} parent=11 // pred_check
        %p240 = pneg %p104
      $region22: #{blend_block_forward.4} parent=11 // pred_check_branch
        %242 = sbr.rel (%p240) target = $region24
      $region23: #{blend_block_forward.4} parent=11 // pred_region
        _
      $region24: #{blend_block_forward.4} parent=11 // pred_fallthru
        _
      // Predicated region
      $region25: #{blend_block_forward.4} parent=11 // pred_check
        %p243 = pneg %p125
      $region26: #{blend_block_forward.4} parent=11 // pred_check_branch
        %245 = sbr.rel (%p243) target = $region28
      $region27: #{blend_block_forward.4} parent=11 // pred_region
        _
      $region28: #{blend_block_forward.4} parent=11 // pred_fallthru
        _
      // Predicated region
      $region29: #{blend_block_forward.4} parent=11 // pred_check
        %p246 = pneg %p146
      $region30: #{blend_block_forward.4} parent=11 // pred_check_branch
        %248 = sbr.rel (%p246) target = $region32
      $region31: #{blend_block_forward.4} parent=11 // pred_region
        _
      $region32: #{blend_block_forward.4} parent=11 // pred_fallthru
        _
      // Predicated region
      $region33: #{blend_block_forward.4} parent=11 // pred_check
        %p249 = pneg %p167
      $region34: #{blend_block_forward.4} parent=11 // pred_check_branch
        %251 = sbr.rel (%p249) target = $region36
      $region35: #{blend_block_forward.4} parent=11 // pred_region
        _
      $region36: #{blend_block_forward.4} parent=11 // pred_fallthru
        _
    $region12: #{blend_block_forward.4} parent=5 // pred_fallthru
      _
    %p252 = scmp.lt.s32.totalorder %s15, 2
    // Predicated region
    $region37: #{blend_block_forward.4} parent=5 // pred_check
      %p253 = pneg %p252
    $region38: #{blend_block_forward.4} parent=5 // pred_check_branch
      %255 = sbr.rel (%p253) target = $region40
    $region39: #{blend_block_forward.4} parent=5 // pred_region
      // Predicated region
      $region41: #{blend_block_forward.4} parent=39 // pred_check
        %p256 = pneg %p77
      $region42: #{blend_block_forward.4} parent=39 // pred_check_branch
        %258 = sbr.rel (%p256) target = $region44
      $region43: #{blend_block_forward.4} parent=39 // pred_region
        %p259 = scmp.lt.s32.totalorder %s15, 1
        %s260 = scalar_select %p259, %s15, 1
        %s261 = smul.addr %s260, 32
        %s262 = smul.addr %s261, 4
        %s263 = scalar_lea.vmem %s2, %s262
      $region44: #{blend_block_forward.4} parent=39 // pred_fallthru
        _
    $region40: #{blend_block_forward.4} parent=5 // pred_fallthru
      _
    %p264 = scmp.le.s32.totalorder 1, %s15
    %p265 = scmp.lt.s32.totalorder %s15, 3
    %p266 = pnand %p264, %p265
    %p267 = pneg %p266
    // Predicated region
    $region45: #{blend_block_forward.4} parent=5 // pred_check
      _
    $region46: #{blend_block_forward.4} parent=5 // pred_check_branch
      %269 = sbr.rel (%p266) target = $region48
    $region47: #{blend_block_forward.4} parent=5 // pred_region
      %s270 = ssub.s32 %s15, 1
      %p271 = pneg %p36
      %p272 = pneg %p33
      %p273 = pneg %p57
      %p274 = pneg %p54
      %p275 = scmp.lt.s32.totalorder %s20, 1
      %s276 = scalar_select %p275, %s20, 1
      %s277 = smul.addr %s276, 32
      %s278 = smul.addr %s277, 4
      %s279 = scalar_lea.vmem %s2, %s278
      %p280 = pneg %p83
      %p281 = pneg %p80
      %p282 = pneg %p104
      %p283 = pneg %p101
      %p284 = pneg %p125
      %p285 = pneg %p122
      %p286 = pneg %p146
      %p287 = pneg %p143
      %p288 = pneg %p167
      %p289 = pneg %p164
      %p290 = pneg %p193
      %p291 = pneg %p190
      %p292 = scmp.lt.s32.totalorder %s20, 1
      %s293 = scalar_select %p292, %s20, 1
      %s294 = smul.addr %s293, 2
      %s295 = smul.addr %s294, 2
      %s296 = scalar_lea.vmem %s7, %s295
      %p297 = pneg %p219
      %p298 = pneg %p216
      %p299 = scmp.lt.s32.totalorder %s20, 1
      %s300 = scalar_select %p299, %s20, 1
      %s301 = smul.addr %s300, 4
      %s302 = scalar_lea.vmem %s8, %s301
      %p303 = scmp.lt.s32.totalorder %s20, 1
      %s304 = scalar_select %p303, %s20, 1
      %s305 = smul.addr %s304, 32
      %s306 = smul.addr %s305, 4
      %s307 = scalar_lea.vmem %s2, %s306
      %p308 = scmp.lt.s32.totalorder %s20, 1
      %s309 = scalar_select %p308, %s20, 1
      %s310 = smul.addr %s309, 2
      %s311 = smul.addr %s310, 2
      %s312 = scalar_lea.vmem %s7, %s311
      %p313 = scmp.lt.s32.totalorder %s20, 1
      %s314 = scalar_select %p313, %s20, 1
      %s315 = smul.addr %s314, 4
      %s316 = scalar_lea.vmem %s8, %s315
      %v318 = vld [vmem:[%s307] sm:$0xf]
      %v319 = vld [vmem:[%s307 + $0x4] sm:$0xf]
      %v320 = vld [vmem:[%s307 + $0x8] sm:$0xf]
      %v321 = vld [vmem:[%s307 + $0xc] sm:$0xf]
      %v322 = vld [vmem:[%s307 + $0x10] sm:$0xf]
      %v323 = vld [vmem:[%s307 + $0x14] sm:$0xf]
      %v324 = vld [vmem:[%s307 + $0x18] sm:$0xf]
      %v325 = vld [vmem:[%s307 + $0x1c] sm:$0xf]
      %v326 = vld [vmem:[%s307 + $0x20] sm:$0xf]
      %v327 = vld [vmem:[%s307 + $0x24] sm:$0xf]
      %v328 = vld [vmem:[%s307 + $0x28] sm:$0xf]
      %v329 = vld [vmem:[%s307 + $0x2c] sm:$0xf]
      %v330 = vld [vmem:[%s307 + $0x30] sm:$0xf]
      %v331 = vld [vmem:[%s307 + $0x34] sm:$0xf]
      %v332 = vld [vmem:[%s307 + $0x38] sm:$0xf]
      %v333 = vld [vmem:[%s307 + $0x3c] sm:$0xf]
      %v334 = vld [vmem:[%s307 + $0x40] sm:$0xf]
      %v335 = vld [vmem:[%s307 + $0x44] sm:$0xf]
      %v336 = vld [vmem:[%s307 + $0x48] sm:$0xf]
      %v337 = vld [vmem:[%s307 + $0x4c] sm:$0xf]
      %v338 = vld [vmem:[%s307 + $0x50] sm:$0xf]
      %v339 = vld [vmem:[%s307 + $0x54] sm:$0xf]
      %v340 = vld [vmem:[%s307 + $0x58] sm:$0xf]
      %v341 = vld [vmem:[%s307 + $0x5c] sm:$0xf]
      %v342 = vld [vmem:[%s307 + $0x60] sm:$0xf]
      %v343 = vld [vmem:[%s307 + $0x64] sm:$0xf]
      %v344 = vld [vmem:[%s307 + $0x68] sm:$0xf]
      %v345 = vld [vmem:[%s307 + $0x6c] sm:$0xf]
      %v346 = vld [vmem:[%s307 + $0x70] sm:$0xf]
      %v347 = vld [vmem:[%s307 + $0x74] sm:$0xf]
      %v348 = vld [vmem:[%s307 + $0x78] sm:$0xf]
      %v349 = vld [vmem:[%s307 + $0x7c] sm:$0xf]
      %v350 = vld [vmem:[%s3] sm:$0xf]
      %v351 = vld [vmem:[%s4] sm:$0x1]
      %v353 = vlaneseq
      %v354 = vshrl.u32 %v353, 7
      %v355 = vsub.s32 0, %v354
      %v356 = vrot.slane %v351, %v355
      %v390 = vunpack.c.l.b16 %v318
      %v391 = vunpack.c.l.b16 %v319
      %v392 = vunpack.c.l.b16 %v320
      %v393 = vunpack.c.l.b16 %v321
      %v394 = vunpack.c.l.b16 %v322
      %v395 = vunpack.c.l.b16 %v323
      %v396 = vunpack.c.l.b16 %v324
      %v397 = vunpack.c.l.b16 %v325
      %v398 = vunpack.c.l.b16 %v326
      %v399 = vunpack.c.l.b16 %v327
      %v400 = vunpack.c.l.b16 %v328
      %v401 = vunpack.c.l.b16 %v329
      %v402 = vunpack.c.l.b16 %v330
      %v403 = vunpack.c.l.b16 %v331
      %v404 = vunpack.c.l.b16 %v332
      %v405 = vunpack.c.l.b16 %v333
      %v406 = vunpack.c.l.b16 %v334
      %v407 = vunpack.c.l.b16 %v335
      %v408 = vunpack.c.l.b16 %v336
      %v409 = vunpack.c.l.b16 %v337
      %v410 = vunpack.c.l.b16 %v338
      %v411 = vunpack.c.l.b16 %v339
      %v412 = vunpack.c.l.b16 %v340
      %v413 = vunpack.c.l.b16 %v341
      %v414 = vunpack.c.l.b16 %v342
      %v415 = vunpack.c.l.b16 %v343
      %v416 = vunpack.c.l.b16 %v344
      %v417 = vunpack.c.l.b16 %v345
      %v418 = vunpack.c.l.b16 %v346
      %v419 = vunpack.c.l.b16 %v347
      %v420 = vunpack.c.l.b16 %v348
      %v421 = vunpack.c.l.b16 %v349
      %v422 = vpack.c.b16 %v391, %v390
      %v423 = vpack.c.b16 %v393, %v392
      %v424 = vpack.c.b16 %v395, %v394
      %v425 = vpack.c.b16 %v397, %v396
      %v426 = vpack.c.b16 %v399, %v398
      %v427 = vpack.c.b16 %v401, %v400
      %v428 = vpack.c.b16 %v403, %v402
      %v429 = vpack.c.b16 %v405, %v404
      %v430 = vpack.c.b16 %v407, %v406
      %v431 = vpack.c.b16 %v409, %v408
      %v432 = vpack.c.b16 %v411, %v410
      %v433 = vpack.c.b16 %v413, %v412
      %v434 = vpack.c.b16 %v415, %v414
      %v435 = vpack.c.b16 %v417, %v416
      %v436 = vpack.c.b16 %v419, %v418
      %v437 = vpack.c.b16 %v421, %v420
      %vm438 = vcmask 64512
      %v440 = vsel %vm438, %v422, 0
      %v443 = vsel %vm438, %v423, 0
      %v446 = vsel %vm438, %v424, 0
      %v449 = vsel %vm438, %v425, 0
      %v452 = vsel %vm438, %v426, 0
      %v455 = vsel %vm438, %v427, 0
      %v458 = vsel %vm438, %v428, 0
      %v461 = vsel %vm438, %v429, 0
      %v464 = vsel %vm438, %v430, 0
      %v467 = vsel %vm438, %v431, 0
      %v470 = vsel %vm438, %v432, 0
      %v473 = vsel %vm438, %v433, 0
      %v476 = vsel %vm438, %v434, 0
      %v479 = vsel %vm438, %v435, 0
      %v482 = vsel %vm438, %v436, 0
      %v485 = vsel %vm438, %v437, 0
      %vm487 = vcmask 1043456
      %v489 = vsel %vm487, %v350, 0
      %491 = vmatprep.subr.bf16.mxu0 0
      %492 = vmatpush1.bf16.msra.mxu0 %v489
      %493 = vmatprep.subr.bf16.mxu0 0
      %494 = vmatpush1.bf16.msra.mxu0 0
      %495 = vmatprep.subr.bf16.mxu0 0
      %496 = vmatpush1.bf16.msra.mxu0 0
      %497 = vmatprep.subr.bf16.mxu0 0
      %498 = vmatpush1.bf16.msra.mxu0 0
      %499 = vmatprep.subr.bf16.mxu0 0
      %500 = vmatpush1.bf16.msra.mxu0 0
      %501 = vmatprep.subr.bf16.mxu0 0
      %502 = vmatpush1.bf16.msra.mxu0 0
      %503 = vmatprep.subr.bf16.mxu0 0
      %504 = vmatpush1.bf16.msra.mxu0 0
      %505 = vmatprep.subr.bf16.mxu0 0
      %506 = vmatpush1.bf16.msra.mxu0 0
      %507 = vmatprep.subr.bf16.mxu0 0
      %508 = vmatpush1.bf16.msra.mxu0 0
      %509 = vmatprep.subr.bf16.mxu0 0
      %510 = vmatpush1.bf16.msra.mxu0 0
      %511 = vmatprep.subr.bf16.mxu0 0
      %512 = vmatpush1.bf16.msra.mxu0 0
      %513 = vmatprep.subr.bf16.mxu0 0
      %514 = vmatpush1.bf16.msra.mxu0 0
      %515 = vmatprep.subr.bf16.mxu0 0
      %516 = vmatpush1.bf16.msra.mxu0 0
      %517 = vmatprep.subr.bf16.mxu0 0
      %518 = vmatpush1.bf16.msra.mxu0 0
      %519 = vmatprep.subr.bf16.mxu0 0
      %520 = vmatpush1.bf16.msra.mxu0 0
      %521 = vmatprep.subr.bf16.mxu0 0
      %522 = vmatpush1.bf16.msra.mxu0 0
      %523 = vmatprep.mubr.bf16.mxu0 0
      %524 = vmatmul.mubr.bf16.gmra.mrb[0].mxu0 %v440
      %v525 = vpop.f32.mrb[0].mxu0
      %v526 = vadd.f32 %v356, %v525
      %v527 = vpop.f32.mrb[0].mxu0
      %v528 = vpop.f32.mrb[0].mxu0
      %v529 = vadd.f32 %v356, %v528
      %v530 = vpop.f32.mrb[0].mxu0
      %531 = vmatprep.mubr.bf16.mxu0 0
      %532 = vmatmul.mubr.bf16.gmra.mrb[0].mxu0 %v443
      %v533 = vpop.f32.mrb[0].mxu0
      %v534 = vadd.f32 %v356, %v533
      %v535 = vpop.f32.mrb[0].mxu0
      %v536 = vpop.f32.mrb[0].mxu0
      %v537 = vadd.f32 %v356, %v536
      %v538 = vpop.f32.mrb[0].mxu0
      %539 = vmatprep.mubr.bf16.mxu0 0
      %540 = vmatmul.mubr.bf16.gmra.mrb[0].mxu0 %v446
      %v541 = vpop.f32.mrb[0].mxu0
      %v542 = vadd.f32 %v356, %v541
      %v543 = vpop.f32.mrb[0].mxu0
      %v544 = vpop.f32.mrb[0].mxu0
      %v545 = vadd.f32 %v356, %v544
      %v546 = vpop.f32.mrb[0].mxu0
      %547 = vmatprep.mubr.bf16.mxu0 0
      %548 = vmatmul.mubr.bf16.gmra.mrb[0].mxu0 %v449
      %v549 = vpop.f32.mrb[0].mxu0
      %v550 = vadd.f32 %v356, %v549
      %v551 = vpop.f32.mrb[0].mxu0
      %v552 = vpop.f32.mrb[0].mxu0
      %v553 = vadd.f32 %v356, %v552
      %v554 = vpop.f32.mrb[0].mxu0
      %555 = vmatprep.mubr.bf16.mxu0 0
      %556 = vmatmul.mubr.bf16.gmra.mrb[0].mxu0 %v452
      %v557 = vpop.f32.mrb[0].mxu0
      %v558 = vadd.f32 %v356, %v557
      %v559 = vpop.f32.mrb[0].mxu0
      %v560 = vpop.f32.mrb[0].mxu0
      %v561 = vadd.f32 %v356, %v560
      %v562 = vpop.f32.mrb[0].mxu0
      %563 = vmatprep.mubr.bf16.mxu0 0
      %564 = vmatmul.mubr.bf16.gmra.mrb[0].mxu0 %v455
      %v565 = vpop.f32.mrb[0].mxu0
      %v566 = vadd.f32 %v356, %v565
      %v567 = vpop.f32.mrb[0].mxu0
      %v568 = vpop.f32.mrb[0].mxu0
      %v569 = vadd.f32 %v356, %v568
      %v570 = vpop.f32.mrb[0].mxu0
      %571 = vmatprep.mubr.bf16.mxu0 0
      %572 = vmatmul.mubr.bf16.gmra.mrb[0].mxu0 %v458
      %v573 = vpop.f32.mrb[0].mxu0
      %v574 = vadd.f32 %v356, %v573
      %v575 = vpop.f32.mrb[0].mxu0
      %v576 = vpop.f32.mrb[0].mxu0
      %v577 = vadd.f32 %v356, %v576
      %v578 = vpop.f32.mrb[0].mxu0
      %579 = vmatprep.mubr.bf16.mxu0 0
      %580 = vmatmul.mubr.bf16.gmra.mrb[0].mxu0 %v461
      %v581 = vpop.f32.mrb[0].mxu0
      %v582 = vadd.f32 %v356, %v581
      %v583 = vpop.f32.mrb[0].mxu0
      %v584 = vpop.f32.mrb[0].mxu0
      %v585 = vadd.f32 %v356, %v584
      %v586 = vpop.f32.mrb[0].mxu0
      %587 = vmatprep.mubr.bf16.mxu0 0
      %588 = vmatmul.mubr.bf16.gmra.mrb[0].mxu0 %v464
      %v589 = vpop.f32.mrb[0].mxu0
      %v590 = vadd.f32 %v356, %v589
      %v591 = vpop.f32.mrb[0].mxu0
      %v592 = vpop.f32.mrb[0].mxu0
      %v593 = vadd.f32 %v356, %v592
      %v594 = vpop.f32.mrb[0].mxu0
      %595 = vmatprep.mubr.bf16.mxu0 0
      %596 = vmatmul.mubr.bf16.gmra.mrb[0].mxu0 %v467
      %v597 = vpop.f32.mrb[0].mxu0
      %v598 = vadd.f32 %v356, %v597
      %v599 = vpop.f32.mrb[0].mxu0
      %v600 = vpop.f32.mrb[0].mxu0
      %v601 = vadd.f32 %v356, %v600
      %v602 = vpop.f32.mrb[0].mxu0
      %603 = vmatprep.mubr.bf16.mxu0 0
      %604 = vmatmul.mubr.bf16.gmra.mrb[0].mxu0 %v470
      %v605 = vpop.f32.mrb[0].mxu0
      %v606 = vadd.f32 %v356, %v605
      %v607 = vpop.f32.mrb[0].mxu0
      %v608 = vpop.f32.mrb[0].mxu0
      %v609 = vadd.f32 %v356, %v608
      %v610 = vpop.f32.mrb[0].mxu0
      %611 = vmatprep.mubr.bf16.mxu0 0
      %612 = vmatmul.mubr.bf16.gmra.mrb[0].mxu0 %v473
      %v613 = vpop.f32.mrb[0].mxu0
      %v614 = vadd.f32 %v356, %v613
      %v615 = vpop.f32.mrb[0].mxu0
      %v616 = vpop.f32.mrb[0].mxu0
      %v617 = vadd.f32 %v356, %v616
      %v618 = vpop.f32.mrb[0].mxu0
      %619 = vmatprep.mubr.bf16.mxu0 0
      %620 = vmatmul.mubr.bf16.gmra.mrb[0].mxu0 %v476
      %v621 = vpop.f32.mrb[0].mxu0
      %v622 = vadd.f32 %v356, %v621
      %v623 = vpop.f32.mrb[0].mxu0
      %v624 = vpop.f32.mrb[0].mxu0
      %v625 = vadd.f32 %v356, %v624
      %v626 = vpop.f32.mrb[0].mxu0
      %627 = vmatprep.mubr.bf16.mxu0 0
      %628 = vmatmul.mubr.bf16.gmra.mrb[0].mxu0 %v479
      %v629 = vpop.f32.mrb[0].mxu0
      %v630 = vadd.f32 %v356, %v629
      %v631 = vpop.f32.mrb[0].mxu0
      %v632 = vpop.f32.mrb[0].mxu0
      %v633 = vadd.f32 %v356, %v632
      %v634 = vpop.f32.mrb[0].mxu0
      %635 = vmatprep.mubr.bf16.mxu0 0
      %636 = vmatmul.mubr.bf16.gmra.mrb[0].mxu0 %v482
      %v637 = vpop.f32.mrb[0].mxu0
      %v638 = vadd.f32 %v356, %v637
      %v639 = vpop.f32.mrb[0].mxu0
      %v640 = vpop.f32.mrb[0].mxu0
      %v641 = vadd.f32 %v356, %v640
      %v642 = vpop.f32.mrb[0].mxu0
      %643 = vmatprep.mubr.bf16.mxu0 0
      %644 = vmatmul.mubr.bf16.gmra.mrb[0].mxu0 %v485
      %v645 = vpop.f32.mrb[0].mxu0
      %v646 = vadd.f32 %v356, %v645
      %v647 = vpop.f32.mrb[0].mxu0
      %v648 = vpop.f32.mrb[0].mxu0
      %v649 = vadd.f32 %v356, %v648
      %v650 = vpop.f32.mrb[0].mxu0
      %651 = vdwg.mxu0
      %v652 = vld [vmem:[%s0] sm:$0x3]
      %v653 = vld [vmem:[%s0 + $0x2] sm:$0x3]
      %vm654 = vcmask 253952
      %v655 = vsel %vm654, %v652, 0.0
      %v656 = vsel %vm654, %v653, 0.0
      %v657 = vadd.f32 %v655, %v656
      %vm658 = vcmask 254977
      %v659 = vsel %vm658, %v652, 0.0
      %v660 = vsel %vm658, %v653, 0.0
      %v661 = vadd.f32 %v659, %v660
      %v662 = vld [vmem:[%s1] sm:$0x1]
      %v663 = vld [vmem:[%s1 + $0x1] sm:$0x1]
      %v664 = vmul.f32 %v657, 0.001953125
      %v665 = vmul.f32 %v661, 0.001953125
      %v666 = vmul.f32 %v664, %v664
      %v668 = vrot.slane %v666, 7
      %v670 = vsub.f32 %v665, %v668
      %v671 = vmax.f32 %v670, 0.0
      %v672 = vadd.f32 %v671, 1e-05
      %v673 = vrsqrt.pop %v672
      %v675 = vrot.slane %v673, 1
      %v677 = vmul.f32 %v662, %v675
      %v678 = vmul.f32 %v664, %v677
      %v679 = vsub.f32 %v663, %v678
      %v680 = vlaneseq
      %v681 = vshrl.u32 %v680, 7
      %v682 = vsub.s32 0, %v681
      %v683 = vrot.slane %v677, %v682
      %v684 = vmul.f32 %v526, %v683
      %v685 = vmul.f32 %v529, %v683
      %v686 = vmul.f32 %v534, %v683
      %v687 = vmul.f32 %v537, %v683
      %v688 = vmul.f32 %v542, %v683
      %v689 = vmul.f32 %v545, %v683
      %v690 = vmul.f32 %v550, %v683
      %v691 = vmul.f32 %v553, %v683
      %v692 = vmul.f32 %v558, %v683
      %v693 = vmul.f32 %v561, %v683
      %v694 = vmul.f32 %v566, %v683
      %v695 = vmul.f32 %v569, %v683
      %v696 = vmul.f32 %v574, %v683
      %v697 = vmul.f32 %v577, %v683
      %v698 = vmul.f32 %v582, %v683
      %v699 = vmul.f32 %v585, %v683
      %v700 = vmul.f32 %v590, %v683
      %v701 = vmul.f32 %v593, %v683
      %v702 = vmul.f32 %v598, %v683
      %v703 = vmul.f32 %v601, %v683
      %v704 = vmul.f32 %v606, %v683
      %v705 = vmul.f32 %v609, %v683
      %v706 = vmul.f32 %v614, %v683
      %v707 = vmul.f32 %v617, %v683
      %v708 = vmul.f32 %v622, %v683
      %v709 = vmul.f32 %v625, %v683
      %v710 = vmul.f32 %v630, %v683
      %v711 = vmul.f32 %v633, %v683
      %v712 = vmul.f32 %v638, %v683
      %v713 = vmul.f32 %v641, %v683
      %v714 = vmul.f32 %v646, %v683
      %v715 = vmul.f32 %v649, %v683
      %v716 = vlaneseq
      %v717 = vshrl.u32 %v716, 7
      %v718 = vsub.s32 0, %v717
      %v719 = vrot.slane %v679, %v718
      %v720 = vadd.f32 %v684, %v719
      %v721 = vadd.f32 %v685, %v719
      %v722 = vadd.f32 %v686, %v719
      %v723 = vadd.f32 %v687, %v719
      %v724 = vadd.f32 %v688, %v719
      %v725 = vadd.f32 %v689, %v719
      %v726 = vadd.f32 %v690, %v719
      %v727 = vadd.f32 %v691, %v719
      %v728 = vadd.f32 %v692, %v719
      %v729 = vadd.f32 %v693, %v719
      %v730 = vadd.f32 %v694, %v719
      %v731 = vadd.f32 %v695, %v719
      %v732 = vadd.f32 %v696, %v719
      %v733 = vadd.f32 %v697, %v719
      %v734 = vadd.f32 %v698, %v719
      %v735 = vadd.f32 %v699, %v719
      %v736 = vadd.f32 %v700, %v719
      %v737 = vadd.f32 %v701, %v719
      %v738 = vadd.f32 %v702, %v719
      %v739 = vadd.f32 %v703, %v719
      %v740 = vadd.f32 %v704, %v719
      %v741 = vadd.f32 %v705, %v719
      %v742 = vadd.f32 %v706, %v719
      %v743 = vadd.f32 %v707, %v719
      %v744 = vadd.f32 %v708, %v719
      %v745 = vadd.f32 %v709, %v719
      %v746 = vadd.f32 %v710, %v719
      %v747 = vadd.f32 %v711, %v719
      %v748 = vadd.f32 %v712, %v719
      %v749 = vadd.f32 %v713, %v719
      %v750 = vadd.f32 %v714, %v719
      %v751 = vadd.f32 %v715, %v719
      %v752 = vmul.f32 %v720, 0.2
      %v753 = vmul.f32 %v721, 0.2
      %v754 = vmul.f32 %v722, 0.2
      %v755 = vmul.f32 %v723, 0.2
      %v756 = vmul.f32 %v724, 0.2
      %v757 = vmul.f32 %v725, 0.2
      %v758 = vmul.f32 %v726, 0.2
      %v759 = vmul.f32 %v727, 0.2
      %v760 = vmul.f32 %v728, 0.2
      %v761 = vmul.f32 %v729, 0.2
      %v762 = vmul.f32 %v730, 0.2
      %v763 = vmul.f32 %v731, 0.2
      %v764 = vmul.f32 %v732, 0.2
      %v765 = vmul.f32 %v733, 0.2
      %v766 = vmul.f32 %v734, 0.2
      %v767 = vmul.f32 %v735, 0.2
      %v768 = vmul.f32 %v736, 0.2
      %v769 = vmul.f32 %v737, 0.2
      %v770 = vmul.f32 %v738, 0.2
      %v771 = vmul.f32 %v739, 0.2
      %v772 = vmul.f32 %v740, 0.2
      %v773 = vmul.f32 %v741, 0.2
      %v774 = vmul.f32 %v742, 0.2
      %v775 = vmul.f32 %v743, 0.2
      %v776 = vmul.f32 %v744, 0.2
      %v777 = vmul.f32 %v745, 0.2
      %v778 = vmul.f32 %v746, 0.2
      %v779 = vmul.f32 %v747, 0.2
      %v780 = vmul.f32 %v748, 0.2
      %v781 = vmul.f32 %v749, 0.2
      %v782 = vmul.f32 %v750, 0.2
      %v783 = vmul.f32 %v751, 0.2
      %v784 = vmax.f32 %v720, %v752
      %v785 = vmax.f32 %v721, %v753
      %v786 = vmax.f32 %v722, %v754
      %v787 = vmax.f32 %v723, %v755
      %v788 = vmax.f32 %v724, %v756
      %v789 = vmax.f32 %v725, %v757
      %v790 = vmax.f32 %v726, %v758
      %v791 = vmax.f32 %v727, %v759
      %v792 = vmax.f32 %v728, %v760
      %v793 = vmax.f32 %v729, %v761
      %v794 = vmax.f32 %v730, %v762
      %v795 = vmax.f32 %v731, %v763
      %v796 = vmax.f32 %v732, %v764
      %v797 = vmax.f32 %v733, %v765
      %v798 = vmax.f32 %v734, %v766
      %v799 = vmax.f32 %v735, %v767
      %v800 = vmax.f32 %v736, %v768
      %v801 = vmax.f32 %v737, %v769
      %v802 = vmax.f32 %v738, %v770
      %v803 = vmax.f32 %v739, %v771
      %v804 = vmax.f32 %v740, %v772
      %v805 = vmax.f32 %v741, %v773
      %v806 = vmax.f32 %v742, %v774
      %v807 = vmax.f32 %v743, %v775
      %v808 = vmax.f32 %v744, %v776
      %v809 = vmax.f32 %v745, %v777
      %v810 = vmax.f32 %v746, %v778
      %v811 = vmax.f32 %v747, %v779
      %v812 = vmax.f32 %v748, %v780
      %v813 = vmax.f32 %v749, %v781
      %v814 = vmax.f32 %v750, %v782
      %v815 = vmax.f32 %v751, %v783
      %vm816 = vcmask 257024
      %817 = vst.msk [vmem:[#allocation2] sm:$0xf] %vm816, 0
      %818 = vst.msk [vmem:[#allocation2 + $0x4] sm:$0xf] %vm816, 0
      %819 = vst.msk [vmem:[#allocation2 + $0x8] sm:$0x1] %vm654, 0
      %820 = vst.msk [vmem:[#allocation2 + $0xc] sm:$0xf] %vm816, 0
      %821 = vst.msk [vmem:[#allocation2 + $0x10] sm:$0xf] %vm816, 0
      %822 = vst.msk [vmem:[#allocation2 + $0x14] sm:$0x1] %vm654, 0
      %823 = vst.msk [vmem:[#allocation2 + $0x18] sm:$0xf] %vm816, 0
      %824 = vst.msk [vmem:[#allocation2 + $0x1c] sm:$0xf] %vm816, 0
      %825 = vst.msk [vmem:[#allocation2 + $0x20] sm:$0x1] %vm654, 0
      %826 = vst.msk [vmem:[#allocation2 + $0x24] sm:$0xf] %vm816, 0
      %827 = vst.msk [vmem:[#allocation2 + $0x28] sm:$0xf] %vm816, 0
      %828 = vst.msk [vmem:[#allocation2 + $0x2c] sm:$0x1] %vm654, 0
      %829 = vst.msk [vmem:[#allocation2 + $0x30] sm:$0xf] %vm816, 0
      %830 = vst.msk [vmem:[#allocation2 + $0x34] sm:$0xf] %vm816, 0
      %831 = vst.msk [vmem:[#allocation2 + $0x38] sm:$0x1] %vm654, 0
      %832 = vst.msk [vmem:[#allocation2 + $0x3c] sm:$0xf] %vm816, 0
      %833 = vst.msk [vmem:[#allocation2 + $0x40] sm:$0xf] %vm816, 0
      %834 = vst.msk [vmem:[#allocation2 + $0x44] sm:$0x1] %vm654, 0
      %835 = vst.msk [vmem:[#allocation2 + $0x48] sm:$0xf] %vm816, 0
      %836 = vst.msk [vmem:[#allocation2 + $0x4c] sm:$0xf] %vm816, 0
      %837 = vst.msk [vmem:[#allocation2 + $0x50] sm:$0x1] %vm654, 0
      %838 = vst.msk [vmem:[#allocation2 + $0x54] sm:$0xf] %vm816, 0
      %839 = vst.msk [vmem:[#allocation2 + $0x58] sm:$0xf] %vm816, 0
      %840 = vst.msk [vmem:[#allocation2 + $0x5c] sm:$0x1] %vm654, 0
      %841 = vst.msk [vmem:[#allocation2 + $0x60] sm:$0xf] %vm816, 0
      %842 = vst.msk [vmem:[#allocation2 + $0x64] sm:$0xf] %vm816, 0
      %843 = vst.msk [vmem:[#allocation2 + $0x68] sm:$0x1] %vm654, 0
      %844 = vst.msk [vmem:[#allocation2 + $0x6c] sm:$0xf] %vm816, 0
      %845 = vst.msk [vmem:[#allocation2 + $0x70] sm:$0xf] %vm816, 0
      %846 = vst.msk [vmem:[#allocation2 + $0x74] sm:$0x1] %vm654, 0
      %847 = vst.msk [vmem:[#allocation2 + $0x78] sm:$0xf] %vm816, 0
      %848 = vst.msk [vmem:[#allocation2 + $0x7c] sm:$0xf] %vm816, 0
      %849 = vst.msk [vmem:[#allocation2 + $0x80] sm:$0x1] %vm654, 0
      %850 = vst.msk [vmem:[#allocation2 + $0x84] sm:$0xf] %vm816, 0
      %851 = vst.msk [vmem:[#allocation2 + $0x88] sm:$0xf] %vm816, 0
      %852 = vst.msk [vmem:[#allocation2 + $0x8c] sm:$0x1] %vm654, 0
      %853 = vst.msk [vmem:[#allocation2 + $0x90] sm:$0xf] %vm816, 0
      %854 = vst.msk [vmem:[#allocation2 + $0x94] sm:$0xf] %vm816, 0
      %855 = vst.msk [vmem:[#allocation2 + $0x98] sm:$0x1] %vm654, 0
      %856 = vst.msk [vmem:[#allocation2 + $0x9c] sm:$0xf] %vm816, 0
      %857 = vst.msk [vmem:[#allocation2 + $0xa0] sm:$0xf] %vm816, 0
      %858 = vst.msk [vmem:[#allocation2 + $0xa4] sm:$0x1] %vm654, 0
      %859 = vst.msk [vmem:[#allocation2 + $0xa8] sm:$0xf] %vm816, 0
      %860 = vst.msk [vmem:[#allocation2 + $0xac] sm:$0xf] %vm816, 0
      %861 = vst.msk [vmem:[#allocation2 + $0xb0] sm:$0x1] %vm654, 0
      %862 = vst.msk [vmem:[#allocation2 + $0xb4] sm:$0xf] %vm816, 0
      %863 = vst.msk [vmem:[#allocation2 + $0xb8] sm:$0xf] %vm816, 0
      %864 = vst.msk [vmem:[#allocation2 + $0xbc] sm:$0x1] %vm654, 0
      %865 = vst.msk [vmem:[#allocation2 + $0xc0] sm:$0xf] %vm816, 0
      %866 = vst.msk [vmem:[#allocation2 + $0xc4] sm:$0xf] %vm816, 0
      %867 = vst.msk [vmem:[#allocation2 + $0xc8] sm:$0x1] %vm654, 0
      %868 = vst.msk [vmem:[#allocation2 + $0xcc] sm:$0xf] %vm816, 0
      %869 = vst.msk [vmem:[#allocation2 + $0xd0] sm:$0xf] %vm816, 0
      %870 = vst.msk [vmem:[#allocation2 + $0xd4] sm:$0x1] %vm654, 0
      %v871 = vpack.c.bf16 %v785, %v784
      %v872 = vpack.c.bf16 %v787, %v786
      %v873 = vpack.c.bf16 %v789, %v788
      %v874 = vpack.c.bf16 %v791, %v790
      %v875 = vpack.c.bf16 %v793, %v792
      %v876 = vpack.c.bf16 %v795, %v794
      %v877 = vpack.c.bf16 %v797, %v796
      %v878 = vpack.c.bf16 %v799, %v798
      %v879 = vpack.c.bf16 %v801, %v800
      %v880 = vpack.c.bf16 %v803, %v802
      %v881 = vpack.c.bf16 %v805, %v804
      %v882 = vpack.c.bf16 %v807, %v806
      %v883 = vpack.c.bf16 %v809, %v808
      %v884 = vpack.c.bf16 %v811, %v810
      %v885 = vpack.c.bf16 %v813, %v812
      %v886 = vpack.c.bf16 %v815, %v814
      %v903 = vunpack.c.l.b16 %v871
      %v904 = vunpack.c.h.b16 %v871
      %v905 = vunpack.c.l.b16 %v872
      %v906 = vunpack.c.h.b16 %v872
      %v907 = vunpack.c.l.b16 %v873
      %v908 = vunpack.c.h.b16 %v873
      %v909 = vunpack.c.l.b16 %v874
      %v910 = vunpack.c.h.b16 %v874
      %v911 = vunpack.c.l.b16 %v875
      %v912 = vunpack.c.h.b16 %v875
      %v913 = vunpack.c.l.b16 %v876
      %v914 = vunpack.c.h.b16 %v876
      %v915 = vunpack.c.l.b16 %v877
      %v916 = vunpack.c.h.b16 %v877
      %v917 = vunpack.c.l.b16 %v878
      %v918 = vunpack.c.h.b16 %v878
      %v919 = vunpack.c.l.b16 %v879
      %v920 = vunpack.c.h.b16 %v879
      %v921 = vunpack.c.l.b16 %v880
      %v922 = vunpack.c.h.b16 %v880
      %v923 = vunpack.c.l.b16 %v881
      %v924 = vunpack.c.h.b16 %v881
      %v925 = vunpack.c.l.b16 %v882
      %v926 = vunpack.c.h.b16 %v882
      %v927 = vunpack.c.l.b16 %v883
      %v928 = vunpack.c.h.b16 %v883
      %v929 = vunpack.c.l.b16 %v884
      %v930 = vunpack.c.h.b16 %v884
      %v931 = vunpack.c.l.b16 %v885
      %v932 = vunpack.c.h.b16 %v885
      %v933 = vunpack.c.l.b16 %v886
      %v934 = vunpack.c.h.b16 %v886
      %v935 = vpack.c.b16 %v903, %v903
      %v936 = vpack.c.b16 %v904, %v904
      %v937 = vpack.c.b16 %v905, %v905
      %v938 = vpack.c.b16 %v906, %v906
      %v939 = vpack.c.b16 %v907, %v907
      %v940 = vpack.c.b16 %v908, %v908
      %v941 = vpack.c.b16 %v909, %v909
      %v942 = vpack.c.b16 %v910, %v910
      %v943 = vpack.c.b16 %v911, %v911
      %v944 = vpack.c.b16 %v912, %v912
      %v945 = vpack.c.b16 %v913, %v913
      %v946 = vpack.c.b16 %v914, %v914
      %v947 = vpack.c.b16 %v915, %v915
      %v948 = vpack.c.b16 %v916, %v916
      %v949 = vpack.c.b16 %v917, %v917
      %v950 = vpack.c.b16 %v918, %v918
      %v951 = vpack.c.b16 %v919, %v919
      %v952 = vpack.c.b16 %v920, %v920
      %v953 = vpack.c.b16 %v921, %v921
      %v954 = vpack.c.b16 %v922, %v922
      %v955 = vpack.c.b16 %v923, %v923
      %v956 = vpack.c.b16 %v924, %v924
      %v957 = vpack.c.b16 %v925, %v925
      %v958 = vpack.c.b16 %v926, %v926
      %v959 = vpack.c.b16 %v927, %v927
      %v960 = vpack.c.b16 %v928, %v928
      %v961 = vpack.c.b16 %v929, %v929
      %v962 = vpack.c.b16 %v930, %v930
      %v963 = vpack.c.b16 %v931, %v931
      %v964 = vpack.c.b16 %v932, %v932
      %v965 = vpack.c.b16 %v933, %v933
      %v966 = vpack.c.b16 %v934, %v934
      %vm967 = vsmask.f32 256
      %vm968 = vsmask.f32 4368
      %vm969 = vmor %vm967, %vm968
      %v971 = vshrl.u32 %v935, 16
      %v973 = vrot.slane %v971, 7
      %v974 = vshll.u32 %v935, 16
      %v976 = vor.u32 %v973, %v974
      %v977 = vrot.slane %v973, 4
      %v979 = vshrl.u32 %v936, 16
      %v981 = vrot.slane %v979, 7
      %v982 = vshll.u32 %v936, 16
      %v984 = vor.u32 %v981, %v982
      %v985 = vsel %vm969, %v977, %v984
      %v986 = vrot.slane %v981, 4
      %v988 = vshrl.u32 %v937, 16
      %v990 = vrot.slane %v988, 7
      %v991 = vshll.u32 %v937, 16
      %v993 = vor.u32 %v990, %v991
      %v994 = vrot.slane %v990, 4
      %v996 = vshrl.u32 %v938, 16
      %v998 = vrot.slane %v996, 7
      %v999 = vshll.u32 %v938, 16
      %v1001 = vor.u32 %v998, %v999
      %v1002 = vsel %vm969, %v994, %v1001
      %v1003 = vrot.slane %v998, 4
      %v1005 = vshrl.u32 %v939, 16
      %v1007 = vrot.slane %v1005, 7
      %v1008 = vshll.u32 %v939, 16
      %v1010 = vor.u32 %v1007, %v1008
      %v1011 = vrot.slane %v1007, 4
      %v1013 = vshrl.u32 %v940, 16
      %v1015 = vrot.slane %v1013, 7
      %v1016 = vshll.u32 %v940, 16
      %v1018 = vor.u32 %v1015, %v1016
      %v1019 = vsel %vm969, %v1011, %v1018
      %v1020 = vrot.slane %v1015, 4
      %v1022 = vshrl.u32 %v941, 16
      %v1024 = vrot.slane %v1022, 7
      %v1025 = vshll.u32 %v941, 16
      %v1027 = vor.u32 %v1024, %v1025
      %v1028 = vrot.slane %v1024, 4
      %v1030 = vshrl.u32 %v942, 16
      %v1032 = vrot.slane %v1030, 7
      %v1033 = vshll.u32 %v942, 16
      %v1035 = vor.u32 %v1032, %v1033
      %v1036 = vsel %vm969, %v1028, %v1035
      %v1037 = vrot.slane %v1032, 4
      %v1039 = vshrl.u32 %v943, 16
      %v1041 = vrot.slane %v1039, 7
      %v1042 = vshll.u32 %v943, 16
      %v1044 = vor.u32 %v1041, %v1042
      %v1045 = vrot.slane %v1041, 4
      %v1047 = vshrl.u32 %v944, 16
      %v1049 = vrot.slane %v1047, 7
      %v1050 = vshll.u32 %v944, 16
      %v1052 = vor.u32 %v1049, %v1050
      %v1053 = vsel %vm969, %v1045, %v1052
      %v1054 = vrot.slane %v1049, 4
      %v1056 = vshrl.u32 %v945, 16
      %v1058 = vrot.slane %v1056, 7
      %v1059 = vshll.u32 %v945, 16
      %v1061 = vor.u32 %v1058, %v1059
      %v1062 = vrot.slane %v1058, 4
      %v1064 = vshrl.u32 %v946, 16
      %v1066 = vrot.slane %v1064, 7
      %v1067 = vshll.u32 %v946, 16
      %v1069 = vor.u32 %v1066, %v1067
      %v1070 = vsel %vm969, %v1062, %v1069
      %v1071 = vrot.slane %v1066, 4
      %v1073 = vshrl.u32 %v947, 16
      %v1075 = vrot.slane %v1073, 7
      %v1076 = vshll.u32 %v947, 16
      %v1078 = vor.u32 %v1075, %v1076
      %v1079 = vrot.slane %v1075, 4
      %v1081 = vshrl.u32 %v948, 16
      %v1083 = vrot.slane %v1081, 7
      %v1084 = vshll.u32 %v948, 16
      %v1086 = vor.u32 %v1083, %v1084
      %v1087 = vsel %vm969, %v1079, %v1086
      %v1088 = vrot.slane %v1083, 4
      %v1090 = vshrl.u32 %v949, 16
      %v1092 = vrot.slane %v1090, 7
      %v1093 = vshll.u32 %v949, 16
      %v1095 = vor.u32 %v1092, %v1093
      %v1096 = vrot.slane %v1092, 4
      %v1098 = vshrl.u32 %v950, 16
      %v1100 = vrot.slane %v1098, 7
      %v1101 = vshll.u32 %v950, 16
      %v1103 = vor.u32 %v1100, %v1101
      %v1104 = vsel %vm969, %v1096, %v1103
      %v1105 = vrot.slane %v1100, 4
      %v1107 = vshrl.u32 %v951, 16
      %v1109 = vrot.slane %v1107, 7
      %v1110 = vshll.u32 %v951, 16
      %v1112 = vor.u32 %v1109, %v1110
      %v1113 = vrot.slane %v1109, 4
      %v1115 = vshrl.u32 %v952, 16
      %v1117 = vrot.slane %v1115, 7
      %v1118 = vshll.u32 %v952, 16
      %v1120 = vor.u32 %v1117, %v1118
      %v1121 = vsel %vm969, %v1113, %v1120
      %v1122 = vrot.slane %v1117, 4
      %v1124 = vshrl.u32 %v953, 16
      %v1126 = vrot.slane %v1124, 7
      %v1127 = vshll.u32 %v953, 16
      %v1129 = vor.u32 %v1126, %v1127
      %v1130 = vrot.slane %v1126, 4
      %v1132 = vshrl.u32 %v954, 16
      %v1134 = vrot.slane %v1132, 7
      %v1135 = vshll.u32 %v954, 16
      %v1137 = vor.u32 %v1134, %v1135
      %v1138 = vsel %vm969, %v1130, %v1137
      %v1139 = vrot.slane %v1134, 4
      %v1141 = vshrl.u32 %v955, 16
      %v1143 = vrot.slane %v1141, 7
      %v1144 = vshll.u32 %v955, 16
      %v1146 = vor.u32 %v1143, %v1144
      %v1147 = vrot.slane %v1143, 4
      %v1149 = vshrl.u32 %v956, 16
      %v1151 = vrot.slane %v1149, 7
      %v1152 = vshll.u32 %v956, 16
      %v1154 = vor.u32 %v1151, %v1152
      %v1155 = vsel %vm969, %v1147, %v1154
      %v1156 = vrot.slane %v1151, 4
      %v1158 = vshrl.u32 %v957, 16
      %v1160 = vrot.slane %v1158, 7
      %v1161 = vshll.u32 %v957, 16
      %v1163 = vor.u32 %v1160, %v1161
      %v1164 = vrot.slane %v1160, 4
      %v1166 = vshrl.u32 %v958, 16
      %v1168 = vrot.slane %v1166, 7
      %v1169 = vshll.u32 %v958, 16
      %v1171 = vor.u32 %v1168, %v1169
      %v1172 = vsel %vm969, %v1164, %v1171
      %v1173 = vrot.slane %v1168, 4
      %v1175 = vshrl.u32 %v959, 16
      %v1177 = vrot.slane %v1175, 7
      %v1178 = vshll.u32 %v959, 16
      %v1180 = vor.u32 %v1177, %v1178
      %v1181 = vrot.slane %v1177, 4
      %v1183 = vshrl.u32 %v960, 16
      %v1185 = vrot.slane %v1183, 7
      %v1186 = vshll.u32 %v960, 16
      %v1188 = vor.u32 %v1185, %v1186
      %v1189 = vsel %vm969, %v1181, %v1188
      %v1190 = vrot.slane %v1185, 4
      %v1192 = vshrl.u32 %v961, 16
      %v1194 = vrot.slane %v1192, 7
      %v1195 = vshll.u32 %v961, 16
      %v1197 = vor.u32 %v1194, %v1195
      %v1198 = vrot.slane %v1194, 4
      %v1200 = vshrl.u32 %v962, 16
      %v1202 = vrot.slane %v1200, 7
      %v1203 = vshll.u32 %v962, 16
      %v1205 = vor.u32 %v1202, %v1203
      %v1206 = vsel %vm969, %v1198, %v1205
      %v1207 = vrot.slane %v1202, 4
      %v1209 = vshrl.u32 %v963, 16
      %v1211 = vrot.slane %v1209, 7
      %v1212 = vshll.u32 %v963, 16
      %v1214 = vor.u32 %v1211, %v1212
      %v1215 = vrot.slane %v1211, 4
      %v1217 = vshrl.u32 %v964, 16
      %v1219 = vrot.slane %v1217, 7
      %v1220 = vshll.u32 %v964, 16
      %v1222 = vor.u32 %v1219, %v1220
      %v1223 = vsel %vm969, %v1215, %v1222
      %v1224 = vrot.slane %v1219, 4
      %v1226 = vshrl.u32 %v965, 16
      %v1228 = vrot.slane %v1226, 7
      %v1229 = vshll.u32 %v965, 16
      %v1231 = vor.u32 %v1228, %v1229
      %v1232 = vrot.slane %v1228, 4
      %v1234 = vshrl.u32 %v966, 16
      %v1236 = vrot.slane %v1234, 7
      %v1237 = vshll.u32 %v966, 16
      %v1239 = vor.u32 %v1236, %v1237
      %v1240 = vsel %vm969, %v1232, %v1239
      %v1241 = vrot.slane %v1236, 4
      %s1290 = scalar_lea.vmem [#allocation2], 12
      %vm1291 = vcmask 257024
      %vm1292 = vsmask.f32 7938
      %vm1293 = vmand %vm1291, %vm1292
      %v1294 = vld [vmem:[%s1290] sm:$0xf]
      %v1295 = vsel %vm1293, %v976, %v1294
      %1296 = vst [vmem:[%s1290] sm:$0xf] %v1295
      %1297 = vst.msk [vmem:[%s1290 + $0x4] sm:$0xf] %vm816, %v985
      %vm1298 = vcmask 253952
      %vm1299 = vmand %vm1298, %vm967
      %v1300 = vld [vmem:[%s1290 + $0x8] sm:$0x1]
      %v1301 = vsel %vm1299, %v986, %v1300
      %1302 = vst [vmem:[%s1290 + $0x8] sm:$0x1] %v1301
      %v1303 = vld [vmem:[%s1290 + $0xc] sm:$0xf]
      %v1304 = vsel %vm1293, %v993, %v1303
      %1305 = vst [vmem:[%s1290 + $0xc] sm:$0xf] %v1304
      %1306 = vst.msk [vmem:[%s1290 + $0x10] sm:$0xf] %vm816, %v1002
      %v1307 = vld [vmem:[%s1290 + $0x14] sm:$0x1]
      %v1308 = vsel %vm1299, %v1003, %v1307
      %1309 = vst [vmem:[%s1290 + $0x14] sm:$0x1] %v1308
      %v1310 = vld [vmem:[%s1290 + $0x18] sm:$0xf]
      %v1311 = vsel %vm1293, %v1010, %v1310
      %1312 = vst [vmem:[%s1290 + $0x18] sm:$0xf] %v1311
      %1313 = vst.msk [vmem:[%s1290 + $0x1c] sm:$0xf] %vm816, %v1019
      %v1314 = vld [vmem:[%s1290 + $0x20] sm:$0x1]
      %v1315 = vsel %vm1299, %v1020, %v1314
      %1316 = vst [vmem:[%s1290 + $0x20] sm:$0x1] %v1315
      %v1317 = vld [vmem:[%s1290 + $0x24] sm:$0xf]
      %v1318 = vsel %vm1293, %v1027, %v1317
      %1319 = vst [vmem:[%s1290 + $0x24] sm:$0xf] %v1318
      %1320 = vst.msk [vmem:[%s1290 + $0x28] sm:$0xf] %vm816, %v1036
      %v1321 = vld [vmem:[%s1290 + $0x2c] sm:$0x1]
      %v1322 = vsel %vm1299, %v1037, %v1321
      %1323 = vst [vmem:[%s1290 + $0x2c] sm:$0x1] %v1322
      %v1324 = vld [vmem:[%s1290 + $0x30] sm:$0xf]
      %v1325 = vsel %vm1293, %v1044, %v1324
      %1326 = vst [vmem:[%s1290 + $0x30] sm:$0xf] %v1325
      %1327 = vst.msk [vmem:[%s1290 + $0x34] sm:$0xf] %vm816, %v1053
      %v1328 = vld [vmem:[%s1290 + $0x38] sm:$0x1]
      %v1329 = vsel %vm1299, %v1054, %v1328
      %1330 = vst [vmem:[%s1290 + $0x38] sm:$0x1] %v1329
      %v1331 = vld [vmem:[%s1290 + $0x3c] sm:$0xf]
      %v1332 = vsel %vm1293, %v1061, %v1331
      %1333 = vst [vmem:[%s1290 + $0x3c] sm:$0xf] %v1332
      %1334 = vst.msk [vmem:[%s1290 + $0x40] sm:$0xf] %vm816, %v1070
      %v1335 = vld [vmem:[%s1290 + $0x44] sm:$0x1]
      %v1336 = vsel %vm1299, %v1071, %v1335
      %1337 = vst [vmem:[%s1290 + $0x44] sm:$0x1] %v1336
      %v1338 = vld [vmem:[%s1290 + $0x48] sm:$0xf]
      %v1339 = vsel %vm1293, %v1078, %v1338
      %1340 = vst [vmem:[%s1290 + $0x48] sm:$0xf] %v1339
      %1341 = vst.msk [vmem:[%s1290 + $0x4c] sm:$0xf] %vm816, %v1087
      %v1342 = vld [vmem:[%s1290 + $0x50] sm:$0x1]
      %v1343 = vsel %vm1299, %v1088, %v1342
      %1344 = vst [vmem:[%s1290 + $0x50] sm:$0x1] %v1343
      %v1345 = vld [vmem:[%s1290 + $0x54] sm:$0xf]
      %v1346 = vsel %vm1293, %v1095, %v1345
      %1347 = vst [vmem:[%s1290 + $0x54] sm:$0xf] %v1346
      %1348 = vst.msk [vmem:[%s1290 + $0x58] sm:$0xf] %vm816, %v1104
      %v1349 = vld [vmem:[%s1290 + $0x5c] sm:$0x1]
      %v1350 = vsel %vm1299, %v1105, %v1349
      %1351 = vst [vmem:[%s1290 + $0x5c] sm:$0x1] %v1350
      %v1352 = vld [vmem:[%s1290 + $0x60] sm:$0xf]
      %v1353 = vsel %vm1293, %v1112, %v1352
      %1354 = vst [vmem:[%s1290 + $0x60] sm:$0xf] %v1353
      %1355 = vst.msk [vmem:[%s1290 + $0x64] sm:$0xf] %vm816, %v1121
      %v1356 = vld [vmem:[%s1290 + $0x68] sm:$0x1]
      %v1357 = vsel %vm1299, %v1122, %v1356
      %1358 = vst [vmem:[%s1290 + $0x68] sm:$0x1] %v1357
      %v1359 = vld [vmem:[%s1290 + $0x6c] sm:$0xf]
      %v1360 = vsel %vm1293, %v1129, %v1359
      %1361 = vst [vmem:[%s1290 + $0x6c] sm:$0xf] %v1360
      %1362 = vst.msk [vmem:[%s1290 + $0x70] sm:$0xf] %vm816, %v1138
      %v1363 = vld [vmem:[%s1290 + $0x74] sm:$0x1]
      %v1364 = vsel %vm1299, %v1139, %v1363
      %1365 = vst [vmem:[%s1290 + $0x74] sm:$0x1] %v1364
      %v1366 = vld [vmem:[%s1290 + $0x78] sm:$0xf]
      %v1367 = vsel %vm1293, %v1146, %v1366
      %1368 = vst [vmem:[%s1290 + $0x78] sm:$0xf] %v1367
      %1369 = vst.msk [vmem:[%s1290 + $0x7c] sm:$0xf] %vm816, %v1155
      %v1370 = vld [vmem:[%s1290 + $0x80] sm:$0x1]
      %v1371 = vsel %vm1299, %v1156, %v1370
      %1372 = vst [vmem:[%s1290 + $0x80] sm:$0x1] %v1371
      %v1373 = vld [vmem:[%s1290 + $0x84] sm:$0xf]
      %v1374 = vsel %vm1293, %v1163, %v1373
      %1375 = vst [vmem:[%s1290 + $0x84] sm:$0xf] %v1374
      %1376 = vst.msk [vmem:[%s1290 + $0x88] sm:$0xf] %vm816, %v1172
      %v1377 = vld [vmem:[%s1290 + $0x8c] sm:$0x1]
      %v1378 = vsel %vm1299, %v1173, %v1377
      %1379 = vst [vmem:[%s1290 + $0x8c] sm:$0x1] %v1378
      %v1380 = vld [vmem:[%s1290 + $0x90] sm:$0xf]
      %v1381 = vsel %vm1293, %v1180, %v1380
      %1382 = vst [vmem:[%s1290 + $0x90] sm:$0xf] %v1381
      %1383 = vst.msk [vmem:[%s1290 + $0x94] sm:$0xf] %vm816, %v1189
      %v1384 = vld [vmem:[%s1290 + $0x98] sm:$0x1]
      %v1385 = vsel %vm1299, %v1190, %v1384
      %1386 = vst [vmem:[%s1290 + $0x98] sm:$0x1] %v1385
      %v1387 = vld [vmem:[%s1290 + $0x9c] sm:$0xf]
      %v1388 = vsel %vm1293, %v1197, %v1387
      %1389 = vst [vmem:[%s1290 + $0x9c] sm:$0xf] %v1388
      %1390 = vst.msk [vmem:[%s1290 + $0xa0] sm:$0xf] %vm816, %v1206
      %v1391 = vld [vmem:[%s1290 + $0xa4] sm:$0x1]
      %v1392 = vsel %vm1299, %v1207, %v1391
      %1393 = vst [vmem:[%s1290 + $0xa4] sm:$0x1] %v1392
      %v1394 = vld [vmem:[%s1290 + $0xa8] sm:$0xf]
      %v1395 = vsel %vm1293, %v1214, %v1394
      %1396 = vst [vmem:[%s1290 + $0xa8] sm:$0xf] %v1395
      %1397 = vst.msk [vmem:[%s1290 + $0xac] sm:$0xf] %vm816, %v1223
      %v1398 = vld [vmem:[%s1290 + $0xb0] sm:$0x1]
      %v1399 = vsel %vm1299, %v1224, %v1398
      %1400 = vst [vmem:[%s1290 + $0xb0] sm:$0x1] %v1399
      %v1401 = vld [vmem:[%s1290 + $0xb4] sm:$0xf]
      %v1402 = vsel %vm1293, %v1231, %v1401
      %1403 = vst [vmem:[%s1290 + $0xb4] sm:$0xf] %v1402
      %1404 = vst.msk [vmem:[%s1290 + $0xb8] sm:$0xf] %vm816, %v1240
      %v1405 = vld [vmem:[%s1290 + $0xbc] sm:$0x1]
      %v1406 = vsel %vm1299, %v1241, %v1405
      %1407 = vst [vmem:[%s1290 + $0xbc] sm:$0x1] %v1406
      %v1408 = vld [vmem:[#allocation2] sm:$0xf]
      %v1409 = vld [vmem:[#allocation2 + $0x4] sm:$0xf]
      %v1410 = vld [vmem:[#allocation2 + $0xc] sm:$0xf]
      %v1411 = vld [vmem:[#allocation2 + $0x10] sm:$0xf]
      %v1412 = vld [vmem:[#allocation2 + $0x18] sm:$0xf]
      %v1413 = vld [vmem:[#allocation2 + $0x1c] sm:$0xf]
      %v1414 = vld [vmem:[#allocation2 + $0x24] sm:$0xf]
      %v1415 = vld [vmem:[#allocation2 + $0x28] sm:$0xf]
      %v1416 = vld [vmem:[#allocation2 + $0x30] sm:$0xf]
      %v1417 = vld [vmem:[#allocation2 + $0x34] sm:$0xf]
      %v1418 = vld [vmem:[#allocation2 + $0x3c] sm:$0xf]
      %v1419 = vld [vmem:[#allocation2 + $0x40] sm:$0xf]
      %v1420 = vld [vmem:[#allocation2 + $0x48] sm:$0xf]
      %v1421 = vld [vmem:[#allocation2 + $0x4c] sm:$0xf]
      %v1422 = vld [vmem:[#allocation2 + $0x54] sm:$0xf]
      %v1423 = vld [vmem:[#allocation2 + $0x58] sm:$0xf]
      %v1424 = vld [vmem:[#allocation2 + $0x60] sm:$0xf]
      %v1425 = vld [vmem:[#allocation2 + $0x64] sm:$0xf]
      %v1426 = vld [vmem:[#allocation2 + $0x6c] sm:$0xf]
      %v1427 = vld [vmem:[#allocation2 + $0x70] sm:$0xf]
      %v1428 = vld [vmem:[#allocation2 + $0x78] sm:$0xf]
      %v1429 = vld [vmem:[#allocation2 + $0x7c] sm:$0xf]
      %v1430 = vld [vmem:[#allocation2 + $0x84] sm:$0xf]
      %v1431 = vld [vmem:[#allocation2 + $0x88] sm:$0xf]
      %v1432 = vld [vmem:[#allocation2 + $0x90] sm:$0xf]
      %v1433 = vld [vmem:[#allocation2 + $0x94] sm:$0xf]
      %v1434 = vld [vmem:[#allocation2 + $0x9c] sm:$0xf]
      %v1435 = vld [vmem:[#allocation2 + $0xa0] sm:$0xf]
      %v1436 = vld [vmem:[#allocation2 + $0xa8] sm:$0xf]
      %v1437 = vld [vmem:[#allocation2 + $0xac] sm:$0xf]
      %v1438 = vld [vmem:[#allocation2 + $0xb4] sm:$0xf]
      %v1439 = vld [vmem:[#allocation2 + $0xb8] sm:$0xf]
      %v1440 = vld [vmem:[#allocation2 + $0x8] sm:$0x1]
      %v1441 = vld [vmem:[#allocation2 + $0x14] sm:$0x1]
      %v1442 = vld [vmem:[#allocation2 + $0x20] sm:$0x1]
      %v1443 = vld [vmem:[#allocation2 + $0x2c] sm:$0x1]
      %v1444 = vld [vmem:[#allocation2 + $0x38] sm:$0x1]
      %v1445 = vld [vmem:[#allocation2 + $0x44] sm:$0x1]
      %v1446 = vld [vmem:[#allocation2 + $0x50] sm:$0x1]
      %v1447 = vld [vmem:[#allocation2 + $0x5c] sm:$0x1]
      %v1448 = vld [vmem:[#allocation2 + $0x68] sm:$0x1]
      %v1449 = vld [vmem:[#allocation2 + $0x74] sm:$0x1]
      %v1450 = vld [vmem:[#allocation2 + $0x80] sm:$0x1]
      %v1451 = vld [vmem:[#allocation2 + $0x8c] sm:$0x1]
      %v1452 = vld [vmem:[#allocation2 + $0x98] sm:$0x1]
      %v1453 = vld [vmem:[#allocation2 + $0xa4] sm:$0x1]
      %v1454 = vld [vmem:[#allocation2 + $0xb0] sm:$0x1]
      %v1455 = vld [vmem:[#allocation2 + $0xbc] sm:$0x1]
      %vm1456 = vsmask.f32 3328
      %vm1457 = vsmask.f32 7440
      %vm1458 = vmor %vm1456, %vm1457
      %v1460 = vshrl.u32 %v1408, 16
      %v1462 = vrot.slane %v1460, 4
      %v1463 = vshll.u32 %v1408, 16
      %v1465 = vrot.slane %v1463, 5
      %v1466 = vor.u32 %v1462, %v1465
      %v1467 = vrot.slane %v1466, 4
      %v1469 = vshll.u32 %v1409, 16
      %v1471 = vrot.slane %v1469, 5
      %v1472 = vsel %vm1458, %v1467, %v1471
      %v1473 = vshrl.u32 %v1409, 16
      %v1475 = vrot.slane %v1473, 4
      %v1476 = vor.u32 %v1475, %v1471
      %v1477 = vrot.slane %v1476, 4
      %v1479 = vshll.u32 %v1440, 16
      %v1481 = vrot.slane %v1479, 5
      %v1482 = vsel %vm1458, %v1477, %v1481
      %v1484 = vshrl.u32 %v1410, 16
      %v1486 = vrot.slane %v1484, 4
      %v1487 = vshll.u32 %v1410, 16
      %v1489 = vrot.slane %v1487, 5
      %v1490 = vor.u32 %v1486, %v1489
      %v1491 = vrot.slane %v1490, 4
      %v1493 = vshll.u32 %v1411, 16
      %v1495 = vrot.slane %v1493, 5
      %v1496 = vsel %vm1458, %v1491, %v1495
      %v1497 = vshrl.u32 %v1411, 16
      %v1499 = vrot.slane %v1497, 4
      %v1500 = vor.u32 %v1499, %v1495
      %v1501 = vrot.slane %v1500, 4
      %v1503 = vshll.u32 %v1441, 16
      %v1505 = vrot.slane %v1503, 5
      %v1506 = vsel %vm1458, %v1501, %v1505
      %v1508 = vshrl.u32 %v1412, 16
      %v1510 = vrot.slane %v1508, 4
      %v1511 = vshll.u32 %v1412, 16
      %v1513 = vrot.slane %v1511, 5
      %v1514 = vor.u32 %v1510, %v1513
      %v1515 = vrot.slane %v1514, 4
      %v1517 = vshll.u32 %v1413, 16
      %v1519 = vrot.slane %v1517, 5
      %v1520 = vsel %vm1458, %v1515, %v1519
      %v1521 = vshrl.u32 %v1413, 16
      %v1523 = vrot.slane %v1521, 4
      %v1524 = vor.u32 %v1523, %v1519
      %v1525 = vrot.slane %v1524, 4
      %v1527 = vshll.u32 %v1442, 16
      %v1529 = vrot.slane %v1527, 5
      %v1530 = vsel %vm1458, %v1525, %v1529
      %v1532 = vshrl.u32 %v1414, 16
      %v1534 = vrot.slane %v1532, 4
      %v1535 = vshll.u32 %v1414, 16
      %v1537 = vrot.slane %v1535, 5
      %v1538 = vor.u32 %v1534, %v1537
      %v1539 = vrot.slane %v1538, 4
      %v1541 = vshll.u32 %v1415, 16
      %v1543 = vrot.slane %v1541, 5
      %v1544 = vsel %vm1458, %v1539, %v1543
      %v1545 = vshrl.u32 %v1415, 16
      %v1547 = vrot.slane %v1545, 4
      %v1548 = vor.u32 %v1547, %v1543
      %v1549 = vrot.slane %v1548, 4
      %v1551 = vshll.u32 %v1443, 16
      %v1553 = vrot.slane %v1551, 5
      %v1554 = vsel %vm1458, %v1549, %v1553
      %v1556 = vshrl.u32 %v1416, 16
      %v1558 = vrot.slane %v1556, 4
      %v1559 = vshll.u32 %v1416, 16
      %v1561 = vrot.slane %v1559, 5
      %v1562 = vor.u32 %v1558, %v1561
      %v1563 = vrot.slane %v1562, 4
      %v1565 = vshll.u32 %v1417, 16
      %v1567 = vrot.slane %v1565, 5
      %v1568 = vsel %vm1458, %v1563, %v1567
      %v1569 = vshrl.u32 %v1417, 16
      %v1571 = vrot.slane %v1569, 4
      %v1572 = vor.u32 %v1571, %v1567
      %v1573 = vrot.slane %v1572, 4
      %v1575 = vshll.u32 %v1444, 16
      %v1577 = vrot.slane %v1575, 5
      %v1578 = vsel %vm1458, %v1573, %v1577
      %v1580 = vshrl.u32 %v1418, 16
      %v1582 = vrot.slane %v1580, 4
      %v1583 = vshll.u32 %v1418, 16
      %v1585 = vrot.slane %v1583, 5
      %v1586 = vor.u32 %v1582, %v1585
      %v1587 = vrot.slane %v1586, 4
      %v1589 = vshll.u32 %v1419, 16
      %v1591 = vrot.slane %v1589, 5
      %v1592 = vsel %vm1458, %v1587, %v1591
      %v1593 = vshrl.u32 %v1419, 16
      %v1595 = vrot.slane %v1593, 4
      %v1596 = vor.u32 %v1595, %v1591
      %v1597 = vrot.slane %v1596, 4
      %v1599 = vshll.u32 %v1445, 16
      %v1601 = vrot.slane %v1599, 5
      %v1602 = vsel %vm1458, %v1597, %v1601
      %v1604 = vshrl.u32 %v1420, 16
      %v1606 = vrot.slane %v1604, 4
      %v1607 = vshll.u32 %v1420, 16
      %v1609 = vrot.slane %v1607, 5
      %v1610 = vor.u32 %v1606, %v1609
      %v1611 = vrot.slane %v1610, 4
      %v1613 = vshll.u32 %v1421, 16
      %v1615 = vrot.slane %v1613, 5
      %v1616 = vsel %vm1458, %v1611, %v1615
      %v1617 = vshrl.u32 %v1421, 16
      %v1619 = vrot.slane %v1617, 4
      %v1620 = vor.u32 %v1619, %v1615
      %v1621 = vrot.slane %v1620, 4
      %v1623 = vshll.u32 %v1446, 16
      %v1625 = vrot.slane %v1623, 5
      %v1626 = vsel %vm1458, %v1621, %v1625
      %v1628 = vshrl.u32 %v1422, 16
      %v1630 = vrot.slane %v1628, 4
      %v1631 = vshll.u32 %v1422, 16
      %v1633 = vrot.slane %v1631, 5
      %v1634 = vor.u32 %v1630, %v1633
      %v1635 = vrot.slane %v1634, 4
      %v1637 = vshll.u32 %v1423, 16
      %v1639 = vrot.slane %v1637, 5
      %v1640 = vsel %vm1458, %v1635, %v1639
      %v1641 = vshrl.u32 %v1423, 16
      %v1643 = vrot.slane %v1641, 4
      %v1644 = vor.u32 %v1643, %v1639
      %v1645 = vrot.slane %v1644, 4
      %v1647 = vshll.u32 %v1447, 16
      %v1649 = vrot.slane %v1647, 5
      %v1650 = vsel %vm1458, %v1645, %v1649
      %v1652 = vshrl.u32 %v1424, 16
      %v1654 = vrot.slane %v1652, 4
      %v1655 = vshll.u32 %v1424, 16
      %v1657 = vrot.slane %v1655, 5
      %v1658 = vor.u32 %v1654, %v1657
      %v1659 = vrot.slane %v1658, 4
      %v1661 = vshll.u32 %v1425, 16
      %v1663 = vrot.slane %v1661, 5
      %v1664 = vsel %vm1458, %v1659, %v1663
      %v1665 = vshrl.u32 %v1425, 16
      %v1667 = vrot.slane %v1665, 4
      %v1668 = vor.u32 %v1667, %v1663
      %v1669 = vrot.slane %v1668, 4
      %v1671 = vshll.u32 %v1448, 16
      %v1673 = vrot.slane %v1671, 5
      %v1674 = vsel %vm1458, %v1669, %v1673
      %v1676 = vshrl.u32 %v1426, 16
      %v1678 = vrot.slane %v1676, 4
      %v1679 = vshll.u32 %v1426, 16
      %v1681 = vrot.slane %v1679, 5
      %v1682 = vor.u32 %v1678, %v1681
      %v1683 = vrot.slane %v1682, 4
      %v1685 = vshll.u32 %v1427, 16
      %v1687 = vrot.slane %v1685, 5
      %v1688 = vsel %vm1458, %v1683, %v1687
      %v1689 = vshrl.u32 %v1427, 16
      %v1691 = vrot.slane %v1689, 4
      %v1692 = vor.u32 %v1691, %v1687
      %v1693 = vrot.slane %v1692, 4
      %v1695 = vshll.u32 %v1449, 16
      %v1697 = vrot.slane %v1695, 5
      %v1698 = vsel %vm1458, %v1693, %v1697
      %v1700 = vshrl.u32 %v1428, 16
      %v1702 = vrot.slane %v1700, 4
      %v1703 = vshll.u32 %v1428, 16
      %v1705 = vrot.slane %v1703, 5
      %v1706 = vor.u32 %v1702, %v1705
      %v1707 = vrot.slane %v1706, 4
      %v1709 = vshll.u32 %v1429, 16
      %v1711 = vrot.slane %v1709, 5
      %v1712 = vsel %vm1458, %v1707, %v1711
      %v1713 = vshrl.u32 %v1429, 16
      %v1715 = vrot.slane %v1713, 4
      %v1716 = vor.u32 %v1715, %v1711
      %v1717 = vrot.slane %v1716, 4
      %v1719 = vshll.u32 %v1450, 16
      %v1721 = vrot.slane %v1719, 5
      %v1722 = vsel %vm1458, %v1717, %v1721
      %v1724 = vshrl.u32 %v1430, 16
      %v1726 = vrot.slane %v1724, 4
      %v1727 = vshll.u32 %v1430, 16
      %v1729 = vrot.slane %v1727, 5
      %v1730 = vor.u32 %v1726, %v1729
      %v1731 = vrot.slane %v1730, 4
      %v1733 = vshll.u32 %v1431, 16
      %v1735 = vrot.slane %v1733, 5
      %v1736 = vsel %vm1458, %v1731, %v1735
      %v1737 = vshrl.u32 %v1431, 16
      %v1739 = vrot.slane %v1737, 4
      %v1740 = vor.u32 %v1739, %v1735
      %v1741 = vrot.slane %v1740, 4
      %v1743 = vshll.u32 %v1451, 16
      %v1745 = vrot.slane %v1743, 5
      %v1746 = vsel %vm1458, %v1741, %v1745
      %v1748 = vshrl.u32 %v1432, 16
      %v1750 = vrot.slane %v1748, 4
      %v1751 = vshll.u32 %v1432, 16
      %v1753 = vrot.slane %v1751, 5
      %v1754 = vor.u32 %v1750, %v1753
      %v1755 = vrot.slane %v1754, 4
      %v1757 = vshll.u32 %v1433, 16
      %v1759 = vrot.slane %v1757, 5
      %v1760 = vsel %vm1458, %v1755, %v1759
      %v1761 = vshrl.u32 %v1433, 16
      %v1763 = vrot.slane %v1761, 4
      %v1764 = vor.u32 %v1763, %v1759
      %v1765 = vrot.slane %v1764, 4
      %v1767 = vshll.u32 %v1452, 16
      %v1769 = vrot.slane %v1767, 5
      %v1770 = vsel %vm1458, %v1765, %v1769
      %v1772 = vshrl.u32 %v1434, 16
      %v1774 = vrot.slane %v1772, 4
      %v1775 = vshll.u32 %v1434, 16
      %v1777 = vrot.slane %v1775, 5
      %v1778 = vor.u32 %v1774, %v1777
      %v1779 = vrot.slane %v1778, 4
      %v1781 = vshll.u32 %v1435, 16
      %v1783 = vrot.slane %v1781, 5
      %v1784 = vsel %vm1458, %v1779, %v1783
      %v1785 = vshrl.u32 %v1435, 16
      %v1787 = vrot.slane %v1785, 4
      %v1788 = vor.u32 %v1787, %v1783
      %v1789 = vrot.slane %v1788, 4
      %v1791 = vshll.u32 %v1453, 16
      %v1793 = vrot.slane %v1791, 5
      %v1794 = vsel %vm1458, %v1789, %v1793
      %v1796 = vshrl.u32 %v1436, 16
      %v1798 = vrot.slane %v1796, 4
      %v1799 = vshll.u32 %v1436, 16
      %v1801 = vrot.slane %v1799, 5
      %v1802 = vor.u32 %v1798, %v1801
      %v1803 = vrot.slane %v1802, 4
      %v1805 = vshll.u32 %v1437, 16
      %v1807 = vrot.slane %v1805, 5
      %v1808 = vsel %vm1458, %v1803, %v1807
      %v1809 = vshrl.u32 %v1437, 16
      %v1811 = vrot.slane %v1809, 4
      %v1812 = vor.u32 %v1811, %v1807
      %v1813 = vrot.slane %v1812, 4
      %v1815 = vshll.u32 %v1454, 16
      %v1817 = vrot.slane %v1815, 5
      %v1818 = vsel %vm1458, %v1813, %v1817
      %v1820 = vshrl.u32 %v1438, 16
      %v1822 = vrot.slane %v1820, 4
      %v1823 = vshll.u32 %v1438, 16
      %v1825 = vrot.slane %v1823, 5
      %v1826 = vor.u32 %v1822, %v1825
      %v1827 = vrot.slane %v1826, 4
      %v1829 = vshll.u32 %v1439, 16
      %v1831 = vrot.slane %v1829, 5
      %v1832 = vsel %vm1458, %v1827, %v1831
      %v1833 = vshrl.u32 %v1439, 16
      %v1835 = vrot.slane %v1833, 4
      %v1836 = vor.u32 %v1835, %v1831
      %v1837 = vrot.slane %v1836, 4
      %v1839 = vshll.u32 %v1455, 16
      %v1841 = vrot.slane %v1839, 5
      %v1842 = vsel %vm1458, %v1837, %v1841
      %v1843 = vld [vmem:[#allocation2] sm:$0xe]
      %v1844 = vld [vmem:[#allocation2 + $0xc] sm:$0xe]
      %v1845 = vld [vmem:[#allocation2 + $0x18] sm:$0xe]
      %v1846 = vld [vmem:[#allocation2 + $0x24] sm:$0xe]
      %v1847 = vld [vmem:[#allocation2 + $0x30] sm:$0xe]
      %v1848 = vld [vmem:[#allocation2 + $0x3c] sm:$0xe]
      %v1849 = vld [vmem:[#allocation2 + $0x48] sm:$0xe]
      %v1850 = vld [vmem:[#allocation2 + $0x54] sm:$0xe]
      %v1851 = vld [vmem:[#allocation2 + $0x60] sm:$0xe]
      %v1852 = vld [vmem:[#allocation2 + $0x6c] sm:$0xe]
      %v1853 = vld [vmem:[#allocation2 + $0x78] sm:$0xe]
      %v1854 = vld [vmem:[#allocation2 + $0x84] sm:$0xe]
      %v1855 = vld [vmem:[#allocation2 + $0x90] sm:$0xe]
      %v1856 = vld [vmem:[#allocation2 + $0x9c] sm:$0xe]
      %v1857 = vld [vmem:[#allocation2 + $0xa8] sm:$0xe]
      %v1858 = vld [vmem:[#allocation2 + $0xb4] sm:$0xe]
      %vm1907 = vcmask 1042432
      %vm1908 = vcmask 1046532
      %vm1909 = vmor %vm1907, %vm1908
      %v1910 = vrot.slane %v1843, 5
      %v1911 = vrot.slane %v1910, 4
      %v1912 = vrot.slane %v1409, 5
      %v1913 = vsel %vm1909, %v1911, %v1912
      %v1914 = vrot.slane %v1912, 4
      %v1915 = vrot.slane %v1440, 5
      %v1916 = vsel %vm1909, %v1914, %v1915
      %v1917 = vrot.slane %v1844, 5
      %v1918 = vrot.slane %v1917, 4
      %v1919 = vrot.slane %v1411, 5
      %v1920 = vsel %vm1909, %v1918, %v1919
      %v1921 = vrot.slane %v1919, 4
      %v1922 = vrot.slane %v1441, 5
      %v1923 = vsel %vm1909, %v1921, %v1922
      %v1924 = vrot.slane %v1845, 5
      %v1925 = vrot.slane %v1924, 4
      %v1926 = vrot.slane %v1413, 5
      %v1927 = vsel %vm1909, %v1925, %v1926
      %v1928 = vrot.slane %v1926, 4
      %v1929 = vrot.slane %v1442, 5
      %v1930 = vsel %vm1909, %v1928, %v1929
      %v1931 = vrot.slane %v1846, 5
      %v1932 = vrot.slane %v1931, 4
      %v1933 = vrot.slane %v1415, 5
      %v1934 = vsel %vm1909, %v1932, %v1933
      %v1935 = vrot.slane %v1933, 4
      %v1936 = vrot.slane %v1443, 5
      %v1937 = vsel %vm1909, %v1935, %v1936
      %v1938 = vrot.slane %v1847, 5
      %v1939 = vrot.slane %v1938, 4
      %v1940 = vrot.slane %v1417, 5
      %v1941 = vsel %vm1909, %v1939, %v1940
      %v1942 = vrot.slane %v1940, 4
      %v1943 = vrot.slane %v1444, 5
      %v1944 = vsel %vm1909, %v1942, %v1943
      %v1945 = vrot.slane %v1848, 5
      %v1946 = vrot.slane %v1945, 4
      %v1947 = vrot.slane %v1419, 5
      %v1948 = vsel %vm1909, %v1946, %v1947
      %v1949 = vrot.slane %v1947, 4
      %v1950 = vrot.slane %v1445, 5
      %v1951 = vsel %vm1909, %v1949, %v1950
      %v1952 = vrot.slane %v1849, 5
      %v1953 = vrot.slane %v1952, 4
      %v1954 = vrot.slane %v1421, 5
      %v1955 = vsel %vm1909, %v1953, %v1954
      %v1956 = vrot.slane %v1954, 4
      %v1957 = vrot.slane %v1446, 5
      %v1958 = vsel %vm1909, %v1956, %v1957
      %v1959 = vrot.slane %v1850, 5
      %v1960 = vrot.slane %v1959, 4
      %v1961 = vrot.slane %v1423, 5
      %v1962 = vsel %vm1909, %v1960, %v1961
      %v1963 = vrot.slane %v1961, 4
      %v1964 = vrot.slane %v1447, 5
      %v1965 = vsel %vm1909, %v1963, %v1964
      %v1966 = vrot.slane %v1851, 5
      %v1967 = vrot.slane %v1966, 4
      %v1968 = vrot.slane %v1425, 5
      %v1969 = vsel %vm1909, %v1967, %v1968
      %v1970 = vrot.slane %v1968, 4
      %v1971 = vrot.slane %v1448, 5
      %v1972 = vsel %vm1909, %v1970, %v1971
      %v1973 = vrot.slane %v1852, 5
      %v1974 = vrot.slane %v1973, 4
      %v1975 = vrot.slane %v1427, 5
      %v1976 = vsel %vm1909, %v1974, %v1975
      %v1977 = vrot.slane %v1975, 4
      %v1978 = vrot.slane %v1449, 5
      %v1979 = vsel %vm1909, %v1977, %v1978
      %v1980 = vrot.slane %v1853, 5
      %v1981 = vrot.slane %v1980, 4
      %v1982 = vrot.slane %v1429, 5
      %v1983 = vsel %vm1909, %v1981, %v1982
      %v1984 = vrot.slane %v1982, 4
      %v1985 = vrot.slane %v1450, 5
      %v1986 = vsel %vm1909, %v1984, %v1985
      %v1987 = vrot.slane %v1854, 5
      %v1988 = vrot.slane %v1987, 4
      %v1989 = vrot.slane %v1431, 5
      %v1990 = vsel %vm1909, %v1988, %v1989
      %v1991 = vrot.slane %v1989, 4
      %v1992 = vrot.slane %v1451, 5
      %v1993 = vsel %vm1909, %v1991, %v1992
      %v1994 = vrot.slane %v1855, 5
      %v1995 = vrot.slane %v1994, 4
      %v1996 = vrot.slane %v1433, 5
      %v1997 = vsel %vm1909, %v1995, %v1996
      %v1998 = vrot.slane %v1996, 4
      %v1999 = vrot.slane %v1452, 5
      %v2000 = vsel %vm1909, %v1998, %v1999
      %v2001 = vrot.slane %v1856, 5
      %v2002 = vrot.slane %v2001, 4
      %v2003 = vrot.slane %v1435, 5
      %v2004 = vsel %vm1909, %v2002, %v2003
      %v2005 = vrot.slane %v2003, 4
      %v2006 = vrot.slane %v1453, 5
      %v2007 = vsel %vm1909, %v2005, %v2006
      %v2008 = vrot.slane %v1857, 5
      %v2009 = vrot.slane %v2008, 4
      %v2010 = vrot.slane %v1437, 5
      %v2011 = vsel %vm1909, %v2009, %v2010
      %v2012 = vrot.slane %v2010, 4
      %v2013 = vrot.slane %v1454, 5
      %v2014 = vsel %vm1909, %v2012, %v2013
      %v2015 = vrot.slane %v1858, 5
      %v2016 = vrot.slane %v2015, 4
      %v2017 = vrot.slane %v1439, 5
      %v2018 = vsel %vm1909, %v2016, %v2017
      %v2019 = vrot.slane %v2017, 4
      %v2020 = vrot.slane %v1455, 5
      %v2021 = vsel %vm1909, %v2019, %v2020
      %v2022 = vld [vmem:[%s1290] sm:$0xf]
      %v2023 = vld [vmem:[%s1290 + $0x4] sm:$0xf]
      %v2024 = vld [vmem:[%s1290 + $0xc] sm:$0xf]
      %v2025 = vld [vmem:[%s1290 + $0x10] sm:$0xf]
      %v2026 = vld [vmem:[%s1290 + $0x18] sm:$0xf]
      %v2027 = vld [vmem:[%s1290 + $0x1c] sm:$0xf]
      %v2028 = vld [vmem:[%s1290 + $0x24] sm:$0xf]
      %v2029 = vld [vmem:[%s1290 + $0x28] sm:$0xf]
      %v2030 = vld [vmem:[%s1290 + $0x30] sm:$0xf]
      %v2031 = vld [vmem:[%s1290 + $0x34] sm:$0xf]
      %v2032 = vld [vmem:[%s1290 + $0x3c] sm:$0xf]
      %v2033 = vld [vmem:[%s1290 + $0x40] sm:$0xf]
      %v2034 = vld [vmem:[%s1290 + $0x48] sm:$0xf]
      %v2035 = vld [vmem:[%s1290 + $0x4c] sm:$0xf]
      %v2036 = vld [vmem:[%s1290 + $0x54] sm:$0xf]
      %v2037 = vld [vmem:[%s1290 + $0x58] sm:$0xf]
      %v2038 = vld [vmem:[%s1290 + $0x60] sm:$0xf]
      %v2039 = vld [vmem:[%s1290 + $0x64] sm:$0xf]
      %v2040 = vld [vmem:[%s1290 + $0x6c] sm:$0xf]
      %v2041 = vld [vmem:[%s1290 + $0x70] sm:$0xf]
      %v2042 = vld [vmem:[%s1290 + $0x78] sm:$0xf]
      %v2043 = vld [vmem:[%s1290 + $0x7c] sm:$0xf]
      %v2044 = vld [vmem:[%s1290 + $0x84] sm:$0xf]
      %v2045 = vld [vmem:[%s1290 + $0x88] sm:$0xf]
      %v2046 = vld [vmem:[%s1290 + $0x90] sm:$0xf]
      %v2047 = vld [vmem:[%s1290 + $0x94] sm:$0xf]
      %v2048 = vld [vmem:[%s1290 + $0x9c] sm:$0xf]
      %v2049 = vld [vmem:[%s1290 + $0xa0] sm:$0xf]
      %v2050 = vld [vmem:[%s1290 + $0xa8] sm:$0xf]
      %v2051 = vld [vmem:[%s1290 + $0xac] sm:$0xf]
      %v2052 = vld [vmem:[%s1290 + $0xb4] sm:$0xf]
      %v2053 = vld [vmem:[%s1290 + $0xb8] sm:$0xf]
      %v2054 = vld [vmem:[%s1290 + $0x8] sm:$0x1]
      %v2055 = vld [vmem:[%s1290 + $0x14] sm:$0x1]
      %v2056 = vld [vmem:[%s1290 + $0x20] sm:$0x1]
      %v2057 = vld [vmem:[%s1290 + $0x2c] sm:$0x1]
      %v2058 = vld [vmem:[%s1290 + $0x38] sm:$0x1]
      %v2059 = vld [vmem:[%s1290 + $0x44] sm:$0x1]
      %v2060 = vld [vmem:[%s1290 + $0x50] sm:$0x1]
      %v2061 = vld [vmem:[%s1290 + $0x5c] sm:$0x1]
      %v2062 = vld [vmem:[%s1290 + $0x68] sm:$0x1]
      %v2063 = vld [vmem:[%s1290 + $0x74] sm:$0x1]
      %v2064 = vld [vmem:[%s1290 + $0x80] sm:$0x1]
      %v2065 = vld [vmem:[%s1290 + $0x8c] sm:$0x1]
      %v2066 = vld [vmem:[%s1290 + $0x98] sm:$0x1]
      %v2067 = vld [vmem:[%s1290 + $0xa4] sm:$0x1]
      %v2068 = vld [vmem:[%s1290 + $0xb0] sm:$0x1]
      %v2069 = vld [vmem:[%s1290 + $0xbc] sm:$0x1]
      %v2071 = vshrl.u32 %v2022, 16
      %v2073 = vrot.slane %v2071, 4
      %v2074 = vshll.u32 %v2022, 16
      %v2076 = vrot.slane %v2074, 5
      %v2077 = vor.u32 %v2073, %v2076
      %v2078 = vrot.slane %v2077, 4
      %v2080 = vshll.u32 %v2023, 16
      %v2082 = vrot.slane %v2080, 5
      %v2083 = vsel %vm1458, %v2078, %v2082
      %v2084 = vshrl.u32 %v2023, 16
      %v2086 = vrot.slane %v2084, 4
      %v2087 = vor.u32 %v2086, %v2082
      %v2088 = vrot.slane %v2087, 4
      %v2090 = vshll.u32 %v2054, 16
      %v2092 = vrot.slane %v2090, 5
      %v2093 = vsel %vm1458, %v2088, %v2092
      %v2095 = vshrl.u32 %v2024, 16
      %v2097 = vrot.slane %v2095, 4
      %v2098 = vshll.u32 %v2024, 16
      %v2100 = vrot.slane %v2098, 5
      %v2101 = vor.u32 %v2097, %v2100
      %v2102 = vrot.slane %v2101, 4
      %v2104 = vshll.u32 %v2025, 16
      %v2106 = vrot.slane %v2104, 5
      %v2107 = vsel %vm1458, %v2102, %v2106
      %v2108 = vshrl.u32 %v2025, 16
      %v2110 = vrot.slane %v2108, 4
      %v2111 = vor.u32 %v2110, %v2106
      %v2112 = vrot.slane %v2111, 4
      %v2114 = vshll.u32 %v2055, 16
      %v2116 = vrot.slane %v2114, 5
      %v2117 = vsel %vm1458, %v2112, %v2116
      %v2119 = vshrl.u32 %v2026, 16
      %v2121 = vrot.slane %v2119, 4
      %v2122 = vshll.u32 %v2026, 16
      %v2124 = vrot.slane %v2122, 5
      %v2125 = vor.u32 %v2121, %v2124
      %v2126 = vrot.slane %v2125, 4
      %v2128 = vshll.u32 %v2027, 16
      %v2130 = vrot.slane %v2128, 5
      %v2131 = vsel %vm1458, %v2126, %v2130
      %v2132 = vshrl.u32 %v2027, 16
      %v2134 = vrot.slane %v2132, 4
      %v2135 = vor.u32 %v2134, %v2130
      %v2136 = vrot.slane %v2135, 4
      %v2138 = vshll.u32 %v2056, 16
      %v2140 = vrot.slane %v2138, 5
      %v2141 = vsel %vm1458, %v2136, %v2140
      %v2143 = vshrl.u32 %v2028, 16
      %v2145 = vrot.slane %v2143, 4
      %v2146 = vshll.u32 %v2028, 16
      %v2148 = vrot.slane %v2146, 5
      %v2149 = vor.u32 %v2145, %v2148
      %v2150 = vrot.slane %v2149, 4
      %v2152 = vshll.u32 %v2029, 16
      %v2154 = vrot.slane %v2152, 5
      %v2155 = vsel %vm1458, %v2150, %v2154
      %v2156 = vshrl.u32 %v2029, 16
      %v2158 = vrot.slane %v2156, 4
      %v2159 = vor.u32 %v2158, %v2154
      %v2160 = vrot.slane %v2159, 4
      %v2162 = vshll.u32 %v2057, 16
      %v2164 = vrot.slane %v2162, 5
      %v2165 = vsel %vm1458, %v2160, %v2164
      %v2167 = vshrl.u32 %v2030, 16
      %v2169 = vrot.slane %v2167, 4
      %v2170 = vshll.u32 %v2030, 16
      %v2172 = vrot.slane %v2170, 5
      %v2173 = vor.u32 %v2169, %v2172
      %v2174 = vrot.slane %v2173, 4
      %v2176 = vshll.u32 %v2031, 16
      %v2178 = vrot.slane %v2176, 5
      %v2179 = vsel %vm1458, %v2174, %v2178
      %v2180 = vshrl.u32 %v2031, 16
      %v2182 = vrot.slane %v2180, 4
      %v2183 = vor.u32 %v2182, %v2178
      %v2184 = vrot.slane %v2183, 4
      %v2186 = vshll.u32 %v2058, 16
      %v2188 = vrot.slane %v2186, 5
      %v2189 = vsel %vm1458, %v2184, %v2188
      %v2191 = vshrl.u32 %v2032, 16
      %v2193 = vrot.slane %v2191, 4
      %v2194 = vshll.u32 %v2032, 16
      %v2196 = vrot.slane %v2194, 5
      %v2197 = vor.u32 %v2193, %v2196
      %v2198 = vrot.slane %v2197, 4
      %v2200 = vshll.u32 %v2033, 16
      %v2202 = vrot.slane %v2200, 5
      %v2203 = vsel %vm1458, %v2198, %v2202
      %v2204 = vshrl.u32 %v2033, 16
      %v2206 = vrot.slane %v2204, 4
      %v2207 = vor.u32 %v2206, %v2202
      %v2208 = vrot.slane %v2207, 4
      %v2210 = vshll.u32 %v2059, 16
      %v2212 = vrot.slane %v2210, 5
      %v2213 = vsel %vm1458, %v2208, %v2212
      %v2215 = vshrl.u32 %v2034, 16
      %v2217 = vrot.slane %v2215, 4
      %v2218 = vshll.u32 %v2034, 16
      %v2220 = vrot.slane %v2218, 5
      %v2221 = vor.u32 %v2217, %v2220
      %v2222 = vrot.slane %v2221, 4
      %v2224 = vshll.u32 %v2035, 16
      %v2226 = vrot.slane %v2224, 5
      %v2227 = vsel %vm1458, %v2222, %v2226
      %v2228 = vshrl.u32 %v2035, 16
      %v2230 = vrot.slane %v2228, 4
      %v2231 = vor.u32 %v2230, %v2226
      %v2232 = vrot.slane %v2231, 4
      %v2234 = vshll.u32 %v2060, 16
      %v2236 = vrot.slane %v2234, 5
      %v2237 = vsel %vm1458, %v2232, %v2236
      %v2239 = vshrl.u32 %v2036, 16
      %v2241 = vrot.slane %v2239, 4
      %v2242 = vshll.u32 %v2036, 16
      %v2244 = vrot.slane %v2242, 5
      %v2245 = vor.u32 %v2241, %v2244
      %v2246 = vrot.slane %v2245, 4
      %v2248 = vshll.u32 %v2037, 16
      %v2250 = vrot.slane %v2248, 5
      %v2251 = vsel %vm1458, %v2246, %v2250
      %v2252 = vshrl.u32 %v2037, 16
      %v2254 = vrot.slane %v2252, 4
      %v2255 = vor.u32 %v2254, %v2250
      %v2256 = vrot.slane %v2255, 4
      %v2258 = vshll.u32 %v2061, 16
      %v2260 = vrot.slane %v2258, 5
      %v2261 = vsel %vm1458, %v2256, %v2260
      %v2263 = vshrl.u32 %v2038, 16
      %v2265 = vrot.slane %v2263, 4
      %v2266 = vshll.u32 %v2038, 16
      %v2268 = vrot.slane %v2266, 5
      %v2269 = vor.u32 %v2265, %v2268
      %v2270 = vrot.slane %v2269, 4
      %v2272 = vshll.u32 %v2039, 16
      %v2274 = vrot.slane %v2272, 5
      %v2275 = vsel %vm1458, %v2270, %v2274
      %v2276 = vshrl.u32 %v2039, 16
      %v2278 = vrot.slane %v2276, 4
      %v2279 = vor.u32 %v2278, %v2274
      %v2280 = vrot.slane %v2279, 4
      %v2282 = vshll.u32 %v2062, 16
      %v2284 = vrot.slane %v2282, 5
      %v2285 = vsel %vm1458, %v2280, %v2284
      %v2287 = vshrl.u32 %v2040, 16
      %v2289 = vrot.slane %v2287, 4
      %v2290 = vshll.u32 %v2040, 16
      %v2292 = vrot.slane %v2290, 5
      %v2293 = vor.u32 %v2289, %v2292
      %v2294 = vrot.slane %v2293, 4
      %v2296 = vshll.u32 %v2041, 16
      %v2298 = vrot.slane %v2296, 5
      %v2299 = vsel %vm1458, %v2294, %v2298
      %v2300 = vshrl.u32 %v2041, 16
      %v2302 = vrot.slane %v2300, 4
      %v2303 = vor.u32 %v2302, %v2298
      %v2304 = vrot.slane %v2303, 4
      %v2306 = vshll.u32 %v2063, 16
      %v2308 = vrot.slane %v2306, 5
      %v2309 = vsel %vm1458, %v2304, %v2308
      %v2311 = vshrl.u32 %v2042, 16
      %v2313 = vrot.slane %v2311, 4
      %v2314 = vshll.u32 %v2042, 16
      %v2316 = vrot.slane %v2314, 5
      %v2317 = vor.u32 %v2313, %v2316
      %v2318 = vrot.slane %v2317, 4
      %v2320 = vshll.u32 %v2043, 16
      %v2322 = vrot.slane %v2320, 5
      %v2323 = vsel %vm1458, %v2318, %v2322
      %v2324 = vshrl.u32 %v2043, 16
      %v2326 = vrot.slane %v2324, 4
      %v2327 = vor.u32 %v2326, %v2322
      %v2328 = vrot.slane %v2327, 4
      %v2330 = vshll.u32 %v2064, 16
      %v2332 = vrot.slane %v2330, 5
      %v2333 = vsel %vm1458, %v2328, %v2332
      %v2335 = vshrl.u32 %v2044, 16
      %v2337 = vrot.slane %v2335, 4
      %v2338 = vshll.u32 %v2044, 16
      %v2340 = vrot.slane %v2338, 5
      %v2341 = vor.u32 %v2337, %v2340
      %v2342 = vrot.slane %v2341, 4
      %v2344 = vshll.u32 %v2045, 16
      %v2346 = vrot.slane %v2344, 5
      %v2347 = vsel %vm1458, %v2342, %v2346
      %v2348 = vshrl.u32 %v2045, 16
      %v2350 = vrot.slane %v2348, 4
      %v2351 = vor.u32 %v2350, %v2346
      %v2352 = vrot.slane %v2351, 4
      %v2354 = vshll.u32 %v2065, 16
      %v2356 = vrot.slane %v2354, 5
      %v2357 = vsel %vm1458, %v2352, %v2356
      %v2359 = vshrl.u32 %v2046, 16
      %v2361 = vrot.slane %v2359, 4
      %v2362 = vshll.u32 %v2046, 16
      %v2364 = vrot.slane %v2362, 5
      %v2365 = vor.u32 %v2361, %v2364
      %v2366 = vrot.slane %v2365, 4
      %v2368 = vshll.u32 %v2047, 16
      %v2370 = vrot.slane %v2368, 5
      %v2371 = vsel %vm1458, %v2366, %v2370
      %v2372 = vshrl.u32 %v2047, 16
      %v2374 = vrot.slane %v2372, 4
      %v2375 = vor.u32 %v2374, %v2370
      %v2376 = vrot.slane %v2375, 4
      %v2378 = vshll.u32 %v2066, 16
      %v2380 = vrot.slane %v2378, 5
      %v2381 = vsel %vm1458, %v2376, %v2380
      %v2383 = vshrl.u32 %v2048, 16
      %v2385 = vrot.slane %v2383, 4
      %v2386 = vshll.u32 %v2048, 16
      %v2388 = vrot.slane %v2386, 5
      %v2389 = vor.u32 %v2385, %v2388
      %v2390 = vrot.slane %v2389, 4
      %v2392 = vshll.u32 %v2049, 16
      %v2394 = vrot.slane %v2392, 5
      %v2395 = vsel %vm1458, %v2390, %v2394
      %v2396 = vshrl.u32 %v2049, 16
      %v2398 = vrot.slane %v2396, 4
      %v2399 = vor.u32 %v2398, %v2394
      %v2400 = vrot.slane %v2399, 4
      %v2402 = vshll.u32 %v2067, 16
      %v2404 = vrot.slane %v2402, 5
      %v2405 = vsel %vm1458, %v2400, %v2404
      %v2407 = vshrl.u32 %v2050, 16
      %v2409 = vrot.slane %v2407, 4
      %v2410 = vshll.u32 %v2050, 16
      %v2412 = vrot.slane %v2410, 5
      %v2413 = vor.u32 %v2409, %v2412
      %v2414 = vrot.slane %v2413, 4
      %v2416 = vshll.u32 %v2051, 16
      %v2418 = vrot.slane %v2416, 5
      %v2419 = vsel %vm1458, %v2414, %v2418
      %v2420 = vshrl.u32 %v2051, 16
      %v2422 = vrot.slane %v2420, 4
      %v2423 = vor.u32 %v2422, %v2418
      %v2424 = vrot.slane %v2423, 4
      %v2426 = vshll.u32 %v2068, 16
      %v2428 = vrot.slane %v2426, 5
      %v2429 = vsel %vm1458, %v2424, %v2428
      %v2431 = vshrl.u32 %v2052, 16
      %v2433 = vrot.slane %v2431, 4
      %v2434 = vshll.u32 %v2052, 16
      %v2436 = vrot.slane %v2434, 5
      %v2437 = vor.u32 %v2433, %v2436
      %v2438 = vrot.slane %v2437, 4
      %v2440 = vshll.u32 %v2053, 16
      %v2442 = vrot.slane %v2440, 5
      %v2443 = vsel %vm1458, %v2438, %v2442
      %v2444 = vshrl.u32 %v2053, 16
      %v2446 = vrot.slane %v2444, 4
      %v2447 = vor.u32 %v2446, %v2442
      %v2448 = vrot.slane %v2447, 4
      %v2450 = vshll.u32 %v2069, 16
      %v2452 = vrot.slane %v2450, 5
      %v2453 = vsel %vm1458, %v2448, %v2452
      %v2454 = vld [vmem:[%s1290] sm:$0xe]
      %v2455 = vld [vmem:[%s1290 + $0xc] sm:$0xe]
      %v2456 = vld [vmem:[%s1290 + $0x18] sm:$0xe]
      %v2457 = vld [vmem:[%s1290 + $0x24] sm:$0xe]
      %v2458 = vld [vmem:[%s1290 + $0x30] sm:$0xe]
      %v2459 = vld [vmem:[%s1290 + $0x3c] sm:$0xe]
      %v2460 = vld [vmem:[%s1290 + $0x48] sm:$0xe]
      %v2461 = vld [vmem:[%s1290 + $0x54] sm:$0xe]
      %v2462 = vld [vmem:[%s1290 + $0x60] sm:$0xe]
      %v2463 = vld [vmem:[%s1290 + $0x6c] sm:$0xe]
      %v2464 = vld [vmem:[%s1290 + $0x78] sm:$0xe]
      %v2465 = vld [vmem:[%s1290 + $0x84] sm:$0xe]
      %v2466 = vld [vmem:[%s1290 + $0x90] sm:$0xe]
      %v2467 = vld [vmem:[%s1290 + $0x9c] sm:$0xe]
      %v2468 = vld [vmem:[%s1290 + $0xa8] sm:$0xe]
      %v2469 = vld [vmem:[%s1290 + $0xb4] sm:$0xe]
      %v2518 = vrot.slane %v2454, 5
      %v2519 = vrot.slane %v2518, 4
      %v2520 = vrot.slane %v2023, 5
      %v2521 = vsel %vm1909, %v2519, %v2520
      %v2522 = vrot.slane %v2520, 4
      %v2523 = vrot.slane %v2054, 5
      %v2524 = vsel %vm1909, %v2522, %v2523
      %v2525 = vrot.slane %v2455, 5
      %v2526 = vrot.slane %v2525, 4
      %v2527 = vrot.slane %v2025, 5
      %v2528 = vsel %vm1909, %v2526, %v2527
      %v2529 = vrot.slane %v2527, 4
      %v2530 = vrot.slane %v2055, 5
      %v2531 = vsel %vm1909, %v2529, %v2530
      %v2532 = vrot.slane %v2456, 5
      %v2533 = vrot.slane %v2532, 4
      %v2534 = vrot.slane %v2027, 5
      %v2535 = vsel %vm1909, %v2533, %v2534
      %v2536 = vrot.slane %v2534, 4
      %v2537 = vrot.slane %v2056, 5
      %v2538 = vsel %vm1909, %v2536, %v2537
      %v2539 = vrot.slane %v2457, 5
      %v2540 = vrot.slane %v2539, 4
      %v2541 = vrot.slane %v2029, 5
      %v2542 = vsel %vm1909, %v2540, %v2541
      %v2543 = vrot.slane %v2541, 4
      %v2544 = vrot.slane %v2057, 5
      %v2545 = vsel %vm1909, %v2543, %v2544
      %v2546 = vrot.slane %v2458, 5
      %v2547 = vrot.slane %v2546, 4
      %v2548 = vrot.slane %v2031, 5
      %v2549 = vsel %vm1909, %v2547, %v2548
      %v2550 = vrot.slane %v2548, 4
      %v2551 = vrot.slane %v2058, 5
      %v2552 = vsel %vm1909, %v2550, %v2551
      %v2553 = vrot.slane %v2459, 5
      %v2554 = vrot.slane %v2553, 4
      %v2555 = vrot.slane %v2033, 5
      %v2556 = vsel %vm1909, %v2554, %v2555
      %v2557 = vrot.slane %v2555, 4
      %v2558 = vrot.slane %v2059, 5
      %v2559 = vsel %vm1909, %v2557, %v2558
      %v2560 = vrot.slane %v2460, 5
      %v2561 = vrot.slane %v2560, 4
      %v2562 = vrot.slane %v2035, 5
      %v2563 = vsel %vm1909, %v2561, %v2562
      %v2564 = vrot.slane %v2562, 4
      %v2565 = vrot.slane %v2060, 5
      %v2566 = vsel %vm1909, %v2564, %v2565
      %v2567 = vrot.slane %v2461, 5
      %v2568 = vrot.slane %v2567, 4
      %v2569 = vrot.slane %v2037, 5
      %v2570 = vsel %vm1909, %v2568, %v2569
      %v2571 = vrot.slane %v2569, 4
      %v2572 = vrot.slane %v2061, 5
      %v2573 = vsel %vm1909, %v2571, %v2572
      %v2574 = vrot.slane %v2462, 5
      %v2575 = vrot.slane %v2574, 4
      %v2576 = vrot.slane %v2039, 5
      %v2577 = vsel %vm1909, %v2575, %v2576
      %v2578 = vrot.slane %v2576, 4
      %v2579 = vrot.slane %v2062, 5
      %v2580 = vsel %vm1909, %v2578, %v2579
      %v2581 = vrot.slane %v2463, 5
      %v2582 = vrot.slane %v2581, 4
      %v2583 = vrot.slane %v2041, 5
      %v2584 = vsel %vm1909, %v2582, %v2583
      %v2585 = vrot.slane %v2583, 4
      %v2586 = vrot.slane %v2063, 5
      %v2587 = vsel %vm1909, %v2585, %v2586
      %v2588 = vrot.slane %v2464, 5
      %v2589 = vrot.slane %v2588, 4
      %v2590 = vrot.slane %v2043, 5
      %v2591 = vsel %vm1909, %v2589, %v2590
      %v2592 = vrot.slane %v2590, 4
      %v2593 = vrot.slane %v2064, 5
      %v2594 = vsel %vm1909, %v2592, %v2593
      %v2595 = vrot.slane %v2465, 5
      %v2596 = vrot.slane %v2595, 4
      %v2597 = vrot.slane %v2045, 5
      %v2598 = vsel %vm1909, %v2596, %v2597
      %v2599 = vrot.slane %v2597, 4
      %v2600 = vrot.slane %v2065, 5
      %v2601 = vsel %vm1909, %v2599, %v2600
      %v2602 = vrot.slane %v2466, 5
      %v2603 = vrot.slane %v2602, 4
      %v2604 = vrot.slane %v2047, 5
      %v2605 = vsel %vm1909, %v2603, %v2604
      %v2606 = vrot.slane %v2604, 4
      %v2607 = vrot.slane %v2066, 5
      %v2608 = vsel %vm1909, %v2606, %v2607
      %v2609 = vrot.slane %v2467, 5
      %v2610 = vrot.slane %v2609, 4
      %v2611 = vrot.slane %v2049, 5
      %v2612 = vsel %vm1909, %v2610, %v2611
      %v2613 = vrot.slane %v2611, 4
      %v2614 = vrot.slane %v2067, 5
      %v2615 = vsel %vm1909, %v2613, %v2614
      %v2616 = vrot.slane %v2468, 5
      %v2617 = vrot.slane %v2616, 4
      %v2618 = vrot.slane %v2051, 5
      %v2619 = vsel %vm1909, %v2617, %v2618
      %v2620 = vrot.slane %v2618, 4
      %v2621 = vrot.slane %v2068, 5
      %v2622 = vsel %vm1909, %v2620, %v2621
      %v2623 = vrot.slane %v2469, 5
      %v2624 = vrot.slane %v2623, 4
      %v2625 = vrot.slane %v2053, 5
      %v2626 = vsel %vm1909, %v2624, %v2625
      %v2627 = vrot.slane %v2625, 4
      %v2628 = vrot.slane %v2069, 5
      %v2629 = vsel %vm1909, %v2627, %v2628
      %s2630 = scalar_lea.vmem [#allocation2], 24
      %v2631 = vld [vmem:[%s2630] sm:$0xf]
      %v2632 = vld [vmem:[%s2630 + $0x4] sm:$0xf]
      %v2633 = vld [vmem:[%s2630 + $0xc] sm:$0xf]
      %v2634 = vld [vmem:[%s2630 + $0x10] sm:$0xf]
      %v2635 = vld [vmem:[%s2630 + $0x18] sm:$0xf]
      %v2636 = vld [vmem:[%s2630 + $0x1c] sm:$0xf]
      %v2637 = vld [vmem:[%s2630 + $0x24] sm:$0xf]
      %v2638 = vld [vmem:[%s2630 + $0x28] sm:$0xf]
      %v2639 = vld [vmem:[%s2630 + $0x30] sm:$0xf]
      %v2640 = vld [vmem:[%s2630 + $0x34] sm:$0xf]
      %v2641 = vld [vmem:[%s2630 + $0x3c] sm:$0xf]
      %v2642 = vld [vmem:[%s2630 + $0x40] sm:$0xf]
      %v2643 = vld [vmem:[%s2630 + $0x48] sm:$0xf]
      %v2644 = vld [vmem:[%s2630 + $0x4c] sm:$0xf]
      %v2645 = vld [vmem:[%s2630 + $0x54] sm:$0xf]
      %v2646 = vld [vmem:[%s2630 + $0x58] sm:$0xf]
      %v2647 = vld [vmem:[%s2630 + $0x60] sm:$0xf]
      %v2648 = vld [vmem:[%s2630 + $0x64] sm:$0xf]
      %v2649 = vld [vmem:[%s2630 + $0x6c] sm:$0xf]
      %v2650 = vld [vmem:[%s2630 + $0x70] sm:$0xf]
      %v2651 = vld [vmem:[%s2630 + $0x78] sm:$0xf]
      %v2652 = vld [vmem:[%s2630 + $0x7c] sm:$0xf]
      %v2653 = vld [vmem:[%s2630 + $0x84] sm:$0xf]
      %v2654 = vld [vmem:[%s2630 + $0x88] sm:$0xf]
      %v2655 = vld [vmem:[%s2630 + $0x90] sm:$0xf]
      %v2656 = vld [vmem:[%s2630 + $0x94] sm:$0xf]
      %v2657 = vld [vmem:[%s2630 + $0x9c] sm:$0xf]
      %v2658 = vld [vmem:[%s2630 + $0xa0] sm:$0xf]
      %v2659 = vld [vmem:[%s2630 + $0xa8] sm:$0xf]
      %v2660 = vld [vmem:[%s2630 + $0xac] sm:$0xf]
      %v2661 = vld [vmem:[%s2630 + $0xb4] sm:$0xf]
      %v2662 = vld [vmem:[%s2630 + $0xb8] sm:$0xf]
      %v2663 = vld [vmem:[%s2630 + $0x8] sm:$0x1]
      %v2664 = vld [vmem:[%s2630 + $0x14] sm:$0x1]
      %v2665 = vld [vmem:[%s2630 + $0x20] sm:$0x1]
      %v2666 = vld [vmem:[%s2630 + $0x2c] sm:$0x1]
      %v2667 = vld [vmem:[%s2630 + $0x38] sm:$0x1]
      %v2668 = vld [vmem:[%s2630 + $0x44] sm:$0x1]
      %v2669 = vld [vmem:[%s2630 + $0x50] sm:$0x1]
      %v2670 = vld [vmem:[%s2630 + $0x5c] sm:$0x1]
      %v2671 = vld [vmem:[%s2630 + $0x68] sm:$0x1]
      %v2672 = vld [vmem:[%s2630 + $0x74] sm:$0x1]
      %v2673 = vld [vmem:[%s2630 + $0x80] sm:$0x1]
      %v2674 = vld [vmem:[%s2630 + $0x8c] sm:$0x1]
      %v2675 = vld [vmem:[%s2630 + $0x98] sm:$0x1]
      %v2676 = vld [vmem:[%s2630 + $0xa4] sm:$0x1]
      %v2677 = vld [vmem:[%s2630 + $0xb0] sm:$0x1]
      %v2678 = vld [vmem:[%s2630 + $0xbc] sm:$0x1]
      %v2680 = vshrl.u32 %v2631, 16
      %v2682 = vrot.slane %v2680, 4
      %v2683 = vshll.u32 %v2631, 16
      %v2685 = vrot.slane %v2683, 5
      %v2686 = vor.u32 %v2682, %v2685
      %v2687 = vrot.slane %v2686, 4
      %v2689 = vshll.u32 %v2632, 16
      %v2691 = vrot.slane %v2689, 5
      %v2692 = vsel %vm1458, %v2687, %v2691
      %v2693 = vshrl.u32 %v2632, 16
      %v2695 = vrot.slane %v2693, 4
      %v2696 = vor.u32 %v2695, %v2691
      %v2697 = vrot.slane %v2696, 4
      %v2699 = vshll.u32 %v2663, 16
      %v2701 = vrot.slane %v2699, 5
      %v2702 = vsel %vm1458, %v2697, %v2701
      %v2704 = vshrl.u32 %v2633, 16
      %v2706 = vrot.slane %v2704, 4
      %v2707 = vshll.u32 %v2633, 16
      %v2709 = vrot.slane %v2707, 5
      %v2710 = vor.u32 %v2706, %v2709
      %v2711 = vrot.slane %v2710, 4
      %v2713 = vshll.u32 %v2634, 16
      %v2715 = vrot.slane %v2713, 5
      %v2716 = vsel %vm1458, %v2711, %v2715
      %v2717 = vshrl.u32 %v2634, 16
      %v2719 = vrot.slane %v2717, 4
      %v2720 = vor.u32 %v2719, %v2715
      %v2721 = vrot.slane %v2720, 4
      %v2723 = vshll.u32 %v2664, 16
      %v2725 = vrot.slane %v2723, 5
      %v2726 = vsel %vm1458, %v2721, %v2725
      %v2728 = vshrl.u32 %v2635, 16
      %v2730 = vrot.slane %v2728, 4
      %v2731 = vshll.u32 %v2635, 16
      %v2733 = vrot.slane %v2731, 5
      %v2734 = vor.u32 %v2730, %v2733
      %v2735 = vrot.slane %v2734, 4
      %v2737 = vshll.u32 %v2636, 16
      %v2739 = vrot.slane %v2737, 5
      %v2740 = vsel %vm1458, %v2735, %v2739
      %v2741 = vshrl.u32 %v2636, 16
      %v2743 = vrot.slane %v2741, 4
      %v2744 = vor.u32 %v2743, %v2739
      %v2745 = vrot.slane %v2744, 4
      %v2747 = vshll.u32 %v2665, 16
      %v2749 = vrot.slane %v2747, 5
      %v2750 = vsel %vm1458, %v2745, %v2749
      %v2752 = vshrl.u32 %v2637, 16
      %v2754 = vrot.slane %v2752, 4
      %v2755 = vshll.u32 %v2637, 16
      %v2757 = vrot.slane %v2755, 5
      %v2758 = vor.u32 %v2754, %v2757
      %v2759 = vrot.slane %v2758, 4
      %v2761 = vshll.u32 %v2638, 16
      %v2763 = vrot.slane %v2761, 5
      %v2764 = vsel %vm1458, %v2759, %v2763
      %v2765 = vshrl.u32 %v2638, 16
      %v2767 = vrot.slane %v2765, 4
      %v2768 = vor.u32 %v2767, %v2763
      %v2769 = vrot.slane %v2768, 4
      %v2771 = vshll.u32 %v2666, 16
      %v2773 = vrot.slane %v2771, 5
      %v2774 = vsel %vm1458, %v2769, %v2773
      %v2776 = vshrl.u32 %v2639, 16
      %v2778 = vrot.slane %v2776, 4
      %v2779 = vshll.u32 %v2639, 16
      %v2781 = vrot.slane %v2779, 5
      %v2782 = vor.u32 %v2778, %v2781
      %v2783 = vrot.slane %v2782, 4
      %v2785 = vshll.u32 %v2640, 16
      %v2787 = vrot.slane %v2785, 5
      %v2788 = vsel %vm1458, %v2783, %v2787
      %v2789 = vshrl.u32 %v2640, 16
      %v2791 = vrot.slane %v2789, 4
      %v2792 = vor.u32 %v2791, %v2787
      %v2793 = vrot.slane %v2792, 4
      %v2795 = vshll.u32 %v2667, 16
      %v2797 = vrot.slane %v2795, 5
      %v2798 = vsel %vm1458, %v2793, %v2797
      %v2800 = vshrl.u32 %v2641, 16
      %v2802 = vrot.slane %v2800, 4
      %v2803 = vshll.u32 %v2641, 16
      %v2805 = vrot.slane %v2803, 5
      %v2806 = vor.u32 %v2802, %v2805
      %v2807 = vrot.slane %v2806, 4
      %v2809 = vshll.u32 %v2642, 16
      %v2811 = vrot.slane %v2809, 5
      %v2812 = vsel %vm1458, %v2807, %v2811
      %v2813 = vshrl.u32 %v2642, 16
      %v2815 = vrot.slane %v2813, 4
      %v2816 = vor.u32 %v2815, %v2811
      %v2817 = vrot.slane %v2816, 4
      %v2819 = vshll.u32 %v2668, 16
      %v2821 = vrot.slane %v2819, 5
      %v2822 = vsel %vm1458, %v2817, %v2821
      %v2824 = vshrl.u32 %v2643, 16
      %v2826 = vrot.slane %v2824, 4
      %v2827 = vshll.u32 %v2643, 16
      %v2829 = vrot.slane %v2827, 5
      %v2830 = vor.u32 %v2826, %v2829
      %v2831 = vrot.slane %v2830, 4
      %v2833 = vshll.u32 %v2644, 16
      %v2835 = vrot.slane %v2833, 5
      %v2836 = vsel %vm1458, %v2831, %v2835
      %v2837 = vshrl.u32 %v2644, 16
      %v2839 = vrot.slane %v2837, 4
      %v2840 = vor.u32 %v2839, %v2835
      %v2841 = vrot.slane %v2840, 4
      %v2843 = vshll.u32 %v2669, 16
      %v2845 = vrot.slane %v2843, 5
      %v2846 = vsel %vm1458, %v2841, %v2845
      %v2848 = vshrl.u32 %v2645, 16
      %v2850 = vrot.slane %v2848, 4
      %v2851 = vshll.u32 %v2645, 16
      %v2853 = vrot.slane %v2851, 5
      %v2854 = vor.u32 %v2850, %v2853
      %v2855 = vrot.slane %v2854, 4
      %v2857 = vshll.u32 %v2646, 16
      %v2859 = vrot.slane %v2857, 5
      %v2860 = vsel %vm1458, %v2855, %v2859
      %v2861 = vshrl.u32 %v2646, 16
      %v2863 = vrot.slane %v2861, 4
      %v2864 = vor.u32 %v2863, %v2859
      %v2865 = vrot.slane %v2864, 4
      %v2867 = vshll.u32 %v2670, 16
      %v2869 = vrot.slane %v2867, 5
      %v2870 = vsel %vm1458, %v2865, %v2869
      %v2872 = vshrl.u32 %v2647, 16
      %v2874 = vrot.slane %v2872, 4
      %v2875 = vshll.u32 %v2647, 16
      %v2877 = vrot.slane %v2875, 5
      %v2878 = vor.u32 %v2874, %v2877
      %v2879 = vrot.slane %v2878, 4
      %v2881 = vshll.u32 %v2648, 16
      %v2883 = vrot.slane %v2881, 5
      %v2884 = vsel %vm1458, %v2879, %v2883
      %v2885 = vshrl.u32 %v2648, 16
      %v2887 = vrot.slane %v2885, 4
      %v2888 = vor.u32 %v2887, %v2883
      %v2889 = vrot.slane %v2888, 4
      %v2891 = vshll.u32 %v2671, 16
      %v2893 = vrot.slane %v2891, 5
      %v2894 = vsel %vm1458, %v2889, %v2893
      %v2896 = vshrl.u32 %v2649, 16
      %v2898 = vrot.slane %v2896, 4
      %v2899 = vshll.u32 %v2649, 16
      %v2901 = vrot.slane %v2899, 5
      %v2902 = vor.u32 %v2898, %v2901
      %v2903 = vrot.slane %v2902, 4
      %v2905 = vshll.u32 %v2650, 16
      %v2907 = vrot.slane %v2905, 5
      %v2908 = vsel %vm1458, %v2903, %v2907
      %v2909 = vshrl.u32 %v2650, 16
      %v2911 = vrot.slane %v2909, 4
      %v2912 = vor.u32 %v2911, %v2907
      %v2913 = vrot.slane %v2912, 4
      %v2915 = vshll.u32 %v2672, 16
      %v2917 = vrot.slane %v2915, 5
      %v2918 = vsel %vm1458, %v2913, %v2917
      %v2920 = vshrl.u32 %v2651, 16
      %v2922 = vrot.slane %v2920, 4
      %v2923 = vshll.u32 %v2651, 16
      %v2925 = vrot.slane %v2923, 5
      %v2926 = vor.u32 %v2922, %v2925
      %v2927 = vrot.slane %v2926, 4
      %v2929 = vshll.u32 %v2652, 16
      %v2931 = vrot.slane %v2929, 5
      %v2932 = vsel %vm1458, %v2927, %v2931
      %v2933 = vshrl.u32 %v2652, 16
      %v2935 = vrot.slane %v2933, 4
      %v2936 = vor.u32 %v2935, %v2931
      %v2937 = vrot.slane %v2936, 4
      %v2939 = vshll.u32 %v2673, 16
      %v2941 = vrot.slane %v2939, 5
      %v2942 = vsel %vm1458, %v2937, %v2941
      %v2944 = vshrl.u32 %v2653, 16
      %v2946 = vrot.slane %v2944, 4
      %v2947 = vshll.u32 %v2653, 16
      %v2949 = vrot.slane %v2947, 5
      %v2950 = vor.u32 %v2946, %v2949
      %v2951 = vrot.slane %v2950, 4
      %v2953 = vshll.u32 %v2654, 16
      %v2955 = vrot.slane %v2953, 5
      %v2956 = vsel %vm1458, %v2951, %v2955
      %v2957 = vshrl.u32 %v2654, 16
      %v2959 = vrot.slane %v2957, 4
      %v2960 = vor.u32 %v2959, %v2955
      %v2961 = vrot.slane %v2960, 4
      %v2963 = vshll.u32 %v2674, 16
      %v2965 = vrot.slane %v2963, 5
      %v2966 = vsel %vm1458, %v2961, %v2965
      %v2968 = vshrl.u32 %v2655, 16
      %v2970 = vrot.slane %v2968, 4
      %v2971 = vshll.u32 %v2655, 16
      %v2973 = vrot.slane %v2971, 5
      %v2974 = vor.u32 %v2970, %v2973
      %v2975 = vrot.slane %v2974, 4
      %v2977 = vshll.u32 %v2656, 16
      %v2979 = vrot.slane %v2977, 5
      %v2980 = vsel %vm1458, %v2975, %v2979
      %v2981 = vshrl.u32 %v2656, 16
      %v2983 = vrot.slane %v2981, 4
      %v2984 = vor.u32 %v2983, %v2979
      %v2985 = vrot.slane %v2984, 4
      %v2987 = vshll.u32 %v2675, 16
      %v2989 = vrot.slane %v2987, 5
      %v2990 = vsel %vm1458, %v2985, %v2989
      %v2992 = vshrl.u32 %v2657, 16
      %v2994 = vrot.slane %v2992, 4
      %v2995 = vshll.u32 %v2657, 16
      %v2997 = vrot.slane %v2995, 5
      %v2998 = vor.u32 %v2994, %v2997
      %v2999 = vrot.slane %v2998, 4
      %v3001 = vshll.u32 %v2658, 16
      %v3003 = vrot.slane %v3001, 5
      %v3004 = vsel %vm1458, %v2999, %v3003
      %v3005 = vshrl.u32 %v2658, 16
      %v3007 = vrot.slane %v3005, 4
      %v3008 = vor.u32 %v3007, %v3003
      %v3009 = vrot.slane %v3008, 4
      %v3011 = vshll.u32 %v2676, 16
      %v3013 = vrot.slane %v3011, 5
      %v3014 = vsel %vm1458, %v3009, %v3013
      %v3016 = vshrl.u32 %v2659, 16
      %v3018 = vrot.slane %v3016, 4
      %v3019 = vshll.u32 %v2659, 16
      %v3021 = vrot.slane %v3019, 5
      %v3022 = vor.u32 %v3018, %v3021
      %v3023 = vrot.slane %v3022, 4
      %v3025 = vshll.u32 %v2660, 16
      %v3027 = vrot.slane %v3025, 5
      %v3028 = vsel %vm1458, %v3023, %v3027
      %v3029 = vshrl.u32 %v2660, 16
      %v3031 = vrot.slane %v3029, 4
      %v3032 = vor.u32 %v3031, %v3027
      %v3033 = vrot.slane %v3032, 4
      %v3035 = vshll.u32 %v2677, 16
      %v3037 = vrot.slane %v3035, 5
      %v3038 = vsel %vm1458, %v3033, %v3037
      %v3040 = vshrl.u32 %v2661, 16
      %v3042 = vrot.slane %v3040, 4
      %v3043 = vshll.u32 %v2661, 16
      %v3045 = vrot.slane %v3043, 5
      %v3046 = vor.u32 %v3042, %v3045
      %v3047 = vrot.slane %v3046, 4
      %v3049 = vshll.u32 %v2662, 16
      %v3051 = vrot.slane %v3049, 5
      %v3052 = vsel %vm1458, %v3047, %v3051
      %v3053 = vshrl.u32 %v2662, 16
      %v3055 = vrot.slane %v3053, 4
      %v3056 = vor.u32 %v3055, %v3051
      %v3057 = vrot.slane %v3056, 4
      %v3059 = vshll.u32 %v2678, 16
      %v3061 = vrot.slane %v3059, 5
      %v3062 = vsel %vm1458, %v3057, %v3061
      %v3063 = vld [vmem:[%s2630] sm:$0xe]
      %v3064 = vld [vmem:[%s2630 + $0xc] sm:$0xe]
      %v3065 = vld [vmem:[%s2630 + $0x18] sm:$0xe]
      %v3066 = vld [vmem:[%s2630 + $0x24] sm:$0xe]
      %v3067 = vld [vmem:[%s2630 + $0x30] sm:$0xe]
      %v3068 = vld [vmem:[%s2630 + $0x3c] sm:$0xe]
      %v3069 = vld [vmem:[%s2630 + $0x48] sm:$0xe]
      %v3070 = vld [vmem:[%s2630 + $0x54] sm:$0xe]
      %v3071 = vld [vmem:[%s2630 + $0x60] sm:$0xe]
      %v3072 = vld [vmem:[%s2630 + $0x6c] sm:$0xe]
      %v3073 = vld [vmem:[%s2630 + $0x78] sm:$0xe]
      %v3074 = vld [vmem:[%s2630 + $0x84] sm:$0xe]
      %v3075 = vld [vmem:[%s2630 + $0x90] sm:$0xe]
      %v3076 = vld [vmem:[%s2630 + $0x9c] sm:$0xe]
      %v3077 = vld [vmem:[%s2630 + $0xa8] sm:$0xe]
      %v3078 = vld [vmem:[%s2630 + $0xb4] sm:$0xe]
      %v3127 = vrot.slane %v3063, 5
      %v3128 = vrot.slane %v3127, 4
      %v3129 = vrot.slane %v2632, 5
      %v3130 = vsel %vm1909, %v3128, %v3129
      %v3131 = vrot.slane %v3129, 4
      %v3132 = vrot.slane %v2663, 5
      %v3133 = vsel %vm1909, %v3131, %v3132
      %v3134 = vrot.slane %v3064, 5
      %v3135 = vrot.slane %v3134, 4
      %v3136 = vrot.slane %v2634, 5
      %v3137 = vsel %vm1909, %v3135, %v3136
      %v3138 = vrot.slane %v3136, 4
      %v3139 = vrot.slane %v2664, 5
      %v3140 = vsel %vm1909, %v3138, %v3139
      %v3141 = vrot.slane %v3065, 5
      %v3142 = vrot.slane %v3141, 4
      %v3143 = vrot.slane %v2636, 5
      %v3144 = vsel %vm1909, %v3142, %v3143
      %v3145 = vrot.slane %v3143, 4
      %v3146 = vrot.slane %v2665, 5
      %v3147 = vsel %vm1909, %v3145, %v3146
      %v3148 = vrot.slane %v3066, 5
      %v3149 = vrot.slane %v3148, 4
      %v3150 = vrot.slane %v2638, 5
      %v3151 = vsel %vm1909, %v3149, %v3150
      %v3152 = vrot.slane %v3150, 4
      %v3153 = vrot.slane %v2666, 5
      %v3154 = vsel %vm1909, %v3152, %v3153
      %v3155 = vrot.slane %v3067, 5
      %v3156 = vrot.slane %v3155, 4
      %v3157 = vrot.slane %v2640, 5
      %v3158 = vsel %vm1909, %v3156, %v3157
      %v3159 = vrot.slane %v3157, 4
      %v3160 = vrot.slane %v2667, 5
      %v3161 = vsel %vm1909, %v3159, %v3160
      %v3162 = vrot.slane %v3068, 5
      %v3163 = vrot.slane %v3162, 4
      %v3164 = vrot.slane %v2642, 5
      %v3165 = vsel %vm1909, %v3163, %v3164
      %v3166 = vrot.slane %v3164, 4
      %v3167 = vrot.slane %v2668, 5
      %v3168 = vsel %vm1909, %v3166, %v3167
      %v3169 = vrot.slane %v3069, 5
      %v3170 = vrot.slane %v3169, 4
      %v3171 = vrot.slane %v2644, 5
      %v3172 = vsel %vm1909, %v3170, %v3171
      %v3173 = vrot.slane %v3171, 4
      %v3174 = vrot.slane %v2669, 5
      %v3175 = vsel %vm1909, %v3173, %v3174
      %v3176 = vrot.slane %v3070, 5
      %v3177 = vrot.slane %v3176, 4
      %v3178 = vrot.slane %v2646, 5
      %v3179 = vsel %vm1909, %v3177, %v3178
      %v3180 = vrot.slane %v3178, 4
      %v3181 = vrot.slane %v2670, 5
      %v3182 = vsel %vm1909, %v3180, %v3181
      %v3183 = vrot.slane %v3071, 5
      %v3184 = vrot.slane %v3183, 4
      %v3185 = vrot.slane %v2648, 5
      %v3186 = vsel %vm1909, %v3184, %v3185
      %v3187 = vrot.slane %v3185, 4
      %v3188 = vrot.slane %v2671, 5
      %v3189 = vsel %vm1909, %v3187, %v3188
      %v3190 = vrot.slane %v3072, 5
      %v3191 = vrot.slane %v3190, 4
      %v3192 = vrot.slane %v2650, 5
      %v3193 = vsel %vm1909, %v3191, %v3192
      %v3194 = vrot.slane %v3192, 4
      %v3195 = vrot.slane %v2672, 5
      %v3196 = vsel %vm1909, %v3194, %v3195
      %v3197 = vrot.slane %v3073, 5
      %v3198 = vrot.slane %v3197, 4
      %v3199 = vrot.slane %v2652, 5
      %v3200 = vsel %vm1909, %v3198, %v3199
      %v3201 = vrot.slane %v3199, 4
      %v3202 = vrot.slane %v2673, 5
      %v3203 = vsel %vm1909, %v3201, %v3202
      %v3204 = vrot.slane %v3074, 5
      %v3205 = vrot.slane %v3204, 4
      %v3206 = vrot.slane %v2654, 5
      %v3207 = vsel %vm1909, %v3205, %v3206
      %v3208 = vrot.slane %v3206, 4
      %v3209 = vrot.slane %v2674, 5
      %v3210 = vsel %vm1909, %v3208, %v3209
      %v3211 = vrot.slane %v3075, 5
      %v3212 = vrot.slane %v3211, 4
      %v3213 = vrot.slane %v2656, 5
      %v3214 = vsel %vm1909, %v3212, %v3213
      %v3215 = vrot.slane %v3213, 4
      %v3216 = vrot.slane %v2675, 5
      %v3217 = vsel %vm1909, %v3215, %v3216
      %v3218 = vrot.slane %v3076, 5
      %v3219 = vrot.slane %v3218, 4
      %v3220 = vrot.slane %v2658, 5
      %v3221 = vsel %vm1909, %v3219, %v3220
      %v3222 = vrot.slane %v3220, 4
      %v3223 = vrot.slane %v2676, 5
      %v3224 = vsel %vm1909, %v3222, %v3223
      %v3225 = vrot.slane %v3077, 5
      %v3226 = vrot.slane %v3225, 4
      %v3227 = vrot.slane %v2660, 5
      %v3228 = vsel %vm1909, %v3226, %v3227
      %v3229 = vrot.slane %v3227, 4
      %v3230 = vrot.slane %v2677, 5
      %v3231 = vsel %vm1909, %v3229, %v3230
      %v3232 = vrot.slane %v3078, 5
      %v3233 = vrot.slane %v3232, 4
      %v3234 = vrot.slane %v2662, 5
      %v3235 = vsel %vm1909, %v3233, %v3234
      %v3236 = vrot.slane %v3234, 4
      %v3237 = vrot.slane %v2678, 5
      %v3238 = vsel %vm1909, %v3236, %v3237
      %v3255 = vunpack.c.l.b16 %v1408
      %v3256 = vunpack.c.l.b16 %v1409
      %v3257 = vunpack.c.l.b16 %v1410
      %v3258 = vunpack.c.l.b16 %v1411
      %v3259 = vunpack.c.l.b16 %v1412
      %v3260 = vunpack.c.l.b16 %v1413
      %v3261 = vunpack.c.l.b16 %v1414
      %v3262 = vunpack.c.l.b16 %v1415
      %v3263 = vunpack.c.l.b16 %v1416
      %v3264 = vunpack.c.l.b16 %v1417
      %v3265 = vunpack.c.l.b16 %v1418
      %v3266 = vunpack.c.l.b16 %v1419
      %v3267 = vunpack.c.l.b16 %v1420
      %v3268 = vunpack.c.l.b16 %v1421
      %v3269 = vunpack.c.l.b16 %v1422
      %v3270 = vunpack.c.l.b16 %v1423
      %v3271 = vunpack.c.l.b16 %v1424
      %v3272 = vunpack.c.l.b16 %v1425
      %v3273 = vunpack.c.l.b16 %v1426
      %v3274 = vunpack.c.l.b16 %v1427
      %v3275 = vunpack.c.l.b16 %v1428
      %v3276 = vunpack.c.l.b16 %v1429
      %v3277 = vunpack.c.l.b16 %v1430
      %v3278 = vunpack.c.l.b16 %v1431
      %v3279 = vunpack.c.l.b16 %v1432
      %v3280 = vunpack.c.l.b16 %v1433
      %v3281 = vunpack.c.l.b16 %v1434
      %v3282 = vunpack.c.l.b16 %v1435
      %v3283 = vunpack.c.l.b16 %v1436
      %v3284 = vunpack.c.l.b16 %v1437
      %v3285 = vunpack.c.l.b16 %v1438
      %v3286 = vunpack.c.l.b16 %v1439
      %v3287 = vpack.c.b16 %v3256, %v3255
      %v3288 = vpack.c.b16 %v3258, %v3257
      %v3289 = vpack.c.b16 %v3260, %v3259
      %v3290 = vpack.c.b16 %v3262, %v3261
      %v3291 = vpack.c.b16 %v3264, %v3263
      %v3292 = vpack.c.b16 %v3266, %v3265
      %v3293 = vpack.c.b16 %v3268, %v3267
      %v3294 = vpack.c.b16 %v3270, %v3269
      %v3295 = vpack.c.b16 %v3272, %v3271
      %v3296 = vpack.c.b16 %v3274, %v3273
      %v3297 = vpack.c.b16 %v3276, %v3275
      %v3298 = vpack.c.b16 %v3278, %v3277
      %v3299 = vpack.c.b16 %v3280, %v3279
      %v3300 = vpack.c.b16 %v3282, %v3281
      %v3301 = vpack.c.b16 %v3284, %v3283
      %v3302 = vpack.c.b16 %v3286, %v3285
      %v3303 = vunpack.c.l.b16 %v1472
      %v3304 = vunpack.c.l.b16 %v1482
      %v3305 = vunpack.c.l.b16 %v1496
      %v3306 = vunpack.c.l.b16 %v1506
      %v3307 = vunpack.c.l.b16 %v1520
      %v3308 = vunpack.c.l.b16 %v1530
      %v3309 = vunpack.c.l.b16 %v1544
      %v3310 = vunpack.c.l.b16 %v1554
      %v3311 = vunpack.c.l.b16 %v1568
      %v3312 = vunpack.c.l.b16 %v1578
      %v3313 = vunpack.c.l.b16 %v1592
      %v3314 = vunpack.c.l.b16 %v1602
      %v3315 = vunpack.c.l.b16 %v1616
      %v3316 = vunpack.c.l.b16 %v1626
      %v3317 = vunpack.c.l.b16 %v1640
      %v3318 = vunpack.c.l.b16 %v1650
      %v3319 = vunpack.c.l.b16 %v1664
      %v3320 = vunpack.c.l.b16 %v1674
      %v3321 = vunpack.c.l.b16 %v1688
      %v3322 = vunpack.c.l.b16 %v1698
      %v3323 = vunpack.c.l.b16 %v1712
      %v3324 = vunpack.c.l.b16 %v1722
      %v3325 = vunpack.c.l.b16 %v1736
      %v3326 = vunpack.c.l.b16 %v1746
      %v3327 = vunpack.c.l.b16 %v1760
      %v3328 = vunpack.c.l.b16 %v1770
      %v3329 = vunpack.c.l.b16 %v1784
      %v3330 = vunpack.c.l.b16 %v1794
      %v3331 = vunpack.c.l.b16 %v1808
      %v3332 = vunpack.c.l.b16 %v1818
      %v3333 = vunpack.c.l.b16 %v1832
      %v3334 = vunpack.c.l.b16 %v1842
      %v3335 = vpack.c.b16 %v3304, %v3303
      %v3336 = vpack.c.b16 %v3306, %v3305
      %v3337 = vpack.c.b16 %v3308, %v3307
      %v3338 = vpack.c.b16 %v3310, %v3309
      %v3339 = vpack.c.b16 %v3312, %v3311
      %v3340 = vpack.c.b16 %v3314, %v3313
      %v3341 = vpack.c.b16 %v3316, %v3315
      %v3342 = vpack.c.b16 %v3318, %v3317
      %v3343 = vpack.c.b16 %v3320, %v3319
      %v3344 = vpack.c.b16 %v3322, %v3321
      %v3345 = vpack.c.b16 %v3324, %v3323
      %v3346 = vpack.c.b16 %v3326, %v3325
      %v3347 = vpack.c.b16 %v3328, %v3327
      %v3348 = vpack.c.b16 %v3330, %v3329
      %v3349 = vpack.c.b16 %v3332, %v3331
      %v3350 = vpack.c.b16 %v3334, %v3333
      %3351 = vrot.lane.b32.xlu0 %v3335, 32
      %v3352 = vpop.permute.xlu0 %3351
      %3353 = vrot.lane.b32.xlu0 %v3336, 32
      %v3354 = vpop.permute.xlu0 %3353
      %3355 = vrot.lane.b32.xlu0 %v3337, 32
      %v3356 = vpop.permute.xlu0 %3355
      %3357 = vrot.lane.b32.xlu0 %v3338, 32
      %v3358 = vpop.permute.xlu0 %3357
      %3359 = vrot.lane.b32.xlu0 %v3339, 32
      %v3360 = vpop.permute.xlu0 %3359
      %3361 = vrot.lane.b32.xlu0 %v3340, 32
      %v3362 = vpop.permute.xlu0 %3361
      %3363 = vrot.lane.b32.xlu0 %v3341, 32
      %v3364 = vpop.permute.xlu0 %3363
      %3365 = vrot.lane.b32.xlu0 %v3342, 32
      %v3366 = vpop.permute.xlu0 %3365
      %3367 = vrot.lane.b32.xlu0 %v3343, 32
      %v3368 = vpop.permute.xlu0 %3367
      %3369 = vrot.lane.b32.xlu0 %v3344, 32
      %v3370 = vpop.permute.xlu0 %3369
      %3371 = vrot.lane.b32.xlu0 %v3345, 32
      %v3372 = vpop.permute.xlu0 %3371
      %3373 = vrot.lane.b32.xlu0 %v3346, 32
      %v3374 = vpop.permute.xlu0 %3373
      %3375 = vrot.lane.b32.xlu0 %v3347, 32
      %v3376 = vpop.permute.xlu0 %3375
      %3377 = vrot.lane.b32.xlu0 %v3348, 32
      %v3378 = vpop.permute.xlu0 %3377
      %3379 = vrot.lane.b32.xlu0 %v3349, 32
      %v3380 = vpop.permute.xlu0 %3379
      %3381 = vrot.lane.b32.xlu0 %v3350, 32
      %v3382 = vpop.permute.xlu0 %3381
      %v3383 = vunpack.c.l.b16 %v1913
      %v3384 = vunpack.c.l.b16 %v1916
      %v3385 = vunpack.c.l.b16 %v1920
      %v3386 = vunpack.c.l.b16 %v1923
      %v3387 = vunpack.c.l.b16 %v1927
      %v3388 = vunpack.c.l.b16 %v1930
      %v3389 = vunpack.c.l.b16 %v1934
      %v3390 = vunpack.c.l.b16 %v1937
      %v3391 = vunpack.c.l.b16 %v1941
      %v3392 = vunpack.c.l.b16 %v1944
      %v3393 = vunpack.c.l.b16 %v1948
      %v3394 = vunpack.c.l.b16 %v1951
      %v3395 = vunpack.c.l.b16 %v1955
      %v3396 = vunpack.c.l.b16 %v1958
      %v3397 = vunpack.c.l.b16 %v1962
      %v3398 = vunpack.c.l.b16 %v1965
      %v3399 = vunpack.c.l.b16 %v1969
      %v3400 = vunpack.c.l.b16 %v1972
      %v3401 = vunpack.c.l.b16 %v1976
      %v3402 = vunpack.c.l.b16 %v1979
      %v3403 = vunpack.c.l.b16 %v1983
      %v3404 = vunpack.c.l.b16 %v1986
      %v3405 = vunpack.c.l.b16 %v1990
      %v3406 = vunpack.c.l.b16 %v1993
      %v3407 = vunpack.c.l.b16 %v1997
      %v3408 = vunpack.c.l.b16 %v2000
      %v3409 = vunpack.c.l.b16 %v2004
      %v3410 = vunpack.c.l.b16 %v2007
      %v3411 = vunpack.c.l.b16 %v2011
      %v3412 = vunpack.c.l.b16 %v2014
      %v3413 = vunpack.c.l.b16 %v2018
      %v3414 = vunpack.c.l.b16 %v2021
      %v3415 = vpack.c.b16 %v3384, %v3383
      %v3416 = vpack.c.b16 %v3386, %v3385
      %v3417 = vpack.c.b16 %v3388, %v3387
      %v3418 = vpack.c.b16 %v3390, %v3389
      %v3419 = vpack.c.b16 %v3392, %v3391
      %v3420 = vpack.c.b16 %v3394, %v3393
      %v3421 = vpack.c.b16 %v3396, %v3395
      %v3422 = vpack.c.b16 %v3398, %v3397
      %v3423 = vpack.c.b16 %v3400, %v3399
      %v3424 = vpack.c.b16 %v3402, %v3401
      %v3425 = vpack.c.b16 %v3404, %v3403
      %v3426 = vpack.c.b16 %v3406, %v3405
      %v3427 = vpack.c.b16 %v3408, %v3407
      %v3428 = vpack.c.b16 %v3410, %v3409
      %v3429 = vpack.c.b16 %v3412, %v3411
      %v3430 = vpack.c.b16 %v3414, %v3413
      %3431 = vrot.lane.b32.xlu0 %v3415, 64
      %v3432 = vpop.permute.xlu0 %3431
      %3433 = vrot.lane.b32.xlu0 %v3416, 64
      %v3434 = vpop.permute.xlu0 %3433
      %3435 = vrot.lane.b32.xlu0 %v3417, 64
      %v3436 = vpop.permute.xlu0 %3435
      %3437 = vrot.lane.b32.xlu0 %v3418, 64
      %v3438 = vpop.permute.xlu0 %3437
      %3439 = vrot.lane.b32.xlu0 %v3419, 64
      %v3440 = vpop.permute.xlu0 %3439
      %3441 = vrot.lane.b32.xlu0 %v3420, 64
      %v3442 = vpop.permute.xlu0 %3441
      %3443 = vrot.lane.b32.xlu0 %v3421, 64
      %v3444 = vpop.permute.xlu0 %3443
      %3445 = vrot.lane.b32.xlu0 %v3422, 64
      %v3446 = vpop.permute.xlu0 %3445
      %3447 = vrot.lane.b32.xlu0 %v3423, 64
      %v3448 = vpop.permute.xlu0 %3447
      %3449 = vrot.lane.b32.xlu0 %v3424, 64
      %v3450 = vpop.permute.xlu0 %3449
      %3451 = vrot.lane.b32.xlu0 %v3425, 64
      %v3452 = vpop.permute.xlu0 %3451
      %3453 = vrot.lane.b32.xlu0 %v3426, 64
      %v3454 = vpop.permute.xlu0 %3453
      %3455 = vrot.lane.b32.xlu0 %v3427, 64
      %v3456 = vpop.permute.xlu0 %3455
      %3457 = vrot.lane.b32.xlu0 %v3428, 64
      %v3458 = vpop.permute.xlu0 %3457
      %3459 = vrot.lane.b32.xlu0 %v3429, 64
      %v3460 = vpop.permute.xlu0 %3459
      %3461 = vrot.lane.b32.xlu0 %v3430, 64
      %v3462 = vpop.permute.xlu0 %3461
      %v3479 = vunpack.c.l.b16 %v2022
      %v3480 = vunpack.c.l.b16 %v2023
      %v3481 = vunpack.c.l.b16 %v2024
      %v3482 = vunpack.c.l.b16 %v2025
      %v3483 = vunpack.c.l.b16 %v2026
      %v3484 = vunpack.c.l.b16 %v2027
      %v3485 = vunpack.c.l.b16 %v2028
      %v3486 = vunpack.c.l.b16 %v2029
      %v3487 = vunpack.c.l.b16 %v2030
      %v3488 = vunpack.c.l.b16 %v2031
      %v3489 = vunpack.c.l.b16 %v2032
      %v3490 = vunpack.c.l.b16 %v2033
      %v3491 = vunpack.c.l.b16 %v2034
      %v3492 = vunpack.c.l.b16 %v2035
      %v3493 = vunpack.c.l.b16 %v2036
      %v3494 = vunpack.c.l.b16 %v2037
      %v3495 = vunpack.c.l.b16 %v2038
      %v3496 = vunpack.c.l.b16 %v2039
      %v3497 = vunpack.c.l.b16 %v2040
      %v3498 = vunpack.c.l.b16 %v2041
      %v3499 = vunpack.c.l.b16 %v2042
      %v3500 = vunpack.c.l.b16 %v2043
      %v3501 = vunpack.c.l.b16 %v2044
      %v3502 = vunpack.c.l.b16 %v2045
      %v3503 = vunpack.c.l.b16 %v2046
      %v3504 = vunpack.c.l.b16 %v2047
      %v3505 = vunpack.c.l.b16 %v2048
      %v3506 = vunpack.c.l.b16 %v2049
      %v3507 = vunpack.c.l.b16 %v2050
      %v3508 = vunpack.c.l.b16 %v2051
      %v3509 = vunpack.c.l.b16 %v2052
      %v3510 = vunpack.c.l.b16 %v2053
      %v3511 = vpack.c.b16 %v3480, %v3479
      %v3512 = vpack.c.b16 %v3482, %v3481
      %v3513 = vpack.c.b16 %v3484, %v3483
      %v3514 = vpack.c.b16 %v3486, %v3485
      %v3515 = vpack.c.b16 %v3488, %v3487
      %v3516 = vpack.c.b16 %v3490, %v3489
      %v3517 = vpack.c.b16 %v3492, %v3491
      %v3518 = vpack.c.b16 %v3494, %v3493
      %v3519 = vpack.c.b16 %v3496, %v3495
      %v3520 = vpack.c.b16 %v3498, %v3497
      %v3521 = vpack.c.b16 %v3500, %v3499
      %v3522 = vpack.c.b16 %v3502, %v3501
      %v3523 = vpack.c.b16 %v3504, %v3503
      %v3524 = vpack.c.b16 %v3506, %v3505
      %v3525 = vpack.c.b16 %v3508, %v3507
      %v3526 = vpack.c.b16 %v3510, %v3509
      %3527 = vrot.lane.b32.xlu0 %v3511, 96
      %v3528 = vpop.permute.xlu0 %3527
      %3529 = vrot.lane.b32.xlu0 %v3512, 96
      %v3530 = vpop.permute.xlu0 %3529
      %3531 = vrot.lane.b32.xlu0 %v3513, 96
      %v3532 = vpop.permute.xlu0 %3531
      %3533 = vrot.lane.b32.xlu0 %v3514, 96
      %v3534 = vpop.permute.xlu0 %3533
      %3535 = vrot.lane.b32.xlu0 %v3515, 96
      %v3536 = vpop.permute.xlu0 %3535
      %3537 = vrot.lane.b32.xlu0 %v3516, 96
      %v3538 = vpop.permute.xlu0 %3537
      %3539 = vrot.lane.b32.xlu0 %v3517, 96
      %v3540 = vpop.permute.xlu0 %3539
      %3541 = vrot.lane.b32.xlu0 %v3518, 96
      %v3542 = vpop.permute.xlu0 %3541
      %3543 = vrot.lane.b32.xlu0 %v3519, 96
      %v3544 = vpop.permute.xlu0 %3543
      %3545 = vrot.lane.b32.xlu0 %v3520, 96
      %v3546 = vpop.permute.xlu0 %3545
      %3547 = vrot.lane.b32.xlu0 %v3521, 96
      %v3548 = vpop.permute.xlu0 %3547
      %3549 = vrot.lane.b32.xlu0 %v3522, 96
      %v3550 = vpop.permute.xlu0 %3549
      %3551 = vrot.lane.b32.xlu0 %v3523, 96
      %v3552 = vpop.permute.xlu0 %3551
      %3553 = vrot.lane.b32.xlu0 %v3524, 96
      %v3554 = vpop.permute.xlu0 %3553
      %3555 = vrot.lane.b32.xlu0 %v3525, 96
      %v3556 = vpop.permute.xlu0 %3555
      %3557 = vrot.lane.b32.xlu0 %v3526, 96
      %v3558 = vpop.permute.xlu0 %3557
      %v3559 = vunpack.c.l.b16 %v2083
      %v3560 = vunpack.c.l.b16 %v2093
      %v3561 = vunpack.c.l.b16 %v2107
      %v3562 = vunpack.c.l.b16 %v2117
      %v3563 = vunpack.c.l.b16 %v2131
      %v3564 = vunpack.c.l.b16 %v2141
      %v3565 = vunpack.c.l.b16 %v2155
      %v3566 = vunpack.c.l.b16 %v2165
      %v3567 = vunpack.c.l.b16 %v2179
      %v3568 = vunpack.c.l.b16 %v2189
      %v3569 = vunpack.c.l.b16 %v2203
      %v3570 = vunpack.c.l.b16 %v2213
      %v3571 = vunpack.c.l.b16 %v2227
      %v3572 = vunpack.c.l.b16 %v2237
      %v3573 = vunpack.c.l.b16 %v2251
      %v3574 = vunpack.c.l.b16 %v2261
      %v3575 = vunpack.c.l.b16 %v2275
      %v3576 = vunpack.c.l.b16 %v2285
      %v3577 = vunpack.c.l.b16 %v2299
      %v3578 = vunpack.c.l.b16 %v2309
      %v3579 = vunpack.c.l.b16 %v2323
      %v3580 = vunpack.c.l.b16 %v2333
      %v3581 = vunpack.c.l.b16 %v2347
      %v3582 = vunpack.c.l.b16 %v2357
      %v3583 = vunpack.c.l.b16 %v2371
      %v3584 = vunpack.c.l.b16 %v2381
      %v3585 = vunpack.c.l.b16 %v2395
      %v3586 = vunpack.c.l.b16 %v2405
      %v3587 = vunpack.c.l.b16 %v2419
      %v3588 = vunpack.c.l.b16 %v2429
      %v3589 = vunpack.c.l.b16 %v2443
      %v3590 = vunpack.c.l.b16 %v2453
      %v3591 = vpack.c.b16 %v3560, %v3559
      %v3592 = vpack.c.b16 %v3562, %v3561
      %v3593 = vpack.c.b16 %v3564, %v3563
      %v3594 = vpack.c.b16 %v3566, %v3565
      %v3595 = vpack.c.b16 %v3568, %v3567
      %v3596 = vpack.c.b16 %v3570, %v3569
      %v3597 = vpack.c.b16 %v3572, %v3571
      %v3598 = vpack.c.b16 %v3574, %v3573
      %v3599 = vpack.c.b16 %v3576, %v3575
      %v3600 = vpack.c.b16 %v3578, %v3577
      %v3601 = vpack.c.b16 %v3580, %v3579
      %v3602 = vpack.c.b16 %v3582, %v3581
      %v3603 = vpack.c.b16 %v3584, %v3583
      %v3604 = vpack.c.b16 %v3586, %v3585
      %v3605 = vpack.c.b16 %v3588, %v3587
      %v3606 = vpack.c.b16 %v3590, %v3589
      %v3607 = vunpack.c.l.b16 %v2521
      %v3608 = vunpack.c.l.b16 %v2524
      %v3609 = vunpack.c.l.b16 %v2528
      %v3610 = vunpack.c.l.b16 %v2531
      %v3611 = vunpack.c.l.b16 %v2535
      %v3612 = vunpack.c.l.b16 %v2538
      %v3613 = vunpack.c.l.b16 %v2542
      %v3614 = vunpack.c.l.b16 %v2545
      %v3615 = vunpack.c.l.b16 %v2549
      %v3616 = vunpack.c.l.b16 %v2552
      %v3617 = vunpack.c.l.b16 %v2556
      %v3618 = vunpack.c.l.b16 %v2559
      %v3619 = vunpack.c.l.b16 %v2563
      %v3620 = vunpack.c.l.b16 %v2566
      %v3621 = vunpack.c.l.b16 %v2570
      %v3622 = vunpack.c.l.b16 %v2573
      %v3623 = vunpack.c.l.b16 %v2577
      %v3624 = vunpack.c.l.b16 %v2580
      %v3625 = vunpack.c.l.b16 %v2584
      %v3626 = vunpack.c.l.b16 %v2587
      %v3627 = vunpack.c.l.b16 %v2591
      %v3628 = vunpack.c.l.b16 %v2594
      %v3629 = vunpack.c.l.b16 %v2598
      %v3630 = vunpack.c.l.b16 %v2601
      %v3631 = vunpack.c.l.b16 %v2605
      %v3632 = vunpack.c.l.b16 %v2608
      %v3633 = vunpack.c.l.b16 %v2612
      %v3634 = vunpack.c.l.b16 %v2615
      %v3635 = vunpack.c.l.b16 %v2619
      %v3636 = vunpack.c.l.b16 %v2622
      %v3637 = vunpack.c.l.b16 %v2626
      %v3638 = vunpack.c.l.b16 %v2629
      %v3639 = vpack.c.b16 %v3608, %v3607
      %v3640 = vpack.c.b16 %v3610, %v3609
      %v3641 = vpack.c.b16 %v3612, %v3611
      %v3642 = vpack.c.b16 %v3614, %v3613
      %v3643 = vpack.c.b16 %v3616, %v3615
      %v3644 = vpack.c.b16 %v3618, %v3617
      %v3645 = vpack.c.b16 %v3620, %v3619
      %v3646 = vpack.c.b16 %v3622, %v3621
      %v3647 = vpack.c.b16 %v3624, %v3623
      %v3648 = vpack.c.b16 %v3626, %v3625
      %v3649 = vpack.c.b16 %v3628, %v3627
      %v3650 = vpack.c.b16 %v3630, %v3629
      %v3651 = vpack.c.b16 %v3632, %v3631
      %v3652 = vpack.c.b16 %v3634, %v3633
      %v3653 = vpack.c.b16 %v3636, %v3635
      %v3654 = vpack.c.b16 %v3638, %v3637
      %3655 = vrot.lane.b32.xlu0 %v3639, 32
      %v3656 = vpop.permute.xlu0 %3655
      %3657 = vrot.lane.b32.xlu0 %v3640, 32
      %v3658 = vpop.permute.xlu0 %3657
      %3659 = vrot.lane.b32.xlu0 %v3641, 32
      %v3660 = vpop.permute.xlu0 %3659
      %3661 = vrot.lane.b32.xlu0 %v3642, 32
      %v3662 = vpop.permute.xlu0 %3661
      %3663 = vrot.lane.b32.xlu0 %v3643, 32
      %v3664 = vpop.permute.xlu0 %3663
      %3665 = vrot.lane.b32.xlu0 %v3644, 32
      %v3666 = vpop.permute.xlu0 %3665
      %3667 = vrot.lane.b32.xlu0 %v3645, 32
      %v3668 = vpop.permute.xlu0 %3667
      %3669 = vrot.lane.b32.xlu0 %v3646, 32
      %v3670 = vpop.permute.xlu0 %3669
      %3671 = vrot.lane.b32.xlu0 %v3647, 32
      %v3672 = vpop.permute.xlu0 %3671
      %3673 = vrot.lane.b32.xlu0 %v3648, 32
      %v3674 = vpop.permute.xlu0 %3673
      %3675 = vrot.lane.b32.xlu0 %v3649, 32
      %v3676 = vpop.permute.xlu0 %3675
      %3677 = vrot.lane.b32.xlu0 %v3650, 32
      %v3678 = vpop.permute.xlu0 %3677
      %3679 = vrot.lane.b32.xlu0 %v3651, 32
      %v3680 = vpop.permute.xlu0 %3679
      %3681 = vrot.lane.b32.xlu0 %v3652, 32
      %v3682 = vpop.permute.xlu0 %3681
      %3683 = vrot.lane.b32.xlu0 %v3653, 32
      %v3684 = vpop.permute.xlu0 %3683
      %3685 = vrot.lane.b32.xlu0 %v3654, 32
      %v3686 = vpop.permute.xlu0 %3685
      %v3703 = vunpack.c.l.b16 %v2631
      %v3704 = vunpack.c.l.b16 %v2632
      %v3705 = vunpack.c.l.b16 %v2633
      %v3706 = vunpack.c.l.b16 %v2634
      %v3707 = vunpack.c.l.b16 %v2635
      %v3708 = vunpack.c.l.b16 %v2636
      %v3709 = vunpack.c.l.b16 %v2637
      %v3710 = vunpack.c.l.b16 %v2638
      %v3711 = vunpack.c.l.b16 %v2639
      %v3712 = vunpack.c.l.b16 %v2640
      %v3713 = vunpack.c.l.b16 %v2641
      %v3714 = vunpack.c.l.b16 %v2642
      %v3715 = vunpack.c.l.b16 %v2643
      %v3716 = vunpack.c.l.b16 %v2644
      %v3717 = vunpack.c.l.b16 %v2645
      %v3718 = vunpack.c.l.b16 %v2646
      %v3719 = vunpack.c.l.b16 %v2647
      %v3720 = vunpack.c.l.b16 %v2648
      %v3721 = vunpack.c.l.b16 %v2649
      %v3722 = vunpack.c.l.b16 %v2650
      %v3723 = vunpack.c.l.b16 %v2651
      %v3724 = vunpack.c.l.b16 %v2652
      %v3725 = vunpack.c.l.b16 %v2653
      %v3726 = vunpack.c.l.b16 %v2654
      %v3727 = vunpack.c.l.b16 %v2655
      %v3728 = vunpack.c.l.b16 %v2656
      %v3729 = vunpack.c.l.b16 %v2657
      %v3730 = vunpack.c.l.b16 %v2658
      %v3731 = vunpack.c.l.b16 %v2659
      %v3732 = vunpack.c.l.b16 %v2660
      %v3733 = vunpack.c.l.b16 %v2661
      %v3734 = vunpack.c.l.b16 %v2662
      %v3735 = vpack.c.b16 %v3704, %v3703
      %v3736 = vpack.c.b16 %v3706, %v3705
      %v3737 = vpack.c.b16 %v3708, %v3707
      %v3738 = vpack.c.b16 %v3710, %v3709
      %v3739 = vpack.c.b16 %v3712, %v3711
      %v3740 = vpack.c.b16 %v3714, %v3713
      %v3741 = vpack.c.b16 %v3716, %v3715
      %v3742 = vpack.c.b16 %v3718, %v3717
      %v3743 = vpack.c.b16 %v3720, %v3719
      %v3744 = vpack.c.b16 %v3722, %v3721
      %v3745 = vpack.c.b16 %v3724, %v3723
      %v3746 = vpack.c.b16 %v3726, %v3725
      %v3747 = vpack.c.b16 %v3728, %v3727
      %v3748 = vpack.c.b16 %v3730, %v3729
      %v3749 = vpack.c.b16 %v3732, %v3731
      %v3750 = vpack.c.b16 %v3734, %v3733
      %3751 = vrot.lane.b32.xlu0 %v3735, 64
      %v3752 = vpop.permute.xlu0 %3751
      %3753 = vrot.lane.b32.xlu0 %v3736, 64
      %v3754 = vpop.permute.xlu0 %3753
      %3755 = vrot.lane.b32.xlu0 %v3737, 64
      %v3756 = vpop.permute.xlu0 %3755
      %3757 = vrot.lane.b32.xlu0 %v3738, 64
      %v3758 = vpop.permute.xlu0 %3757
      %3759 = vrot.lane.b32.xlu0 %v3739, 64
      %v3760 = vpop.permute.xlu0 %3759
      %3761 = vrot.lane.b32.xlu0 %v3740, 64
      %v3762 = vpop.permute.xlu0 %3761
      %3763 = vrot.lane.b32.xlu0 %v3741, 64
      %v3764 = vpop.permute.xlu0 %3763
      %3765 = vrot.lane.b32.xlu0 %v3742, 64
      %v3766 = vpop.permute.xlu0 %3765
      %3767 = vrot.lane.b32.xlu0 %v3743, 64
      %v3768 = vpop.permute.xlu0 %3767
      %3769 = vrot.lane.b32.xlu0 %v3744, 64
      %v3770 = vpop.permute.xlu0 %3769
      %3771 = vrot.lane.b32.xlu0 %v3745, 64
      %v3772 = vpop.permute.xlu0 %3771
      %3773 = vrot.lane.b32.xlu0 %v3746, 64
      %v3774 = vpop.permute.xlu0 %3773
      %3775 = vrot.lane.b32.xlu0 %v3747, 64
      %v3776 = vpop.permute.xlu0 %3775
      %3777 = vrot.lane.b32.xlu0 %v3748, 64
      %v3778 = vpop.permute.xlu0 %3777
      %3779 = vrot.lane.b32.xlu0 %v3749, 64
      %v3780 = vpop.permute.xlu0 %3779
      %3781 = vrot.lane.b32.xlu0 %v3750, 64
      %v3782 = vpop.permute.xlu0 %3781
      %v3783 = vunpack.c.l.b16 %v2692
      %v3784 = vunpack.c.l.b16 %v2702
      %v3785 = vunpack.c.l.b16 %v2716
      %v3786 = vunpack.c.l.b16 %v2726
      %v3787 = vunpack.c.l.b16 %v2740
      %v3788 = vunpack.c.l.b16 %v2750
      %v3789 = vunpack.c.l.b16 %v2764
      %v3790 = vunpack.c.l.b16 %v2774
      %v3791 = vunpack.c.l.b16 %v2788
      %v3792 = vunpack.c.l.b16 %v2798
      %v3793 = vunpack.c.l.b16 %v2812
      %v3794 = vunpack.c.l.b16 %v2822
      %v3795 = vunpack.c.l.b16 %v2836
      %v3796 = vunpack.c.l.b16 %v2846
      %v3797 = vunpack.c.l.b16 %v2860
      %v3798 = vunpack.c.l.b16 %v2870
      %v3799 = vunpack.c.l.b16 %v2884
      %v3800 = vunpack.c.l.b16 %v2894
      %v3801 = vunpack.c.l.b16 %v2908
      %v3802 = vunpack.c.l.b16 %v2918
      %v3803 = vunpack.c.l.b16 %v2932
      %v3804 = vunpack.c.l.b16 %v2942
      %v3805 = vunpack.c.l.b16 %v2956
      %v3806 = vunpack.c.l.b16 %v2966
      %v3807 = vunpack.c.l.b16 %v2980
      %v3808 = vunpack.c.l.b16 %v2990
      %v3809 = vunpack.c.l.b16 %v3004
      %v3810 = vunpack.c.l.b16 %v3014
      %v3811 = vunpack.c.l.b16 %v3028
      %v3812 = vunpack.c.l.b16 %v3038
      %v3813 = vunpack.c.l.b16 %v3052
      %v3814 = vunpack.c.l.b16 %v3062
      %v3815 = vpack.c.b16 %v3784, %v3783
      %v3816 = vpack.c.b16 %v3786, %v3785
      %v3817 = vpack.c.b16 %v3788, %v3787
      %v3818 = vpack.c.b16 %v3790, %v3789
      %v3819 = vpack.c.b16 %v3792, %v3791
      %v3820 = vpack.c.b16 %v3794, %v3793
      %v3821 = vpack.c.b16 %v3796, %v3795
      %v3822 = vpack.c.b16 %v3798, %v3797
      %v3823 = vpack.c.b16 %v3800, %v3799
      %v3824 = vpack.c.b16 %v3802, %v3801
      %v3825 = vpack.c.b16 %v3804, %v3803
      %v3826 = vpack.c.b16 %v3806, %v3805
      %v3827 = vpack.c.b16 %v3808, %v3807
      %v3828 = vpack.c.b16 %v3810, %v3809
      %v3829 = vpack.c.b16 %v3812, %v3811
      %v3830 = vpack.c.b16 %v3814, %v3813
      %3831 = vrot.lane.b32.xlu0 %v3815, 96
      %v3832 = vpop.permute.xlu0 %3831
      %3833 = vrot.lane.b32.xlu0 %v3816, 96
      %v3834 = vpop.permute.xlu0 %3833
      %3835 = vrot.lane.b32.xlu0 %v3817, 96
      %v3836 = vpop.permute.xlu0 %3835
      %3837 = vrot.lane.b32.xlu0 %v3818, 96
      %v3838 = vpop.permute.xlu0 %3837
      %3839 = vrot.lane.b32.xlu0 %v3819, 96
      %v3840 = vpop.permute.xlu0 %3839
      %3841 = vrot.lane.b32.xlu0 %v3820, 96
      %v3842 = vpop.permute.xlu0 %3841
      %3843 = vrot.lane.b32.xlu0 %v3821, 96
      %v3844 = vpop.permute.xlu0 %3843
      %3845 = vrot.lane.b32.xlu0 %v3822, 96
      %v3846 = vpop.permute.xlu0 %3845
      %3847 = vrot.lane.b32.xlu0 %v3823, 96
      %v3848 = vpop.permute.xlu0 %3847
      %3849 = vrot.lane.b32.xlu0 %v3824, 96
      %v3850 = vpop.permute.xlu0 %3849
      %3851 = vrot.lane.b32.xlu0 %v3825, 96
      %v3852 = vpop.permute.xlu0 %3851
      %3853 = vrot.lane.b32.xlu0 %v3826, 96
      %v3854 = vpop.permute.xlu0 %3853
      %3855 = vrot.lane.b32.xlu0 %v3827, 96
      %v3856 = vpop.permute.xlu0 %3855
      %3857 = vrot.lane.b32.xlu0 %v3828, 96
      %v3858 = vpop.permute.xlu0 %3857
      %3859 = vrot.lane.b32.xlu0 %v3829, 96
      %v3860 = vpop.permute.xlu0 %3859
      %3861 = vrot.lane.b32.xlu0 %v3830, 96
      %v3862 = vpop.permute.xlu0 %3861
      %v3863 = vunpack.c.l.b16 %v3130
      %v3864 = vunpack.c.l.b16 %v3133
      %v3865 = vunpack.c.l.b16 %v3137
      %v3866 = vunpack.c.l.b16 %v3140
      %v3867 = vunpack.c.l.b16 %v3144
      %v3868 = vunpack.c.l.b16 %v3147
      %v3869 = vunpack.c.l.b16 %v3151
      %v3870 = vunpack.c.l.b16 %v3154
      %v3871 = vunpack.c.l.b16 %v3158
      %v3872 = vunpack.c.l.b16 %v3161
      %v3873 = vunpack.c.l.b16 %v3165
      %v3874 = vunpack.c.l.b16 %v3168
      %v3875 = vunpack.c.l.b16 %v3172
      %v3876 = vunpack.c.l.b16 %v3175
      %v3877 = vunpack.c.l.b16 %v3179
      %v3878 = vunpack.c.l.b16 %v3182
      %v3879 = vunpack.c.l.b16 %v3186
      %v3880 = vunpack.c.l.b16 %v3189
      %v3881 = vunpack.c.l.b16 %v3193
      %v3882 = vunpack.c.l.b16 %v3196
      %v3883 = vunpack.c.l.b16 %v3200
      %v3884 = vunpack.c.l.b16 %v3203
      %v3885 = vunpack.c.l.b16 %v3207
      %v3886 = vunpack.c.l.b16 %v3210
      %v3887 = vunpack.c.l.b16 %v3214
      %v3888 = vunpack.c.l.b16 %v3217
      %v3889 = vunpack.c.l.b16 %v3221
      %v3890 = vunpack.c.l.b16 %v3224
      %v3891 = vunpack.c.l.b16 %v3228
      %v3892 = vunpack.c.l.b16 %v3231
      %v3893 = vunpack.c.l.b16 %v3235
      %v3894 = vunpack.c.l.b16 %v3238
      %v3895 = vpack.c.b16 %v3864, %v3863
      %v3896 = vpack.c.b16 %v3866, %v3865
      %v3897 = vpack.c.b16 %v3868, %v3867
      %v3898 = vpack.c.b16 %v3870, %v3869
      %v3899 = vpack.c.b16 %v3872, %v3871
      %v3900 = vpack.c.b16 %v3874, %v3873
      %v3901 = vpack.c.b16 %v3876, %v3875
      %v3902 = vpack.c.b16 %v3878, %v3877
      %v3903 = vpack.c.b16 %v3880, %v3879
      %v3904 = vpack.c.b16 %v3882, %v3881
      %v3905 = vpack.c.b16 %v3884, %v3883
      %v3906 = vpack.c.b16 %v3886, %v3885
      %v3907 = vpack.c.b16 %v3888, %v3887
      %v3908 = vpack.c.b16 %v3890, %v3889
      %v3909 = vpack.c.b16 %v3892, %v3891
      %v3910 = vpack.c.b16 %v3894, %v3893
      %vm3911 = vcmask 261120
      %v3914 = vsel %vm3911, %v3287, %v3352
      %v3917 = vsel %vm3911, %v3288, %v3354
      %v3920 = vsel %vm3911, %v3289, %v3356
      %v3923 = vsel %vm3911, %v3290, %v3358
      %v3926 = vsel %vm3911, %v3291, %v3360
      %v3929 = vsel %vm3911, %v3292, %v3362
      %v3932 = vsel %vm3911, %v3293, %v3364
      %v3935 = vsel %vm3911, %v3294, %v3366
      %v3938 = vsel %vm3911, %v3295, %v3368
      %v3941 = vsel %vm3911, %v3296, %v3370
      %v3944 = vsel %vm3911, %v3297, %v3372
      %v3947 = vsel %vm3911, %v3298, %v3374
      %v3950 = vsel %vm3911, %v3299, %v3376
      %v3953 = vsel %vm3911, %v3300, %v3378
      %v3956 = vsel %vm3911, %v3301, %v3380
      %v3959 = vsel %vm3911, %v3302, %v3382
      %vm3960 = vcmask 523264
      %v3962 = vsel %vm3960, %v3914, %v3432
      %v3964 = vsel %vm3960, %v3917, %v3434
      %v3966 = vsel %vm3960, %v3920, %v3436
      %v3968 = vsel %vm3960, %v3923, %v3438
      %v3970 = vsel %vm3960, %v3926, %v3440
      %v3972 = vsel %vm3960, %v3929, %v3442
      %v3974 = vsel %vm3960, %v3932, %v3444
      %v3976 = vsel %vm3960, %v3935, %v3446
      %v3978 = vsel %vm3960, %v3938, %v3448
      %v3980 = vsel %vm3960, %v3941, %v3450
      %v3982 = vsel %vm3960, %v3944, %v3452
      %v3984 = vsel %vm3960, %v3947, %v3454
      %v3986 = vsel %vm3960, %v3950, %v3456
      %v3988 = vsel %vm3960, %v3953, %v3458
      %v3990 = vsel %vm3960, %v3956, %v3460
      %v3992 = vsel %vm3960, %v3959, %v3462
      %vm3993 = vcmask 785408
      %v3995 = vsel %vm3993, %v3962, %v3528
      %v3998 = vsel %vm3993, %v3964, %v3530
      %v4001 = vsel %vm3993, %v3966, %v3532
      %v4004 = vsel %vm3993, %v3968, %v3534
      %v4007 = vsel %vm3993, %v3970, %v3536
      %v4010 = vsel %vm3993, %v3972, %v3538
      %v4013 = vsel %vm3993, %v3974, %v3540
      %v4016 = vsel %vm3993, %v3976, %v3542
      %v4019 = vsel %vm3993, %v3978, %v3544
      %v4022 = vsel %vm3993, %v3980, %v3546
      %v4025 = vsel %vm3993, %v3982, %v3548
      %v4028 = vsel %vm3993, %v3984, %v3550
      %v4031 = vsel %vm3993, %v3986, %v3552
      %v4034 = vsel %vm3993, %v3988, %v3554
      %v4037 = vsel %vm3993, %v3990, %v3556
      %v4040 = vsel %vm3993, %v3992, %v3558
      %v4044 = vsel %vm3911, %v3591, %v3656
      %v4047 = vsel %vm3911, %v3592, %v3658
      %v4050 = vsel %vm3911, %v3593, %v3660
      %v4053 = vsel %vm3911, %v3594, %v3662
      %v4056 = vsel %vm3911, %v3595, %v3664
      %v4059 = vsel %vm3911, %v3596, %v3666
      %v4062 = vsel %vm3911, %v3597, %v3668
      %v4065 = vsel %vm3911, %v3598, %v3670
      %v4068 = vsel %vm3911, %v3599, %v3672
      %v4071 = vsel %vm3911, %v3600, %v3674
      %v4074 = vsel %vm3911, %v3601, %v3676
      %v4077 = vsel %vm3911, %v3602, %v3678
      %v4080 = vsel %vm3911, %v3603, %v3680
      %v4083 = vsel %vm3911, %v3604, %v3682
      %v4086 = vsel %vm3911, %v3605, %v3684
      %v4089 = vsel %vm3911, %v3606, %v3686
      %v4091 = vsel %vm3960, %v4044, %v3752
      %v4093 = vsel %vm3960, %v4047, %v3754
      %v4095 = vsel %vm3960, %v4050, %v3756
      %v4097 = vsel %vm3960, %v4053, %v3758
      %v4099 = vsel %vm3960, %v4056, %v3760
      %v4101 = vsel %vm3960, %v4059, %v3762
      %v4103 = vsel %vm3960, %v4062, %v3764
      %v4105 = vsel %vm3960, %v4065, %v3766
      %v4107 = vsel %vm3960, %v4068, %v3768
      %v4109 = vsel %vm3960, %v4071, %v3770
      %v4111 = vsel %vm3960, %v4074, %v3772
      %v4113 = vsel %vm3960, %v4077, %v3774
      %v4115 = vsel %vm3960, %v4080, %v3776
      %v4117 = vsel %vm3960, %v4083, %v3778
      %v4119 = vsel %vm3960, %v4086, %v3780
      %v4121 = vsel %vm3960, %v4089, %v3782
      %v4123 = vsel %vm3993, %v4091, %v3832
      %v4126 = vsel %vm3993, %v4093, %v3834
      %v4129 = vsel %vm3993, %v4095, %v3836
      %v4132 = vsel %vm3993, %v4097, %v3838
      %v4135 = vsel %vm3993, %v4099, %v3840
      %v4138 = vsel %vm3993, %v4101, %v3842
      %v4141 = vsel %vm3993, %v4103, %v3844
      %v4144 = vsel %vm3993, %v4105, %v3846
      %v4147 = vsel %vm3993, %v4107, %v3848
      %v4150 = vsel %vm3993, %v4109, %v3850
      %v4153 = vsel %vm3993, %v4111, %v3852
      %v4156 = vsel %vm3993, %v4113, %v3854
      %v4159 = vsel %vm3993, %v4115, %v3856
      %v4162 = vsel %vm3993, %v4117, %v3858
      %v4165 = vsel %vm3993, %v4119, %v3860
      %v4168 = vsel %vm3993, %v4121, %v3862
      %v4170 = vld [vmem:[%s5] sm:$0x3f]
      %v4171 = vld [vmem:[%s6] sm:$0xf]
      %4173 = vset.pattern.permute.xlu0 0
      %4174 = vperm.xlu0 %4173, %v4171
      %v4175 = vpop.permute.xlu0 %4174
      %v4178 = vcombine.high %v4170, %v4170
      %v4180 = vunpack.c.l.s4 1983009808
      %v4181 = vunpack.c.0.s8 %v4180
      %v4182 = vlaneseq
      %v4183 = vshrl.u32 %v4182, 7
      %v4184 = vsub.s32 %v4181, %v4183
      %v4185 = vrot.slane %v4170, %v4184
      %v4187 = vunpack.c.l.s4 1983009808
      %v4188 = vunpack.c.0.s8 %v4187
      %v4189 = vlaneseq
      %v4190 = vshrl.u32 %v4189, 7
      %v4191 = vsub.s32 %v4188, %v4190
      %v4192 = vrot.slane %v4178, %v4191
      %v4193 = vcombine.high %v4185, %v4185
      %v4197 = vsel %vm3911, %v4192, 0
      %v4200 = vsel %vm3911, %v3895, 0
      %v4203 = vsel %vm3911, %v3896, 0
      %v4206 = vsel %vm3911, %v3897, 0
      %v4209 = vsel %vm3911, %v3898, 0
      %v4212 = vsel %vm3911, %v3899, 0
      %v4215 = vsel %vm3911, %v3900, 0
      %v4218 = vsel %vm3911, %v3901, 0
      %v4221 = vsel %vm3911, %v3902, 0
      %v4224 = vsel %vm3911, %v3903, 0
      %v4227 = vsel %vm3911, %v3904, 0
      %v4230 = vsel %vm3911, %v3905, 0
      %v4233 = vsel %vm3911, %v3906, 0
      %v4236 = vsel %vm3911, %v3907, 0
      %v4239 = vsel %vm3911, %v3908, 0
      %v4242 = vsel %vm3911, %v3909, 0
      %v4245 = vsel %vm3911, %v3910, 0
      %4247 = vmatprep.subr.bf16.mxu0 %v4123
      %4248 = vmatpush1.bf16.xpose.msra.mxu0 %v3995
      %4249 = vmatprep.subr.bf16.mxu0 %v4126
      %4250 = vmatpush1.bf16.xpose.msra.mxu0 %v3998
      %4251 = vmatprep.subr.bf16.mxu0 %v4129
      %4252 = vmatpush1.bf16.xpose.msra.mxu0 %v4001
      %4253 = vmatprep.subr.bf16.mxu0 %v4132
      %4254 = vmatpush1.bf16.xpose.msra.mxu0 %v4004
      %4255 = vmatprep.subr.bf16.mxu0 %v4135
      %4256 = vmatpush1.bf16.xpose.msra.mxu0 %v4007
      %4257 = vmatprep.subr.bf16.mxu0 %v4138
      %4258 = vmatpush1.bf16.xpose.msra.mxu0 %v4010
      %4259 = vmatprep.subr.bf16.mxu0 %v4141
      %4260 = vmatpush1.bf16.xpose.msra.mxu0 %v4013
      %4261 = vmatprep.subr.bf16.mxu0 %v4144
      %4262 = vmatpush1.bf16.xpose.msra.mxu0 %v4016
      %4263 = vmatprep.subr.bf16.mxu0 %v4147
      %4264 = vmatpush1.bf16.xpose.msra.mxu0 %v4019
      %4265 = vmatprep.subr.bf16.mxu0 %v4150
      %4266 = vmatpush1.bf16.xpose.msra.mxu0 %v4022
      %4267 = vmatprep.subr.bf16.mxu0 %v4153
      %4268 = vmatpush1.bf16.xpose.msra.mxu0 %v4025
      %4269 = vmatprep.subr.bf16.mxu0 %v4156
      %4270 = vmatpush1.bf16.xpose.msra.mxu0 %v4028
      %4271 = vmatprep.subr.bf16.mxu0 %v4159
      %4272 = vmatpush1.bf16.xpose.msra.mxu0 %v4031
      %4273 = vmatprep.subr.bf16.mxu0 %v4162
      %4274 = vmatpush1.bf16.xpose.msra.mxu0 %v4034
      %4275 = vmatprep.subr.bf16.mxu0 %v4165
      %4276 = vmatpush1.bf16.xpose.msra.mxu0 %v4037
      %4277 = vmatprep.subr.bf16.mxu0 %v4168
      %4278 = vmatpush1.bf16.xpose.msra.mxu0 %v4040
      %4279 = vmatprep.mubr.bf16.mxu0 %v4193
      %4280 = vmatmul.mubr.bf16.gmra.mrb[0].mxu0 %v4185
      %v4281 = vpop.f32.mrb[0].mxu0
      %v4282 = vadd.f32 %v4175, %v4281
      %v4283 = vpop.f32.mrb[0].mxu0
      %v4284 = vadd.f32 %v4175, %v4283
      %v4285 = vpop.f32.mrb[0].mxu0
      %v4286 = vpop.f32.mrb[0].mxu0
      %4287 = vdwg.mxu0
      %4288 = vmatprep.subr.bf16.mxu0 0
      %4289 = vmatpush1.bf16.xpose.msra.mxu0 %v4200
      %4290 = vmatprep.subr.bf16.mxu0 0
      %4291 = vmatpush1.bf16.xpose.msra.mxu0 %v4203
      %4292 = vmatprep.subr.bf16.mxu0 0
      %4293 = vmatpush1.bf16.xpose.msra.mxu0 %v4206
      %4294 = vmatprep.subr.bf16.mxu0 0
      %4295 = vmatpush1.bf16.xpose.msra.mxu0 %v4209
      %4296 = vmatprep.subr.bf16.mxu0 0
      %4297 = vmatpush1.bf16.xpose.msra.mxu0 %v4212
      %4298 = vmatprep.subr.bf16.mxu0 0
      %4299 = vmatpush1.bf16.xpose.msra.mxu0 %v4215
      %4300 = vmatprep.subr.bf16.mxu0 0
      %4301 = vmatpush1.bf16.xpose.msra.mxu0 %v4218
      %4302 = vmatprep.subr.bf16.mxu0 0
      %4303 = vmatpush1.bf16.xpose.msra.mxu0 %v4221
      %4304 = vmatprep.subr.bf16.mxu0 0
      %4305 = vmatpush1.bf16.xpose.msra.mxu0 %v4224
      %4306 = vmatprep.subr.bf16.mxu0 0
      %4307 = vmatpush1.bf16.xpose.msra.mxu0 %v4227
      %4308 = vmatprep.subr.bf16.mxu0 0
      %4309 = vmatpush1.bf16.xpose.msra.mxu0 %v4230
      %4310 = vmatprep.subr.bf16.mxu0 0
      %4311 = vmatpush1.bf16.xpose.msra.mxu0 %v4233
      %4312 = vmatprep.subr.bf16.mxu0 0
      %4313 = vmatpush1.bf16.xpose.msra.mxu0 %v4236
      %4314 = vmatprep.subr.bf16.mxu0 0
      %4315 = vmatpush1.bf16.xpose.msra.mxu0 %v4239
      %4316 = vmatprep.subr.bf16.mxu0 0
      %4317 = vmatpush1.bf16.xpose.msra.mxu0 %v4242
      %4318 = vmatprep.subr.bf16.mxu0 0
      %4319 = vmatpush1.bf16.xpose.msra.mxu0 %v4245
      %4320 = vmatprep.mubr.bf16.mxu0 0
      %4321 = vmatmul.mubr.bf16.gmra.mrb[0].mxu0 %v4197
      %v4322 = vpop.f32.mrb[0].mxu0
      %v4323 = vadd.f32 %v4282, %v4322
      %v4324 = vpop.f32.mrb[0].mxu0
      %v4325 = vadd.f32 %v4284, %v4324
      %v4326 = vpop.f32.mrb[0].mxu0
      %v4327 = vpop.f32.mrb[0].mxu0
      %4328 = vdwg.mxu0
      %v4329 = vpack.c.bf16 %v4323, %v4323
      %v4330 = vpack.c.bf16 %v4325, %v4325
      %v4333 = vcombine.low %v4329, %v4330
      %v4335 = vunpack.c.l.s4 1983009808
      %v4336 = vunpack.c.0.s8 %v4335
      %v4337 = vlaneseq
      %v4338 = vshrl.u32 %v4337, 7
      %v4339 = vsub.s32 %v4336, %v4338
      %v4340 = vrot.slane %v4333, %v4339
      %4342 = vst [vmem:[%s312] sm:$0xf] %v4340
      %v4343 = vsel %vm487, %v4323, 0.0
      %v4344 = vsel %vm487, %v4325, 0.0
      %v4345 = vadd.f32 %v4343, %v4344
      %4346 = vadd.xlane.f32.xlu0 %v4345
      %v4347 = vpop.xlane.xlu0 %4346
      %v4348 = vmul.f32 %v4323, %v4323
      %v4349 = vmul.f32 %v4325, %v4325
      %v4350 = vsel %vm487, %v4348, 0.0
      %v4351 = vsel %vm487, %v4349, 0.0
      %v4352 = vadd.f32 %v4350, %v4351
      %4353 = vadd.xlane.f32.xlu0 %v4352
      %v4354 = vpop.xlane.xlu0 %4353
      %vm4355 = vcmask 7168
      %v4356 = vsel %vm4355, %v4347, %v4354
      %vm4357 = vcmask 11264
      %4358 = vst.msk [vmem:[%s316] sm:$0xf] %vm4357, %v4356
      %p4359 = scmp.lt.s32.totalorder %s20, 1
      %s4360 = scalar_select %p4359, %s20, 1
      %s4361 = smul.addr %s4360, 2
      %s4362 = smul.addr %s4361, 2
      %s4363 = scalar_lea.vmem %s7, %s4362
      %p4364 = scmp.lt.s32.totalorder %s20, 1
      %s4365 = scalar_select %p4364, %s20, 1
      %s4366 = smul.addr %s4365, 4
      %s4367 = scalar_lea.vmem %s8, %s4366
      // Predicated region
      $region49: #{blend_block_forward.4} parent=47 // pred_check
        %p4368 = pneg %p190
      $region50: #{blend_block_forward.4} parent=47 // pred_check_branch
        %4370 = sbr.rel (%p4368) target = $region52
      $region51: #{blend_block_forward.4} parent=47 // pred_region
        _
      $region52: #{blend_block_forward.4} parent=47 // pred_fallthru
        _
      // Predicated region
      $region53: #{blend_block_forward.4} parent=47 // pred_check
        %p4371 = pneg %p216
      $region54: #{blend_block_forward.4} parent=47 // pred_check_branch
        %4373 = sbr.rel (%p4371) target = $region56
      $region55: #{blend_block_forward.4} parent=47 // pred_region
        _
      $region56: #{blend_block_forward.4} parent=47 // pred_fallthru
        _
    $region48: #{blend_block_forward.4} parent=5 // pred_fallthru
      _
    %p4374 = scmp.le.s32.totalorder 2, %s15
    // Predicated region
    $region57: #{blend_block_forward.4} parent=5 // pred_check
      %p4375 = pneg %p4374
    $region58: #{blend_block_forward.4} parent=5 // pred_check_branch
      %4377 = sbr.rel (%p4375) target = $region60
    $region59: #{blend_block_forward.4} parent=5 // pred_region
      %s4378 = ssub.s32 %s15, 2
      // Predicated region
      $region61: #{blend_block_forward.4} parent=59 // pred_check
        %p4379 = pneg %p196
      $region62: #{blend_block_forward.4} parent=59 // pred_check_branch
        %4381 = sbr.rel (%p4379) target = $region64
      $region63: #{blend_block_forward.4} parent=59 // pred_region
        %p4382 = scmp.lt.s32.totalorder %s21, 1
        %s4383 = scalar_select %p4382, %s21, 1
        %s4384 = smul.addr %s4383, 2
        %s4385 = smul.addr %s4384, 2
        %s4386 = scalar_lea.vmem %s7, %s4385
      $region64: #{blend_block_forward.4} parent=59 // pred_fallthru
        _
      // Predicated region
      $region65: #{blend_block_forward.4} parent=59 // pred_check
        %p4387 = pneg %p222
      $region66: #{blend_block_forward.4} parent=59 // pred_check_branch
        %4389 = sbr.rel (%p4387) target = $region68
      $region67: #{blend_block_forward.4} parent=59 // pred_region
        %p4390 = scmp.lt.s32.totalorder %s21, 1
        %s4391 = scalar_select %p4390, %s21, 1
        %s4392 = smul.addr %s4391, 4
        %s4393 = scalar_lea.vmem %s8, %s4392
      $region68: #{blend_block_forward.4} parent=59 // pred_fallthru
        _
    $region60: #{blend_block_forward.4} parent=5 // pred_fallthru
      _
  $region6: #{blend_block_forward.4} parent=0 // loop_footer
    %s19 = sadd.s32 1, %s15
  $region7: #{blend_block_forward.4} parent=0 // loop_footer_branch
    %14 = sbr.rel target = $region3
  $region8: #{blend_block_forward.4} parent=0 // loop_exit
    _

</llo_original>
